<compile_context>
chip_gen: v7x
topology: tpu7x:2x2x1
jax: 0.10.0
libtpu: 0.0.40
codegen_flags: <defaults>
</compile_context>

<pallas_src>
import functools

import jax
import jax.numpy as jnp
from jax.experimental import pallas as pl
from jax.experimental.pallas import tpu as pltpu

# ---- module constants (from PyTorch/model.py) -------------------------------
EMBEDDIM = 768        # bert-base hidden size
HIDDEN_LSTM = 128
NUMLAYERS = 12        # LSTM sequence length (one [CLS] per BERT layer)
NUMCLASSES = 4        # example numclasses
BATCH = 8             # sublane-aligned small batch


# ----------------------------------------------------------------------------
# One-time (parameter-load-time) weight preparation.  NOT in the per-call path.
# ----------------------------------------------------------------------------
def prepare_params(w_ih, w_hh, b_ih, b_hh, w_fc, b_fc):
    """Transpose weights into MXU-friendly layouts, fold the two LSTM biases,
    and cast only the big input-projection weight to bf16.

    W_hh / W_fc stay f32: the per-step recurrent matmul and the final FC are
    latency-bound, and f32 avoids compounding rounding over the 12 steps.
    PyTorch shapes/gate order (i, f, g, o):
      w_ih: (4H, E), w_hh: (4H, H), b_ih/b_hh: (4H,), w_fc: (C, H), b_fc: (C,).
    """
    return {
        "wih_t": jnp.transpose(w_ih).astype(jnp.bfloat16),            # (E, 4H)
        "whh_t": jnp.transpose(w_hh).astype(jnp.float32),             # (H, 4H)
        "bias": (b_ih + b_hh).reshape(1, -1).astype(jnp.float32),     # (1, 4H)
        "wfc_t": jnp.transpose(w_fc).astype(jnp.float32),             # (H, C)
        "bfc": b_fc.reshape(1, -1).astype(jnp.float32),               # (1, C)
    }


# ----------------------------------------------------------------------------
# Kernel
# ----------------------------------------------------------------------------
def _lstm_fc_kernel(x_ref, wih_ref, whh_ref, b_ref, wfc_ref, bfc_ref,
                    out_ref, gx_ref, *, batch, hidden, steps):
    k = pl.program_id(0)
    last = pl.num_programs(0) - 1

    # Hoisted input projection, partial over this K-slice of E:
    #   (T*B, Ek) @ (Ek, 4H) on the MXU.  x is cast to bf16 HERE, after the
    #   DMA (no pre-kernel cast pass); accumulate in f32 into VMEM scratch.
    part = jnp.dot(x_ref[...].astype(jnp.bfloat16), wih_ref[...],
                   preferred_element_type=jnp.float32)            # (T*B, 4H)

    @pl.when(k == 0)
    def _():
        gx_ref[...] = part + b_ref[...]        # fold (b_ih + b_hh) once

    @pl.when(k != 0)
    def _():
        gx_ref[...] = gx_ref[...] + part

    # Run the recurrence + FC only once every K-slice has been accumulated.
    @pl.when(k == last)
    def _():
        h = jnp.zeros((batch, hidden), jnp.float32)
        c = jnp.zeros((batch, hidden), jnp.float32)
        # T is a small static constant -> fully unrolled; h/c are a few f32
        # vregs and stay register-resident.  W_hh is re-read from VMEM each
        # step (cheap vlds) rather than hoisted as a large live value across
        # the unrolled loop (would pin a big chunk of the 64-vreg file).
        for t in range(steps):
            gates = gx_ref[pl.ds(t * batch, batch), :] + jnp.dot(
                h, whh_ref[...], preferred_element_type=jnp.float32)  # (B,4H)
            i_g = jax.nn.sigmoid(gates[:, 0 * hidden:1 * hidden])
            f_g = jax.nn.sigmoid(gates[:, 1 * hidden:2 * hidden])
            g_g = jnp.tanh(gates[:, 2 * hidden:3 * hidden])
            o_g = jax.nn.sigmoid(gates[:, 3 * hidden:4 * hidden])
            c = f_g * c + i_g * g_g
            h = o_g * jnp.tanh(c)

        # nn.Dropout(0.1) is the identity at inference time; final Linear.
        out_ref[...] = (jnp.dot(h, wfc_ref[...],
                                preferred_element_type=jnp.float32)
                        + bfc_ref[...])


# ----------------------------------------------------------------------------
# Per-call wrapper (activations only; weights come pre-prepared)
# ----------------------------------------------------------------------------
def bert_lstm_capsule_head(hidden_states_bte, params, *, k_splits=2):
    """hidden_states_bte: (B, T, E) f32 stacked [CLS] states (batch-first).
    params: output of prepare_params() (load-time weight prep).
    k_splits: grid splits over the E contraction axis of the hoisted input
      projection so the x / W_ih DMA double-buffers against MXU work.
      2 is a good default for v5e/v6e; use 1 on v7x.
    """
    B, T, E = hidden_states_bte.shape
    H = params["whh_t"].shape[0]
    G = 4 * H
    C = params["wfc_t"].shape[1]
    assert B % 8 == 0, "batch must be a multiple of 8 (sublane alignment)"
    assert E % k_splits == 0 and (E // k_splits) % 128 == 0
    ek = E // k_splits

    # Only per-call activation prep: time-major flatten, kept in f32 (the bf16
    # cast is fused into the kernel).  Rows [t*B:(t+1)*B] of the hoisted
    # projection are then contiguous, sublane-aligned blocks.
    x_flat = jnp.transpose(hidden_states_bte, (1, 0, 2)).reshape(T * B, E)

    kernel = functools.partial(_lstm_fc_kernel, batch=B, hidden=H, steps=T)

    return pl.pallas_call(
        kernel,
        out_shape=jax.ShapeDtypeStruct((B, C), jnp.float32),
        grid_spec=pltpu.PrefetchScalarGridSpec(
            num_scalar_prefetch=0,
            grid=(k_splits,),
            in_specs=[
                pl.BlockSpec((T * B, ek), lambda k: (0, k)),   # x (f32)
                pl.BlockSpec((ek, G), lambda k: (k, 0)),       # W_ih^T (bf16)
                pl.BlockSpec((H, G), lambda k: (0, 0)),        # W_hh^T (f32)
                pl.BlockSpec((1, G), lambda k: (0, 0)),        # b_ih + b_hh
                pl.BlockSpec((H, C), lambda k: (0, 0)),        # W_fc^T (f32)
                pl.BlockSpec((1, C), lambda k: (0, 0)),        # b_fc
            ],
            out_specs=pl.BlockSpec((B, C), lambda k: (0, 0)),
            scratch_shapes=[pltpu.VMEM((T * B, G), jnp.float32)],  # gx accum
        ),
        compiler_params=pltpu.CompilerParams(
            dimension_semantics=("arbitrary",)),
    )(x_flat, params["wih_t"], params["whh_t"], params["bias"],
      params["wfc_t"], params["bfc"])


# ---- pure-JAX reference (PyTorch LSTM semantics, f32) ------------------------
def reference_head(x_bte, w_ih, w_hh, b_ih, b_hh, w_fc, b_fc):
    B, T, E = x_bte.shape
    H = w_hh.shape[1]

    def step(carry, x_t):
        h, c = carry
        gates = x_t @ w_ih.T + h @ w_hh.T + b_ih + b_hh
        i = jax.nn.sigmoid(gates[:, 0 * H:1 * H])
        f = jax.nn.sigmoid(gates[:, 1 * H:2 * H])
        g = jnp.tanh(gates[:, 2 * H:3 * H])
        o = jax.nn.sigmoid(gates[:, 3 * H:4 * H])
        c = f * c + i * g
        h = o * jnp.tanh(c)
        return (h, c), None

    h0 = jnp.zeros((B, H), jnp.float32)
    c0 = jnp.zeros((B, H), jnp.float32)
    (h, _), _ = jax.lax.scan(step, (h0, c0), jnp.transpose(x_bte, (1, 0, 2)))
    return h @ w_fc.T + b_fc


if __name__ == "__main__":
    key = jax.random.PRNGKey(0)
    k1, k2, k3, k4, k5, k6, k7 = jax.random.split(key, 7)

    # Stand-in for the stacked per-layer [CLS] hidden states the module builds
    # right before the LSTM.
    # TODO(synk): the pretrained BERT encoder producing these hidden states is
    # an external checkpoint and is not re-implemented here.
    hidden_states = jax.random.normal(
        k1, (BATCH, NUMLAYERS, EMBEDDIM), dtype=jnp.float32) * 0.5

    # Deterministic parameter init (PyTorch shapes: nn.LSTM / nn.Linear).
    scale = 1.0 / jnp.sqrt(HIDDEN_LSTM)
    w_ih = jax.random.uniform(k2, (4 * HIDDEN_LSTM, EMBEDDIM),
                              minval=-scale, maxval=scale, dtype=jnp.float32)
    w_hh = jax.random.uniform(k3, (4 * HIDDEN_LSTM, HIDDEN_LSTM),
                              minval=-scale, maxval=scale, dtype=jnp.float32)
    b_ih = jax.random.uniform(k4, (4 * HIDDEN_LSTM,),
                              minval=-scale, maxval=scale, dtype=jnp.float32)
    b_hh = jax.random.uniform(k5, (4 * HIDDEN_LSTM,),
                              minval=-scale, maxval=scale, dtype=jnp.float32)
    w_fc = jax.random.uniform(k6, (NUMCLASSES, HIDDEN_LSTM),
                              minval=-scale, maxval=scale, dtype=jnp.float32)
    b_fc = jax.random.uniform(k7, (NUMCLASSES,),
                              minval=-scale, maxval=scale, dtype=jnp.float32)

    # Load-time weight prep: done ONCE, outside the per-call hot path.
    params = prepare_params(w_ih, w_hh, b_ih, b_hh, w_fc, b_fc)

    # Per-call path: jitted wrapper = one layout op on activations + the kernel.
    head = jax.jit(functools.partial(bert_lstm_capsule_head, k_splits=2))
    out = jax.block_until_ready(head(hidden_states, params))

    ref = reference_head(hidden_states, w_ih, w_hh, b_ih, b_hh, w_fc, b_fc)
    assert out.shape == (BATCH, NUMCLASSES)
    # Residual error comes only from the bf16 hoisted input projection (f32
    # accumulate); the 12-step recurrence and the FC are full f32, so the
    # tolerance is tighter than the previous all-bf16 version.
    err = float(jnp.max(jnp.abs(out - ref)))
    assert jnp.allclose(out, ref, atol=5e-2, rtol=5e-2), \
        f"mismatch vs reference (max abs err={err})"

    print("KERNEL_OK")
</pallas_src>

<mosaic_0001>
module attributes {stable_mosaic.version = 11 : i64} {
  func.func @_lstm_fc_kernel(%arg0: i32, %arg1: memref<96x384xf32, #tpu.memory_space<vmem>>, %arg2: memref<384x512xbf16, #tpu.memory_space<vmem>>, %arg3: memref<128x512xf32, #tpu.memory_space<vmem>>, %arg4: memref<1x512xf32, #tpu.memory_space<vmem>>, %arg5: memref<128x4xf32, #tpu.memory_space<vmem>>, %arg6: memref<1x4xf32, #tpu.memory_space<vmem>>, %arg7: memref<8x4xf32, #tpu.memory_space<vmem>>, %arg8: memref<96x512xf32, #tpu.memory_space<vmem>>) attributes {dimension_semantics = [#tpu.dimension_semantics<arbitrary>], iteration_bounds = array<i64: 2>, scalar_prefetch = 0 : i64, scratch_operands = 1 : i64, tpu.core_type = #tpu.core_type<tc>, window_params = [{transform_indices = @transform_0, window_bounds = array<i64: 96, 384>}, {transform_indices = @transform_1, window_bounds = array<i64: 384, 512>}, {pipeline_mode = #tpu.pipeline_mode<synchronous>, transform_indices = @transform_2, window_bounds = array<i64: 128, 512>}, {pipeline_mode = #tpu.pipeline_mode<synchronous>, transform_indices = @transform_3, window_bounds = array<i64: 1, 512>}, {pipeline_mode = #tpu.pipeline_mode<synchronous>, transform_indices = @transform_4, window_bounds = array<i64: 128, 4>}, {pipeline_mode = #tpu.pipeline_mode<synchronous>, transform_indices = @transform_5, window_bounds = array<i64: 1, 4>}, {pipeline_mode = #tpu.pipeline_mode<synchronous>, transform_indices = @transform_6, window_bounds = array<i64: 8, 4>}]} {
    %c0 = arith.constant 0 : index
    %c0_0 = arith.constant 0 : index
    %0 = vector.load %arg1[%c0, %c0_0] : memref<96x384xf32, #tpu.memory_space<vmem>>, vector<96x384xf32>
    %1 = arith.truncf %0 : vector<96x384xf32> to vector<96x384xbf16>
    %c0_1 = arith.constant 0 : index
    %c0_2 = arith.constant 0 : index
    %2 = vector.load %arg2[%c0_1, %c0_2] : memref<384x512xbf16, #tpu.memory_space<vmem>>, vector<384x512xbf16>
    %cst = arith.constant dense<0.000000e+00> : vector<96x512xf32>
    %3 = tpu.matmul %1, %2, %cst {dimension_numbers = #tpu.dot_dimension_numbers<[1], [0], [0], [1], [0, 0, 1, 1], [], []>} : vector<96x384xbf16>, vector<384x512xbf16>, vector<96x512xf32> -> vector<96x512xf32>
    %c0_i32 = arith.constant 0 : i32
    %4 = arith.cmpi eq, %arg0, %c0_i32 : i32
    %5 = arith.extui %4 : i1 to i32
    %c0_i32_3 = arith.constant 0 : i32
    %6 = arith.cmpi ne, %5, %c0_i32_3 : i32
    scf.if %6 {
      %c0_7 = arith.constant 0 : index
      %c0_8 = arith.constant 0 : index
      %13 = vector.load %arg4[%c0_7, %c0_8] : memref<1x512xf32, #tpu.memory_space<vmem>>, vector<1x512xf32>
      %14 = vector.broadcast %13 : vector<1x512xf32> to vector<96x512xf32>
      %15 = arith.addf %3, %14 : vector<96x512xf32>
      %c0_9 = arith.constant 0 : index
      %c0_10 = arith.constant 0 : index
      %16 = vector.load %arg8[%c0_9, %c0_10] : memref<96x512xf32, #tpu.memory_space<vmem>>, vector<96x512xf32>
      tpu.vector_store %arg8[%c0_9, %c0_10], %15 {strides = array<i32>} : memref<96x512xf32, #tpu.memory_space<vmem>>, vector<96x512xf32>,
    } else {
    }
    %c0_i32_4 = arith.constant 0 : i32
    %7 = arith.cmpi ne, %arg0, %c0_i32_4 : i32
    %8 = arith.extui %7 : i1 to i32
    %c0_i32_5 = arith.constant 0 : i32
    %9 = arith.cmpi ne, %8, %c0_i32_5 : i32
    scf.if %9 {
      %c0_7 = arith.constant 0 : index
      %c0_8 = arith.constant 0 : index
      %13 = vector.load %arg8[%c0_7, %c0_8] : memref<96x512xf32, #tpu.memory_space<vmem>>, vector<96x512xf32>
      %14 = arith.addf %13, %3 : vector<96x512xf32>
      %c0_9 = arith.constant 0 : index
      %c0_10 = arith.constant 0 : index
      %15 = vector.load %arg8[%c0_9, %c0_10] : memref<96x512xf32, #tpu.memory_space<vmem>>, vector<96x512xf32>
      tpu.vector_store %arg8[%c0_9, %c0_10], %14 {strides = array<i32>} : memref<96x512xf32, #tpu.memory_space<vmem>>, vector<96x512xf32>,
    } else {
    }
    %c1_i32 = arith.constant 1 : i32
    %10 = arith.cmpi eq, %arg0, %c1_i32 : i32
    %11 = arith.extui %10 : i1 to i32
    %c0_i32_6 = arith.constant 0 : i32
    %12 = arith.cmpi ne, %11, %c0_i32_6 : i32
    scf.if %12 {
      %cst_7 = arith.constant 0.000000e+00 : f32
      %13 = vector.broadcast %cst_7 : f32 to vector<8x128xf32>
      %cst_8 = arith.constant 0.000000e+00 : f32
      %14 = vector.broadcast %cst_8 : f32 to vector<8x128xf32>
      %c0_9 = arith.constant 0 : index
      %c0_10 = arith.constant 0 : index
      %15 = vector.load %arg8[%c0_9, %c0_10] : memref<96x512xf32, #tpu.memory_space<vmem>>, vector<8x512xf32>
      %c0_11 = arith.constant 0 : index
      %c0_12 = arith.constant 0 : index
      %16 = vector.load %arg3[%c0_11, %c0_12] : memref<128x512xf32, #tpu.memory_space<vmem>>, vector<128x512xf32>
      %cst_13 = arith.constant dense<0.000000e+00> : vector<8x512xf32>
      %17 = tpu.matmul %13, %16, %cst_13 {dimension_numbers = #tpu.dot_dimension_numbers<[1], [0], [0], [1], [0, 0, 1, 1], [], []>} : vector<8x128xf32>, vector<128x512xf32>, vector<8x512xf32> -> vector<8x512xf32>
      %18 = arith.addf %15, %17 : vector<8x512xf32>
      %19 = vector.extract_strided_slice %18 {offsets = [0, 0], sizes = [8, 128], strides = [1, 1]} : vector<8x512xf32> to vector<8x128xf32>
      %20 = arith.negf %19 : vector<8x128xf32>
      %21 = math.exp %20 : vector<8x128xf32>
      %cst_14 = arith.constant 1.000000e+00 : f32
      %22 = vector.broadcast %cst_14 : f32 to vector<8x128xf32>
      %23 = arith.addf %22, %21 : vector<8x128xf32>
      %24 = arith.divf %22, %23 : vector<8x128xf32>
      %25 = vector.extract_strided_slice %18 {offsets = [0, 128], sizes = [8, 128], strides = [1, 1]} : vector<8x512xf32> to vector<8x128xf32>
      %26 = arith.negf %25 : vector<8x128xf32>
      %27 = math.exp %26 : vector<8x128xf32>
      %cst_15 = arith.constant 1.000000e+00 : f32
      %28 = vector.broadcast %cst_15 : f32 to vector<8x128xf32>
      %29 = arith.addf %28, %27 : vector<8x128xf32>
      %30 = arith.divf %28, %29 : vector<8x128xf32>
      %31 = vector.extract_strided_slice %18 {offsets = [0, 256], sizes = [8, 128], strides = [1, 1]} : vector<8x512xf32> to vector<8x128xf32>
      %32 = math.tanh %31 : vector<8x128xf32>
      %33 = vector.extract_strided_slice %18 {offsets = [0, 384], sizes = [8, 128], strides = [1, 1]} : vector<8x512xf32> to vector<8x128xf32>
      %34 = arith.negf %33 : vector<8x128xf32>
      %35 = math.exp %34 : vector<8x128xf32>
      %cst_16 = arith.constant 1.000000e+00 : f32
      %36 = vector.broadcast %cst_16 : f32 to vector<8x128xf32>
      %37 = arith.addf %36, %35 : vector<8x128xf32>
      %38 = arith.divf %36, %37 : vector<8x128xf32>
      %39 = arith.mulf %30, %14 : vector<8x128xf32>
      %40 = arith.mulf %24, %32 : vector<8x128xf32>
      %41 = arith.addf %39, %40 : vector<8x128xf32>
      %42 = math.tanh %41 : vector<8x128xf32>
      %43 = arith.mulf %38, %42 : vector<8x128xf32>
      %c8 = arith.constant 8 : index
      %c0_17 = arith.constant 0 : index
      %44 = vector.load %arg8[%c8, %c0_17] : memref<96x512xf32, #tpu.memory_space<vmem>>, vector<8x512xf32>
      %c0_18 = arith.constant 0 : index
      %c0_19 = arith.constant 0 : index
      %45 = vector.load %arg3[%c0_18, %c0_19] : memref<128x512xf32, #tpu.memory_space<vmem>>, vector<128x512xf32>
      %cst_20 = arith.constant dense<0.000000e+00> : vector<8x512xf32>
      %46 = tpu.matmul %43, %45, %cst_20 {dimension_numbers = #tpu.dot_dimension_numbers<[1], [0], [0], [1], [0, 0, 1, 1], [], []>} : vector<8x128xf32>, vector<128x512xf32>, vector<8x512xf32> -> vector<8x512xf32>
      %47 = arith.addf %44, %46 : vector<8x512xf32>
      %48 = vector.extract_strided_slice %47 {offsets = [0, 0], sizes = [8, 128], strides = [1, 1]} : vector<8x512xf32> to vector<8x128xf32>
      %49 = arith.negf %48 : vector<8x128xf32>
      %50 = math.exp %49 : vector<8x128xf32>
      %cst_21 = arith.constant 1.000000e+00 : f32
      %51 = vector.broadcast %cst_21 : f32 to vector<8x128xf32>
      %52 = arith.addf %51, %50 : vector<8x128xf32>
      %53 = arith.divf %51, %52 : vector<8x128xf32>
      %54 = vector.extract_strided_slice %47 {offsets = [0, 128], sizes = [8, 128], strides = [1, 1]} : vector<8x512xf32> to vector<8x128xf32>
      %55 = arith.negf %54 : vector<8x128xf32>
      %56 = math.exp %55 : vector<8x128xf32>
      %cst_22 = arith.constant 1.000000e+00 : f32
      %57 = vector.broadcast %cst_22 : f32 to vector<8x128xf32>
      %58 = arith.addf %57, %56 : vector<8x128xf32>
      %59 = arith.divf %57, %58 : vector<8x128xf32>
      %60 = vector.extract_strided_slice %47 {offsets = [0, 256], sizes = [8, 128], strides = [1, 1]} : vector<8x512xf32> to vector<8x128xf32>
      %61 = math.tanh %60 : vector<8x128xf32>
      %62 = vector.extract_strided_slice %47 {offsets = [0, 384], sizes = [8, 128], strides = [1, 1]} : vector<8x512xf32> to vector<8x128xf32>
      %63 = arith.negf %62 : vector<8x128xf32>
      %64 = math.exp %63 : vector<8x128xf32>
      %cst_23 = arith.constant 1.000000e+00 : f32
      %65 = vector.broadcast %cst_23 : f32 to vector<8x128xf32>
      %66 = arith.addf %65, %64 : vector<8x128xf32>
      %67 = arith.divf %65, %66 : vector<8x128xf32>
      %68 = arith.mulf %59, %41 : vector<8x128xf32>
      %69 = arith.mulf %53, %61 : vector<8x128xf32>
      %70 = arith.addf %68, %69 : vector<8x128xf32>
      %71 = math.tanh %70 : vector<8x128xf32>
      %72 = arith.mulf %67, %71 : vector<8x128xf32>
      %c16 = arith.constant 16 : index
      %c0_24 = arith.constant 0 : index
      %73 = vector.load %arg8[%c16, %c0_24] : memref<96x512xf32, #tpu.memory_space<vmem>>, vector<8x512xf32>
      %c0_25 = arith.constant 0 : index
      %c0_26 = arith.constant 0 : index
      %74 = vector.load %arg3[%c0_25, %c0_26] : memref<128x512xf32, #tpu.memory_space<vmem>>, vector<128x512xf32>
      %cst_27 = arith.constant dense<0.000000e+00> : vector<8x512xf32>
      %75 = tpu.matmul %72, %74, %cst_27 {dimension_numbers = #tpu.dot_dimension_numbers<[1], [0], [0], [1], [0, 0, 1, 1], [], []>} : vector<8x128xf32>, vector<128x512xf32>, vector<8x512xf32> -> vector<8x512xf32>
      %76 = arith.addf %73, %75 : vector<8x512xf32>
      %77 = vector.extract_strided_slice %76 {offsets = [0, 0], sizes = [8, 128], strides = [1, 1]} : vector<8x512xf32> to vector<8x128xf32>
      %78 = arith.negf %77 : vector<8x128xf32>
      %79 = math.exp %78 : vector<8x128xf32>
      %cst_28 = arith.constant 1.000000e+00 : f32
      %80 = vector.broadcast %cst_28 : f32 to vector<8x128xf32>
      %81 = arith.addf %80, %79 : vector<8x128xf32>
      %82 = arith.divf %80, %81 : vector<8x128xf32>
      %83 = vector.extract_strided_slice %76 {offsets = [0, 128], sizes = [8, 128], strides = [1, 1]} : vector<8x512xf32> to vector<8x128xf32>
      %84 = arith.negf %83 : vector<8x128xf32>
      %85 = math.exp %84 : vector<8x128xf32>
      %cst_29 = arith.constant 1.000000e+00 : f32
      %86 = vector.broadcast %cst_29 : f32 to vector<8x128xf32>
      %87 = arith.addf %86, %85 : vector<8x128xf32>
      %88 = arith.divf %86, %87 : vector<8x128xf32>
      %89 = vector.extract_strided_slice %76 {offsets = [0, 256], sizes = [8, 128], strides = [1, 1]} : vector<8x512xf32> to vector<8x128xf32>
      %90 = math.tanh %89 : vector<8x128xf32>
      %91 = vector.extract_strided_slice %76 {offsets = [0, 384], sizes = [8, 128], strides = [1, 1]} : vector<8x512xf32> to vector<8x128xf32>
      %92 = arith.negf %91 : vector<8x128xf32>
      %93 = math.exp %92 : vector<8x128xf32>
      %cst_30 = arith.constant 1.000000e+00 : f32
      %94 = vector.broadcast %cst_30 : f32 to vector<8x128xf32>
      %95 = arith.addf %94, %93 : vector<8x128xf32>
      %96 = arith.divf %94, %95 : vector<8x128xf32>
      %97 = arith.mulf %88, %70 : vector<8x128xf32>
      %98 = arith.mulf %82, %90 : vector<8x128xf32>
      %99 = arith.addf %97, %98 : vector<8x128xf32>
      %100 = math.tanh %99 : vector<8x128xf32>
      %101 = arith.mulf %96, %100 : vector<8x128xf32>
      %c24 = arith.constant 24 : index
      %c0_31 = arith.constant 0 : index
      %102 = vector.load %arg8[%c24, %c0_31] : memref<96x512xf32, #tpu.memory_space<vmem>>, vector<8x512xf32>
      %c0_32 = arith.constant 0 : index
      %c0_33 = arith.constant 0 : index
      %103 = vector.load %arg3[%c0_32, %c0_33] : memref<128x512xf32, #tpu.memory_space<vmem>>, vector<128x512xf32>
      %cst_34 = arith.constant dense<0.000000e+00> : vector<8x512xf32>
      %104 = tpu.matmul %101, %103, %cst_34 {dimension_numbers = #tpu.dot_dimension_numbers<[1], [0], [0], [1], [0, 0, 1, 1], [], []>} : vector<8x128xf32>, vector<128x512xf32>, vector<8x512xf32> -> vector<8x512xf32>
      %105 = arith.addf %102, %104 : vector<8x512xf32>
      %106 = vector.extract_strided_slice %105 {offsets = [0, 0], sizes = [8, 128], strides = [1, 1]} : vector<8x512xf32> to vector<8x128xf32>
      %107 = arith.negf %106 : vector<8x128xf32>
      %108 = math.exp %107 : vector<8x128xf32>
      %cst_35 = arith.constant 1.000000e+00 : f32
      %109 = vector.broadcast %cst_35 : f32 to vector<8x128xf32>
      %110 = arith.addf %109, %108 : vector<8x128xf32>
      %111 = arith.divf %109, %110 : vector<8x128xf32>
      %112 = vector.extract_strided_slice %105 {offsets = [0, 128], sizes = [8, 128], strides = [1, 1]} : vector<8x512xf32> to vector<8x128xf32>
      %113 = arith.negf %112 : vector<8x128xf32>
      %114 = math.exp %113 : vector<8x128xf32>
      %cst_36 = arith.constant 1.000000e+00 : f32
      %115 = vector.broadcast %cst_36 : f32 to vector<8x128xf32>
      %116 = arith.addf %115, %114 : vector<8x128xf32>
      %117 = arith.divf %115, %116 : vector<8x128xf32>
      %118 = vector.extract_strided_slice %105 {offsets = [0, 256], sizes = [8, 128], strides = [1, 1]} : vector<8x512xf32> to vector<8x128xf32>
      %119 = math.tanh %118 : vector<8x128xf32>
      %120 = vector.extract_strided_slice %105 {offsets = [0, 384], sizes = [8, 128], strides = [1, 1]} : vector<8x512xf32> to vector<8x128xf32>
      %121 = arith.negf %120 : vector<8x128xf32>
      %122 = math.exp %121 : vector<8x128xf32>
      %cst_37 = arith.constant 1.000000e+00 : f32
      %123 = vector.broadcast %cst_37 : f32 to vector<8x128xf32>
      %124 = arith.addf %123, %122 : vector<8x128xf32>
      %125 = arith.divf %123, %124 : vector<8x128xf32>
      %126 = arith.mulf %117, %99 : vector<8x128xf32>
      %127 = arith.mulf %111, %119 : vector<8x128xf32>
      %128 = arith.addf %126, %127 : vector<8x128xf32>
      %129 = math.tanh %128 : vector<8x128xf32>
      %130 = arith.mulf %125, %129 : vector<8x128xf32>
      %c32 = arith.constant 32 : index
      %c0_38 = arith.constant 0 : index
      %131 = vector.load %arg8[%c32, %c0_38] : memref<96x512xf32, #tpu.memory_space<vmem>>, vector<8x512xf32>
      %c0_39 = arith.constant 0 : index
      %c0_40 = arith.constant 0 : index
      %132 = vector.load %arg3[%c0_39, %c0_40] : memref<128x512xf32, #tpu.memory_space<vmem>>, vector<128x512xf32>
      %cst_41 = arith.constant dense<0.000000e+00> : vector<8x512xf32>
      %133 = tpu.matmul %130, %132, %cst_41 {dimension_numbers = #tpu.dot_dimension_numbers<[1], [0], [0], [1], [0, 0, 1, 1], [], []>} : vector<8x128xf32>, vector<128x512xf32>, vector<8x512xf32> -> vector<8x512xf32>
      %134 = arith.addf %131, %133 : vector<8x512xf32>
      %135 = vector.extract_strided_slice %134 {offsets = [0, 0], sizes = [8, 128], strides = [1, 1]} : vector<8x512xf32> to vector<8x128xf32>
      %136 = arith.negf %135 : vector<8x128xf32>
      %137 = math.exp %136 : vector<8x128xf32>
      %cst_42 = arith.constant 1.000000e+00 : f32
      %138 = vector.broadcast %cst_42 : f32 to vector<8x128xf32>
      %139 = arith.addf %138, %137 : vector<8x128xf32>
      %140 = arith.divf %138, %139 : vector<8x128xf32>
      %141 = vector.extract_strided_slice %134 {offsets = [0, 128], sizes = [8, 128], strides = [1, 1]} : vector<8x512xf32> to vector<8x128xf32>
      %142 = arith.negf %141 : vector<8x128xf32>
      %143 = math.exp %142 : vector<8x128xf32>
      %cst_43 = arith.constant 1.000000e+00 : f32
      %144 = vector.broadcast %cst_43 : f32 to vector<8x128xf32>
      %145 = arith.addf %144, %143 : vector<8x128xf32>
      %146 = arith.divf %144, %145 : vector<8x128xf32>
      %147 = vector.extract_strided_slice %134 {offsets = [0, 256], sizes = [8, 128], strides = [1, 1]} : vector<8x512xf32> to vector<8x128xf32>
      %148 = math.tanh %147 : vector<8x128xf32>
      %149 = vector.extract_strided_slice %134 {offsets = [0, 384], sizes = [8, 128], strides = [1, 1]} : vector<8x512xf32> to vector<8x128xf32>
      %150 = arith.negf %149 : vector<8x128xf32>
      %151 = math.exp %150 : vector<8x128xf32>
      %cst_44 = arith.constant 1.000000e+00 : f32
      %152 = vector.broadcast %cst_44 : f32 to vector<8x128xf32>
      %153 = arith.addf %152, %151 : vector<8x128xf32>
      %154 = arith.divf %152, %153 : vector<8x128xf32>
      %155 = arith.mulf %146, %128 : vector<8x128xf32>
      %156 = arith.mulf %140, %148 : vector<8x128xf32>
      %157 = arith.addf %155, %156 : vector<8x128xf32>
      %158 = math.tanh %157 : vector<8x128xf32>
      %159 = arith.mulf %154, %158 : vector<8x128xf32>
      %c40 = arith.constant 40 : index
      %c0_45 = arith.constant 0 : index
      %160 = vector.load %arg8[%c40, %c0_45] : memref<96x512xf32, #tpu.memory_space<vmem>>, vector<8x512xf32>
      %c0_46 = arith.constant 0 : index
      %c0_47 = arith.constant 0 : index
      %161 = vector.load %arg3[%c0_46, %c0_47] : memref<128x512xf32, #tpu.memory_space<vmem>>, vector<128x512xf32>
      %cst_48 = arith.constant dense<0.000000e+00> : vector<8x512xf32>
      %162 = tpu.matmul %159, %161, %cst_48 {dimension_numbers = #tpu.dot_dimension_numbers<[1], [0], [0], [1], [0, 0, 1, 1], [], []>} : vector<8x128xf32>, vector<128x512xf32>, vector<8x512xf32> -> vector<8x512xf32>
      %163 = arith.addf %160, %162 : vector<8x512xf32>
      %164 = vector.extract_strided_slice %163 {offsets = [0, 0], sizes = [8, 128], strides = [1, 1]} : vector<8x512xf32> to vector<8x128xf32>
      %165 = arith.negf %164 : vector<8x128xf32>
      %166 = math.exp %165 : vector<8x128xf32>
      %cst_49 = arith.constant 1.000000e+00 : f32
      %167 = vector.broadcast %cst_49 : f32 to vector<8x128xf32>
      %168 = arith.addf %167, %166 : vector<8x128xf32>
      %169 = arith.divf %167, %168 : vector<8x128xf32>
      %170 = vector.extract_strided_slice %163 {offsets = [0, 128], sizes = [8, 128], strides = [1, 1]} : vector<8x512xf32> to vector<8x128xf32>
      %171 = arith.negf %170 : vector<8x128xf32>
      %172 = math.exp %171 : vector<8x128xf32>
      %cst_50 = arith.constant 1.000000e+00 : f32
      %173 = vector.broadcast %cst_50 : f32 to vector<8x128xf32>
      %174 = arith.addf %173, %172 : vector<8x128xf32>
      %175 = arith.divf %173, %174 : vector<8x128xf32>
      %176 = vector.extract_strided_slice %163 {offsets = [0, 256], sizes = [8, 128], strides = [1, 1]} : vector<8x512xf32> to vector<8x128xf32>
      %177 = math.tanh %176 : vector<8x128xf32>
      %178 = vector.extract_strided_slice %163 {offsets = [0, 384], sizes = [8, 128], strides = [1, 1]} : vector<8x512xf32> to vector<8x128xf32>
      %179 = arith.negf %178 : vector<8x128xf32>
      %180 = math.exp %179 : vector<8x128xf32>
      %cst_51 = arith.constant 1.000000e+00 : f32
      %181 = vector.broadcast %cst_51 : f32 to vector<8x128xf32>
      %182 = arith.addf %181, %180 : vector<8x128xf32>
      %183 = arith.divf %181, %182 : vector<8x128xf32>
      %184 = arith.mulf %175, %157 : vector<8x128xf32>
      %185 = arith.mulf %169, %177 : vector<8x128xf32>
      %186 = arith.addf %184, %185 : vector<8x128xf32>
      %187 = math.tanh %186 : vector<8x128xf32>
      %188 = arith.mulf %183, %187 : vector<8x128xf32>
      %c48 = arith.constant 48 : index
      %c0_52 = arith.constant 0 : index
      %189 = vector.load %arg8[%c48, %c0_52] : memref<96x512xf32, #tpu.memory_space<vmem>>, vector<8x512xf32>
      %c0_53 = arith.constant 0 : index
      %c0_54 = arith.constant 0 : index
      %190 = vector.load %arg3[%c0_53, %c0_54] : memref<128x512xf32, #tpu.memory_space<vmem>>, vector<128x512xf32>
      %cst_55 = arith.constant dense<0.000000e+00> : vector<8x512xf32>
      %191 = tpu.matmul %188, %190, %cst_55 {dimension_numbers = #tpu.dot_dimension_numbers<[1], [0], [0], [1], [0, 0, 1, 1], [], []>} : vector<8x128xf32>, vector<128x512xf32>, vector<8x512xf32> -> vector<8x512xf32>
      %192 = arith.addf %189, %191 : vector<8x512xf32>
      %193 = vector.extract_strided_slice %192 {offsets = [0, 0], sizes = [8, 128], strides = [1, 1]} : vector<8x512xf32> to vector<8x128xf32>
      %194 = arith.negf %193 : vector<8x128xf32>
      %195 = math.exp %194 : vector<8x128xf32>
      %cst_56 = arith.constant 1.000000e+00 : f32
      %196 = vector.broadcast %cst_56 : f32 to vector<8x128xf32>
      %197 = arith.addf %196, %195 : vector<8x128xf32>
      %198 = arith.divf %196, %197 : vector<8x128xf32>
      %199 = vector.extract_strided_slice %192 {offsets = [0, 128], sizes = [8, 128], strides = [1, 1]} : vector<8x512xf32> to vector<8x128xf32>
      %200 = arith.negf %199 : vector<8x128xf32>
      %201 = math.exp %200 : vector<8x128xf32>
      %cst_57 = arith.constant 1.000000e+00 : f32
      %202 = vector.broadcast %cst_57 : f32 to vector<8x128xf32>
      %203 = arith.addf %202, %201 : vector<8x128xf32>
      %204 = arith.divf %202, %203 : vector<8x128xf32>
      %205 = vector.extract_strided_slice %192 {offsets = [0, 256], sizes = [8, 128], strides = [1, 1]} : vector<8x512xf32> to vector<8x128xf32>
      %206 = math.tanh %205 : vector<8x128xf32>
      %207 = vector.extract_strided_slice %192 {offsets = [0, 384], sizes = [8, 128], strides = [1, 1]} : vector<8x512xf32> to vector<8x128xf32>
      %208 = arith.negf %207 : vector<8x128xf32>
      %209 = math.exp %208 : vector<8x128xf32>
      %cst_58 = arith.constant 1.000000e+00 : f32
      %210 = vector.broadcast %cst_58 : f32 to vector<8x128xf32>
      %211 = arith.addf %210, %209 : vector<8x128xf32>
      %212 = arith.divf %210, %211 : vector<8x128xf32>
      %213 = arith.mulf %204, %186 : vector<8x128xf32>
      %214 = arith.mulf %198, %206 : vector<8x128xf32>
      %215 = arith.addf %213, %214 : vector<8x128xf32>
      %216 = math.tanh %215 : vector<8x128xf32>
      %217 = arith.mulf %212, %216 : vector<8x128xf32>
      %c56 = arith.constant 56 : index
      %c0_59 = arith.constant 0 : index
      %218 = vector.load %arg8[%c56, %c0_59] : memref<96x512xf32, #tpu.memory_space<vmem>>, vector<8x512xf32>
      %c0_60 = arith.constant 0 : index
      %c0_61 = arith.constant 0 : index
      %219 = vector.load %arg3[%c0_60, %c0_61] : memref<128x512xf32, #tpu.memory_space<vmem>>, vector<128x512xf32>
      %cst_62 = arith.constant dense<0.000000e+00> : vector<8x512xf32>
      %220 = tpu.matmul %217, %219, %cst_62 {dimension_numbers = #tpu.dot_dimension_numbers<[1], [0], [0], [1], [0, 0, 1, 1], [], []>} : vector<8x128xf32>, vector<128x512xf32>, vector<8x512xf32> -> vector<8x512xf32>
      %221 = arith.addf %218, %220 : vector<8x512xf32>
      %222 = vector.extract_strided_slice %221 {offsets = [0, 0], sizes = [8, 128], strides = [1, 1]} : vector<8x512xf32> to vector<8x128xf32>
      %223 = arith.negf %222 : vector<8x128xf32>
      %224 = math.exp %223 : vector<8x128xf32>
      %cst_63 = arith.constant 1.000000e+00 : f32
      %225 = vector.broadcast %cst_63 : f32 to vector<8x128xf32>
      %226 = arith.addf %225, %224 : vector<8x128xf32>
      %227 = arith.divf %225, %226 : vector<8x128xf32>
      %228 = vector.extract_strided_slice %221 {offsets = [0, 128], sizes = [8, 128], strides = [1, 1]} : vector<8x512xf32> to vector<8x128xf32>
      %229 = arith.negf %228 : vector<8x128xf32>
      %230 = math.exp %229 : vector<8x128xf32>
      %cst_64 = arith.constant 1.000000e+00 : f32
      %231 = vector.broadcast %cst_64 : f32 to vector<8x128xf32>
      %232 = arith.addf %231, %230 : vector<8x128xf32>
      %233 = arith.divf %231, %232 : vector<8x128xf32>
      %234 = vector.extract_strided_slice %221 {offsets = [0, 256], sizes = [8, 128], strides = [1, 1]} : vector<8x512xf32> to vector<8x128xf32>
      %235 = math.tanh %234 : vector<8x128xf32>
      %236 = vector.extract_strided_slice %221 {offsets = [0, 384], sizes = [8, 128], strides = [1, 1]} : vector<8x512xf32> to vector<8x128xf32>
      %237 = arith.negf %236 : vector<8x128xf32>
      %238 = math.exp %237 : vector<8x128xf32>
      %cst_65 = arith.constant 1.000000e+00 : f32
      %239 = vector.broadcast %cst_65 : f32 to vector<8x128xf32>
      %240 = arith.addf %239, %238 : vector<8x128xf32>
      %241 = arith.divf %239, %240 : vector<8x128xf32>
      %242 = arith.mulf %233, %215 : vector<8x128xf32>
      %243 = arith.mulf %227, %235 : vector<8x128xf32>
      %244 = arith.addf %242, %243 : vector<8x128xf32>
      %245 = math.tanh %244 : vector<8x128xf32>
      %246 = arith.mulf %241, %245 : vector<8x128xf32>
      %c64 = arith.constant 64 : index
      %c0_66 = arith.constant 0 : index
      %247 = vector.load %arg8[%c64, %c0_66] : memref<96x512xf32, #tpu.memory_space<vmem>>, vector<8x512xf32>
      %c0_67 = arith.constant 0 : index
      %c0_68 = arith.constant 0 : index
      %248 = vector.load %arg3[%c0_67, %c0_68] : memref<128x512xf32, #tpu.memory_space<vmem>>, vector<128x512xf32>
      %cst_69 = arith.constant dense<0.000000e+00> : vector<8x512xf32>
      %249 = tpu.matmul %246, %248, %cst_69 {dimension_numbers = #tpu.dot_dimension_numbers<[1], [0], [0], [1], [0, 0, 1, 1], [], []>} : vector<8x128xf32>, vector<128x512xf32>, vector<8x512xf32> -> vector<8x512xf32>
      %250 = arith.addf %247, %249 : vector<8x512xf32>
      %251 = vector.extract_strided_slice %250 {offsets = [0, 0], sizes = [8, 128], strides = [1, 1]} : vector<8x512xf32> to vector<8x128xf32>
      %252 = arith.negf %251 : vector<8x128xf32>
      %253 = math.exp %252 : vector<8x128xf32>
      %cst_70 = arith.constant 1.000000e+00 : f32
      %254 = vector.broadcast %cst_70 : f32 to vector<8x128xf32>
      %255 = arith.addf %254, %253 : vector<8x128xf32>
      %256 = arith.divf %254, %255 : vector<8x128xf32>
      %257 = vector.extract_strided_slice %250 {offsets = [0, 128], sizes = [8, 128], strides = [1, 1]} : vector<8x512xf32> to vector<8x128xf32>
      %258 = arith.negf %257 : vector<8x128xf32>
      %259 = math.exp %258 : vector<8x128xf32>
      %cst_71 = arith.constant 1.000000e+00 : f32
      %260 = vector.broadcast %cst_71 : f32 to vector<8x128xf32>
      %261 = arith.addf %260, %259 : vector<8x128xf32>
      %262 = arith.divf %260, %261 : vector<8x128xf32>
      %263 = vector.extract_strided_slice %250 {offsets = [0, 256], sizes = [8, 128], strides = [1, 1]} : vector<8x512xf32> to vector<8x128xf32>
      %264 = math.tanh %263 : vector<8x128xf32>
      %265 = vector.extract_strided_slice %250 {offsets = [0, 384], sizes = [8, 128], strides = [1, 1]} : vector<8x512xf32> to vector<8x128xf32>
      %266 = arith.negf %265 : vector<8x128xf32>
      %267 = math.exp %266 : vector<8x128xf32>
      %cst_72 = arith.constant 1.000000e+00 : f32
      %268 = vector.broadcast %cst_72 : f32 to vector<8x128xf32>
      %269 = arith.addf %268, %267 : vector<8x128xf32>
      %270 = arith.divf %268, %269 : vector<8x128xf32>
      %271 = arith.mulf %262, %244 : vector<8x128xf32>
      %272 = arith.mulf %256, %264 : vector<8x128xf32>
      %273 = arith.addf %271, %272 : vector<8x128xf32>
      %274 = math.tanh %273 : vector<8x128xf32>
      %275 = arith.mulf %270, %274 : vector<8x128xf32>
      %c72 = arith.constant 72 : index
      %c0_73 = arith.constant 0 : index
      %276 = vector.load %arg8[%c72, %c0_73] : memref<96x512xf32, #tpu.memory_space<vmem>>, vector<8x512xf32>
      %c0_74 = arith.constant 0 : index
      %c0_75 = arith.constant 0 : index
      %277 = vector.load %arg3[%c0_74, %c0_75] : memref<128x512xf32, #tpu.memory_space<vmem>>, vector<128x512xf32>
      %cst_76 = arith.constant dense<0.000000e+00> : vector<8x512xf32>
      %278 = tpu.matmul %275, %277, %cst_76 {dimension_numbers = #tpu.dot_dimension_numbers<[1], [0], [0], [1], [0, 0, 1, 1], [], []>} : vector<8x128xf32>, vector<128x512xf32>, vector<8x512xf32> -> vector<8x512xf32>
      %279 = arith.addf %276, %278 : vector<8x512xf32>
      %280 = vector.extract_strided_slice %279 {offsets = [0, 0], sizes = [8, 128], strides = [1, 1]} : vector<8x512xf32> to vector<8x128xf32>
      %281 = arith.negf %280 : vector<8x128xf32>
      %282 = math.exp %281 : vector<8x128xf32>
      %cst_77 = arith.constant 1.000000e+00 : f32
      %283 = vector.broadcast %cst_77 : f32 to vector<8x128xf32>
      %284 = arith.addf %283, %282 : vector<8x128xf32>
      %285 = arith.divf %283, %284 : vector<8x128xf32>
      %286 = vector.extract_strided_slice %279 {offsets = [0, 128], sizes = [8, 128], strides = [1, 1]} : vector<8x512xf32> to vector<8x128xf32>
      %287 = arith.negf %286 : vector<8x128xf32>
      %288 = math.exp %287 : vector<8x128xf32>
      %cst_78 = arith.constant 1.000000e+00 : f32
      %289 = vector.broadcast %cst_78 : f32 to vector<8x128xf32>
      %290 = arith.addf %289, %288 : vector<8x128xf32>
      %291 = arith.divf %289, %290 : vector<8x128xf32>
      %292 = vector.extract_strided_slice %279 {offsets = [0, 256], sizes = [8, 128], strides = [1, 1]} : vector<8x512xf32> to vector<8x128xf32>
      %293 = math.tanh %292 : vector<8x128xf32>
      %294 = vector.extract_strided_slice %279 {offsets = [0, 384], sizes = [8, 128], strides = [1, 1]} : vector<8x512xf32> to vector<8x128xf32>
      %295 = arith.negf %294 : vector<8x128xf32>
      %296 = math.exp %295 : vector<8x128xf32>
      %cst_79 = arith.constant 1.000000e+00 : f32
      %297 = vector.broadcast %cst_79 : f32 to vector<8x128xf32>
      %298 = arith.addf %297, %296 : vector<8x128xf32>
      %299 = arith.divf %297, %298 : vector<8x128xf32>
      %300 = arith.mulf %291, %273 : vector<8x128xf32>
      %301 = arith.mulf %285, %293 : vector<8x128xf32>
      %302 = arith.addf %300, %301 : vector<8x128xf32>
      %303 = math.tanh %302 : vector<8x128xf32>
      %304 = arith.mulf %299, %303 : vector<8x128xf32>
      %c80 = arith.constant 80 : index
      %c0_80 = arith.constant 0 : index
      %305 = vector.load %arg8[%c80, %c0_80] : memref<96x512xf32, #tpu.memory_space<vmem>>, vector<8x512xf32>
      %c0_81 = arith.constant 0 : index
      %c0_82 = arith.constant 0 : index
      %306 = vector.load %arg3[%c0_81, %c0_82] : memref<128x512xf32, #tpu.memory_space<vmem>>, vector<128x512xf32>
      %cst_83 = arith.constant dense<0.000000e+00> : vector<8x512xf32>
      %307 = tpu.matmul %304, %306, %cst_83 {dimension_numbers = #tpu.dot_dimension_numbers<[1], [0], [0], [1], [0, 0, 1, 1], [], []>} : vector<8x128xf32>, vector<128x512xf32>, vector<8x512xf32> -> vector<8x512xf32>
      %308 = arith.addf %305, %307 : vector<8x512xf32>
      %309 = vector.extract_strided_slice %308 {offsets = [0, 0], sizes = [8, 128], strides = [1, 1]} : vector<8x512xf32> to vector<8x128xf32>
      %310 = arith.negf %309 : vector<8x128xf32>
      %311 = math.exp %310 : vector<8x128xf32>
      %cst_84 = arith.constant 1.000000e+00 : f32
      %312 = vector.broadcast %cst_84 : f32 to vector<8x128xf32>
      %313 = arith.addf %312, %311 : vector<8x128xf32>
      %314 = arith.divf %312, %313 : vector<8x128xf32>
      %315 = vector.extract_strided_slice %308 {offsets = [0, 128], sizes = [8, 128], strides = [1, 1]} : vector<8x512xf32> to vector<8x128xf32>
      %316 = arith.negf %315 : vector<8x128xf32>
      %317 = math.exp %316 : vector<8x128xf32>
      %cst_85 = arith.constant 1.000000e+00 : f32
      %318 = vector.broadcast %cst_85 : f32 to vector<8x128xf32>
      %319 = arith.addf %318, %317 : vector<8x128xf32>
      %320 = arith.divf %318, %319 : vector<8x128xf32>
      %321 = vector.extract_strided_slice %308 {offsets = [0, 256], sizes = [8, 128], strides = [1, 1]} : vector<8x512xf32> to vector<8x128xf32>
      %322 = math.tanh %321 : vector<8x128xf32>
      %323 = vector.extract_strided_slice %308 {offsets = [0, 384], sizes = [8, 128], strides = [1, 1]} : vector<8x512xf32> to vector<8x128xf32>
      %324 = arith.negf %323 : vector<8x128xf32>
      %325 = math.exp %324 : vector<8x128xf32>
      %cst_86 = arith.constant 1.000000e+00 : f32
      %326 = vector.broadcast %cst_86 : f32 to vector<8x128xf32>
      %327 = arith.addf %326, %325 : vector<8x128xf32>
      %328 = arith.divf %326, %327 : vector<8x128xf32>
      %329 = arith.mulf %320, %302 : vector<8x128xf32>
      %330 = arith.mulf %314, %322 : vector<8x128xf32>
      %331 = arith.addf %329, %330 : vector<8x128xf32>
      %332 = math.tanh %331 : vector<8x128xf32>
      %333 = arith.mulf %328, %332 : vector<8x128xf32>
      %c88 = arith.constant 88 : index
      %c0_87 = arith.constant 0 : index
      %334 = vector.load %arg8[%c88, %c0_87] : memref<96x512xf32, #tpu.memory_space<vmem>>, vector<8x512xf32>
      %c0_88 = arith.constant 0 : index
      %c0_89 = arith.constant 0 : index
      %335 = vector.load %arg3[%c0_88, %c0_89] : memref<128x512xf32, #tpu.memory_space<vmem>>, vector<128x512xf32>
      %cst_90 = arith.constant dense<0.000000e+00> : vector<8x512xf32>
      %336 = tpu.matmul %333, %335, %cst_90 {dimension_numbers = #tpu.dot_dimension_numbers<[1], [0], [0], [1], [0, 0, 1, 1], [], []>} : vector<8x128xf32>, vector<128x512xf32>, vector<8x512xf32> -> vector<8x512xf32>
      %337 = arith.addf %334, %336 : vector<8x512xf32>
      %338 = vector.extract_strided_slice %337 {offsets = [0, 0], sizes = [8, 128], strides = [1, 1]} : vector<8x512xf32> to vector<8x128xf32>
      %339 = arith.negf %338 : vector<8x128xf32>
      %340 = math.exp %339 : vector<8x128xf32>
      %cst_91 = arith.constant 1.000000e+00 : f32
      %341 = vector.broadcast %cst_91 : f32 to vector<8x128xf32>
      %342 = arith.addf %341, %340 : vector<8x128xf32>
      %343 = arith.divf %341, %342 : vector<8x128xf32>
      %344 = vector.extract_strided_slice %337 {offsets = [0, 128], sizes = [8, 128], strides = [1, 1]} : vector<8x512xf32> to vector<8x128xf32>
      %345 = arith.negf %344 : vector<8x128xf32>
      %346 = math.exp %345 : vector<8x128xf32>
      %cst_92 = arith.constant 1.000000e+00 : f32
      %347 = vector.broadcast %cst_92 : f32 to vector<8x128xf32>
      %348 = arith.addf %347, %346 : vector<8x128xf32>
      %349 = arith.divf %347, %348 : vector<8x128xf32>
      %350 = vector.extract_strided_slice %337 {offsets = [0, 256], sizes = [8, 128], strides = [1, 1]} : vector<8x512xf32> to vector<8x128xf32>
      %351 = math.tanh %350 : vector<8x128xf32>
      %352 = vector.extract_strided_slice %337 {offsets = [0, 384], sizes = [8, 128], strides = [1, 1]} : vector<8x512xf32> to vector<8x128xf32>
      %353 = arith.negf %352 : vector<8x128xf32>
      %354 = math.exp %353 : vector<8x128xf32>
      %cst_93 = arith.constant 1.000000e+00 : f32
      %355 = vector.broadcast %cst_93 : f32 to vector<8x128xf32>
      %356 = arith.addf %355, %354 : vector<8x128xf32>
      %357 = arith.divf %355, %356 : vector<8x128xf32>
      %358 = arith.mulf %349, %331 : vector<8x128xf32>
      %359 = arith.mulf %343, %351 : vector<8x128xf32>
      %360 = arith.addf %358, %359 : vector<8x128xf32>
      %361 = math.tanh %360 : vector<8x128xf32>
      %362 = arith.mulf %357, %361 : vector<8x128xf32>
      %c0_94 = arith.constant 0 : index
      %c0_95 = arith.constant 0 : index
      %363 = vector.load %arg5[%c0_94, %c0_95] : memref<128x4xf32, #tpu.memory_space<vmem>>, vector<128x4xf32>
      %cst_96 = arith.constant dense<0.000000e+00> : vector<8x4xf32>
      %364 = tpu.matmul %362, %363, %cst_96 {dimension_numbers = #tpu.dot_dimension_numbers<[1], [0], [0], [1], [0, 0, 1, 1], [], []>} : vector<8x128xf32>, vector<128x4xf32>, vector<8x4xf32> -> vector<8x4xf32>
      %c0_97 = arith.constant 0 : index
      %c0_98 = arith.constant 0 : index
      %365 = vector.load %arg6[%c0_97, %c0_98] : memref<1x4xf32, #tpu.memory_space<vmem>>, vector<1x4xf32>
      %366 = vector.broadcast %365 : vector<1x4xf32> to vector<8x4xf32>
      %367 = arith.addf %364, %366 : vector<8x4xf32>
      %c0_99 = arith.constant 0 : index
      %c0_100 = arith.constant 0 : index
      %368 = vector.load %arg7[%c0_99, %c0_100] : memref<8x4xf32, #tpu.memory_space<vmem>>, vector<8x4xf32>
      tpu.vector_store %arg7[%c0_99, %c0_100], %367 {strides = array<i32>} : memref<8x4xf32, #tpu.memory_space<vmem>>, vector<8x4xf32>,
    } else {
    }
    return
  }
  func.func @transform_0(%arg0: i32) -> (i32, i32) {
    %c0_i32 = arith.constant 0 : i32
    %c0_i32_0 = arith.constant 0 : i32
    return %c0_i32, %arg0 : i32, i32
  }
  func.func @transform_1(%arg0: i32) -> (i32, i32) {
    %c0_i32 = arith.constant 0 : i32
    %c0_i32_0 = arith.constant 0 : i32
    return %arg0, %c0_i32 : i32, i32
  }
  func.func @transform_2(%arg0: i32) -> (i32, i32) {
    %c0_i32 = arith.constant 0 : i32
    %c0_i32_0 = arith.constant 0 : i32
    %c0_i32_1 = arith.constant 0 : i32
    return %c0_i32, %c0_i32_0 : i32, i32
  }
  func.func @transform_3(%arg0: i32) -> (i32, i32) {
    %c0_i32 = arith.constant 0 : i32
    %c0_i32_0 = arith.constant 0 : i32
    %c0_i32_1 = arith.constant 0 : i32
    return %c0_i32, %c0_i32_0 : i32, i32
  }
  func.func @transform_4(%arg0: i32) -> (i32, i32) {
    %c0_i32 = arith.constant 0 : i32
    %c0_i32_0 = arith.constant 0 : i32
    %c0_i32_1 = arith.constant 0 : i32
    return %c0_i32, %c0_i32_0 : i32, i32
  }
  func.func @transform_5(%arg0: i32) -> (i32, i32) {
    %c0_i32 = arith.constant 0 : i32
    %c0_i32_0 = arith.constant 0 : i32
    %c0_i32_1 = arith.constant 0 : i32
    return %c0_i32, %c0_i32_0 : i32, i32
  }
  func.func @transform_6(%arg0: i32) -> (i32, i32) {
    %c0_i32 = arith.constant 0 : i32
    %c0_i32_0 = arith.constant 0 : i32
    %c0_i32_1 = arith.constant 0 : i32
    return %c0_i32, %c0_i32_0 : i32, i32
  }
}

</mosaic_0001>

<llo_original>
// kernel: bert_lstm_capsule_head.1
$region0: #{bert_lstm_capsule_head.1}
  #allocation0 [shape = 'u32[]', space=smem, size = 0x4, offset = 0x4, fixed_abs, tag = 'smem constant byte address 0x4 - core index']
  #allocation1 [shape = 'u32[144,128]{1,0:T(1,128)}', space=vmem, size = 0x12000, scoped, tag = 'internal scratch']
  #allocation2 [shape = 'f32[96,512]{1,0:T(8,128)}', space=vmem, size = 0x30000, scoped, tag = 'scratch operand']
  %s0 = inlined_call_operand.hbm [shape: f32[96,768], index: 0, kind: input, shape index: {}]
  %s1 = inlined_call_operand.hbm [shape: bf16[768,512], index: 1, kind: input, shape index: {}]
  %s2 = inlined_call_operand.hbm [shape: f32[128,512], index: 2, kind: input, shape index: {}]
  %s3 = inlined_call_operand.vmem [shape: f32[1,512], index: 3, kind: input, shape index: {}]
  %s4 = inlined_call_operand.vmem [shape: f32[128,4], index: 4, kind: input, shape index: {}]
  %s5 = inlined_call_operand.vmem [shape: f32[1,4], index: 5, kind: input, shape index: {}]
  %s6 = inlined_call_operand.vmem [shape: f32[8,4], index: 6, kind: output, shape index: {}]
  %s7 = sld [smem:[#allocation0]]
  $region81: #{bert_lstm_capsule_head.1} parent=0
    _
  %s9 = ssub.s32 1, %s7
  %s10 = scalar_select 0, %s9, %s7
  $region1: #{bert_lstm_capsule_head.1} parent=0
    #allocation3 [shape = 'u8[294912]{0}', space=vmem, size = 0x48000, scoped, tag = 'input window, operand 0']
    #allocation4 [shape = 's32[2]{0}', space=sflag, size = 0x8, scoped, tag = 'scoped memory for bert_lstm_capsule_head.1']
    #allocation5 [shape = 'u8[786432]{0}', space=vmem, size = 0xc0000, scoped, tag = 'input window, operand 1']
    #allocation6 [shape = 's32[2]{0}', space=sflag, size = 0x8, scoped, tag = 'scoped memory for bert_lstm_capsule_head.1']
    #allocation7 [shape = 'u8[262144]{0}', space=vmem, size = 0x40000, scoped, tag = 'input window, operand 2, single buffered']
    %11 = vsyncpa [#allocation4], 0
    %s12 = scalar_lea.sflag [#allocation4], 1
    %13 = vsyncpa %s12, 0
    %14 = vsyncpa [#allocation6], 0
    %s15 = scalar_lea.sflag [#allocation6], 1
    %16 = vsyncpa %s15, 0
    loop: start=0, step=1, limit=4
    $region2: #{bert_lstm_capsule_head.1} parent=1 // loop_pre_header
      _
    $region3: #{bert_lstm_capsule_head.1} parent=1 // loop_header
      %s18 = sphi 0, %s22
      %p19 = scmp.ge.s32.totalorder %s18, 4
      %s28 = sphi 0, %s30
      %s31 = sphi 0, %s28
      %s32 = sphi 0, %s31
      %s48 = sphi 0, %s32
      %s54 = sphi 0, %s56
      %s57 = sphi 0, %s54
      %s58 = sphi 0, %s57
      %s74 = sphi 0, %s58
      %s78 = sphi 0, %s78
      %s80 = sphi 0, %s78
      %s81 = sphi 0, %s80
      %s95 = sphi 0, %s81
      %s99 = sphi 0, %s99
      %s101 = sphi 0, %s99
      %s102 = sphi 0, %s101
      %s116 = sphi 0, %s102
      %s120 = sphi 0, %s120
      %s122 = sphi 0, %s120
      %s123 = sphi 0, %s122
      %s137 = sphi 0, %s123
      %s141 = sphi 0, %s141
      %s143 = sphi 0, %s141
      %s144 = sphi 0, %s143
      %s158 = sphi 0, %s144
      %s162 = sphi 0, %s162
      %s164 = sphi 0, %s162
      %s165 = sphi 0, %s164
      %s179 = sphi 0, %s165
    $region4: #{bert_lstm_capsule_head.1} parent=1 // loop_header_branch
      %21 = sbr.rel (%p19) target = $region8
    $region5: #{bert_lstm_capsule_head.1} parent=1 // loop_body
      %s23 = ssub.s32 %s18, 1
      %s24 = ssub.s32 %s18, 2
      %s25 = sadd.s32 %s18, 1
      %s26 = ssub.s32 %s18, %s25
      %p27 = scmp.eq.s32.totalorder %s26, 0
      %s29 = sadd.s32 %s28, 1
      %s30 = scalar_select %p27, %s28, %s29
      %p33 = pneg %p27
      %p34 = scmp.eq.s32.totalorder %s18, 1
      %p35 = por %p33, %p34
      %p36 = scmp.ne.s32.totalorder %s28, %s31
      %p37 = scmp.eq.s32.totalorder %s18, 0
      %p38 = por %p36, %p37
      %p39 = scmp.ne.s32.totalorder %s28, %s31
      %p40 = scmp.eq.s32.totalorder %s23, 1
      %p41 = por %p39, %p40
      %p42 = scmp.ne.s32.totalorder %s31, %s32
      %p43 = scmp.eq.s32.totalorder %s23, 0
      %p44 = por %p42, %p43
      %p45 = scmp.ne.s32.totalorder %s31, %s32
      %p46 = scmp.eq.s32.totalorder %s24, 1
      %p47 = por %p45, %p46
      %p49 = scmp.ne.s32.totalorder %s32, %s48
      %p50 = scmp.eq.s32.totalorder %s24, 0
      %p51 = por %p49, %p50
      %s52 = ssub.s32 %s18, %s25
      %p53 = scmp.eq.s32.totalorder %s52, 0
      %s55 = sadd.s32 %s54, 1
      %s56 = scalar_select %p53, %s54, %s55
      %p59 = pneg %p53
      %p60 = scmp.eq.s32.totalorder %s18, 1
      %p61 = por %p59, %p60
      %p62 = scmp.ne.s32.totalorder %s54, %s57
      %p63 = scmp.eq.s32.totalorder %s18, 0
      %p64 = por %p62, %p63
      %p65 = scmp.ne.s32.totalorder %s54, %s57
      %p66 = scmp.eq.s32.totalorder %s23, 1
      %p67 = por %p65, %p66
      %p68 = scmp.ne.s32.totalorder %s57, %s58
      %p69 = scmp.eq.s32.totalorder %s23, 0
      %p70 = por %p68, %p69
      %p71 = scmp.ne.s32.totalorder %s57, %s58
      %p72 = scmp.eq.s32.totalorder %s24, 1
      %p73 = por %p71, %p72
      %p75 = scmp.ne.s32.totalorder %s58, %s74
      %p76 = scmp.eq.s32.totalorder %s24, 0
      %p77 = por %p75, %p76
      %s79 = sadd.s32 %s78, 1
      %p82 = scmp.eq.s32.totalorder %s18, 1
      %p83 = scmp.ne.s32.totalorder %s78, %s80
      %p84 = scmp.eq.s32.totalorder %s18, 0
      %p85 = por %p83, %p84
      %p86 = scmp.ne.s32.totalorder %s78, %s80
      %p87 = scmp.eq.s32.totalorder %s23, 1
      %p88 = por %p86, %p87
      %p89 = scmp.ne.s32.totalorder %s80, %s81
      %p90 = scmp.eq.s32.totalorder %s23, 0
      %p91 = por %p89, %p90
      %p92 = scmp.ne.s32.totalorder %s80, %s81
      %p93 = scmp.eq.s32.totalorder %s24, 1
      %p94 = por %p92, %p93
      %p96 = scmp.ne.s32.totalorder %s81, %s95
      %p97 = scmp.eq.s32.totalorder %s24, 0
      %p98 = por %p96, %p97
      %s100 = sadd.s32 %s99, 1
      %p103 = scmp.eq.s32.totalorder %s18, 1
      %p104 = scmp.ne.s32.totalorder %s99, %s101
      %p105 = scmp.eq.s32.totalorder %s18, 0
      %p106 = por %p104, %p105
      %p107 = scmp.ne.s32.totalorder %s99, %s101
      %p108 = scmp.eq.s32.totalorder %s23, 1
      %p109 = por %p107, %p108
      %p110 = scmp.ne.s32.totalorder %s101, %s102
      %p111 = scmp.eq.s32.totalorder %s23, 0
      %p112 = por %p110, %p111
      %p113 = scmp.ne.s32.totalorder %s101, %s102
      %p114 = scmp.eq.s32.totalorder %s24, 1
      %p115 = por %p113, %p114
      %p117 = scmp.ne.s32.totalorder %s102, %s116
      %p118 = scmp.eq.s32.totalorder %s24, 0
      %p119 = por %p117, %p118
      %s121 = sadd.s32 %s120, 1
      %p124 = scmp.eq.s32.totalorder %s18, 1
      %p125 = scmp.ne.s32.totalorder %s120, %s122
      %p126 = scmp.eq.s32.totalorder %s18, 0
      %p127 = por %p125, %p126
      %p128 = scmp.ne.s32.totalorder %s120, %s122
      %p129 = scmp.eq.s32.totalorder %s23, 1
      %p130 = por %p128, %p129
      %p131 = scmp.ne.s32.totalorder %s122, %s123
      %p132 = scmp.eq.s32.totalorder %s23, 0
      %p133 = por %p131, %p132
      %p134 = scmp.ne.s32.totalorder %s122, %s123
      %p135 = scmp.eq.s32.totalorder %s24, 1
      %p136 = por %p134, %p135
      %p138 = scmp.ne.s32.totalorder %s123, %s137
      %p139 = scmp.eq.s32.totalorder %s24, 0
      %p140 = por %p138, %p139
      %s142 = sadd.s32 %s141, 1
      %p145 = scmp.eq.s32.totalorder %s18, 1
      %p146 = scmp.ne.s32.totalorder %s141, %s143
      %p147 = scmp.eq.s32.totalorder %s18, 0
      %p148 = por %p146, %p147
      %p149 = scmp.ne.s32.totalorder %s141, %s143
      %p150 = scmp.eq.s32.totalorder %s23, 1
      %p151 = por %p149, %p150
      %p152 = scmp.ne.s32.totalorder %s143, %s144
      %p153 = scmp.eq.s32.totalorder %s23, 0
      %p154 = por %p152, %p153
      %p155 = scmp.ne.s32.totalorder %s143, %s144
      %p156 = scmp.eq.s32.totalorder %s24, 1
      %p157 = por %p155, %p156
      %p159 = scmp.ne.s32.totalorder %s144, %s158
      %p160 = scmp.eq.s32.totalorder %s24, 0
      %p161 = por %p159, %p160
      %s163 = sadd.s32 %s162, 1
      %p166 = scmp.eq.s32.totalorder %s18, 1
      %p167 = scmp.ne.s32.totalorder %s162, %s164
      %p168 = scmp.eq.s32.totalorder %s18, 0
      %p169 = por %p167, %p168
      %p170 = scmp.ne.s32.totalorder %s162, %s164
      %p171 = scmp.eq.s32.totalorder %s23, 1
      %p172 = por %p170, %p171
      %p173 = scmp.ne.s32.totalorder %s164, %s165
      %p174 = scmp.eq.s32.totalorder %s23, 0
      %p175 = por %p173, %p174
      %p176 = scmp.ne.s32.totalorder %s164, %s165
      %p177 = scmp.eq.s32.totalorder %s24, 1
      %p178 = por %p176, %p177
      %p180 = scmp.ne.s32.totalorder %s165, %s179
      %p181 = scmp.eq.s32.totalorder %s24, 0
      %p182 = por %p180, %p181
      %p183 = scmp.le.s32.totalorder 1, %s18
      %p184 = scmp.lt.s32.totalorder %s18, 3
      %p185 = pnand %p183, %p184
      %p186 = pneg %p185
      // Predicated region
      $region9: #{bert_lstm_capsule_head.1} parent=5 // pred_check
        _
      $region10: #{bert_lstm_capsule_head.1} parent=5 // pred_check_branch
        %188 = sbr.rel (%p185) target = $region12
      $region11: #{bert_lstm_capsule_head.1} parent=5 // pred_region
        %s189 = ssub.s32 %s18, 1
        // Predicated region
        $region13: #{bert_lstm_capsule_head.1} parent=11 // pred_check
          %p190 = pneg %p91
        $region14: #{bert_lstm_capsule_head.1} parent=11 // pred_check_branch
          %192 = sbr.rel (%p190) target = $region16
        $region15: #{bert_lstm_capsule_head.1} parent=11 // pred_region
          %s194 = ssub.s32 8192, 8192
          %195 = vsyncadd [#allocation6], %s194
          %s196 = sshll.u32 [#allocation7], 4
          %s197 = int_to_ptr.vmem [resolvable:$true] %s196
          %202 = dma.hbm_to_vmem [thread:$0]  %s2, 8192, %s197, [#allocation6], 512, 512, 32
        $region16: #{bert_lstm_capsule_head.1} parent=11 // pred_fallthru
          _
        // Predicated region
        $region17: #{bert_lstm_capsule_head.1} parent=11 // pred_check
          %p203 = pneg %p112
        $region18: #{bert_lstm_capsule_head.1} parent=11 // pred_check_branch
          %205 = sbr.rel (%p203) target = $region20
        $region19: #{bert_lstm_capsule_head.1} parent=11 // pred_region
          _
        $region20: #{bert_lstm_capsule_head.1} parent=11 // pred_fallthru
          _
        // Predicated region
        $region21: #{bert_lstm_capsule_head.1} parent=11 // pred_check
          %p206 = pneg %p133
        $region22: #{bert_lstm_capsule_head.1} parent=11 // pred_check_branch
          %208 = sbr.rel (%p206) target = $region24
        $region23: #{bert_lstm_capsule_head.1} parent=11 // pred_region
          _
        $region24: #{bert_lstm_capsule_head.1} parent=11 // pred_fallthru
          _
        // Predicated region
        $region25: #{bert_lstm_capsule_head.1} parent=11 // pred_check
          %p209 = pneg %p154
        $region26: #{bert_lstm_capsule_head.1} parent=11 // pred_check_branch
          %211 = sbr.rel (%p209) target = $region28
        $region27: #{bert_lstm_capsule_head.1} parent=11 // pred_region
          _
        $region28: #{bert_lstm_capsule_head.1} parent=11 // pred_fallthru
          _
      $region12: #{bert_lstm_capsule_head.1} parent=5 // pred_fallthru
        _
      %p212 = scmp.lt.s32.totalorder %s18, 2
      // Predicated region
      $region29: #{bert_lstm_capsule_head.1} parent=5 // pred_check
        %p213 = pneg %p212
      $region30: #{bert_lstm_capsule_head.1} parent=5 // pred_check_branch
        %215 = sbr.rel (%p213) target = $region32
      $region31: #{bert_lstm_capsule_head.1} parent=5 // pred_region
        // Predicated region
        $region33: #{bert_lstm_capsule_head.1} parent=31 // pred_check
          %p216 = pneg %p38
        $region34: #{bert_lstm_capsule_head.1} parent=31 // pred_check_branch
          %218 = sbr.rel (%p216) target = $region36
        $region35: #{bert_lstm_capsule_head.1} parent=31 // pred_region
          %s219 = sand.u32 %s28, 1
          %s220 = scalar_lea.sflag [#allocation4], %s219
          %s221 = sand.u32 %s28, 1
          %s222 = smul.addr %s221, 288
          %s223 = scalar_lea.vmem [#allocation3], %s222
          %s224 = smul.u32 3, %s18
          %s226 = ssub.s32 4608, 4608
          %227 = vsyncadd %s220, %s226
          %s228 = smul.addr %s224, 128
          %s229 = scalar_lea.hbm %s0, %s228
          %s230 = sshll.u32 %s223, 4
          %s231 = int_to_ptr.vmem [resolvable:$true] %s230
          %236 = dma.hbm_to_vmem [thread:$0]  %s229, 4608, %s231, %s220, 768, 384, 24
        $region36: #{bert_lstm_capsule_head.1} parent=31 // pred_fallthru
          _
        // Predicated region
        $region37: #{bert_lstm_capsule_head.1} parent=31 // pred_check
          %p237 = pneg %p64
        $region38: #{bert_lstm_capsule_head.1} parent=31 // pred_check_branch
          %239 = sbr.rel (%p237) target = $region40
        $region39: #{bert_lstm_capsule_head.1} parent=31 // pred_region
          %s240 = sand.u32 %s18, 1
          %s241 = scalar_lea.sflag [#allocation6], %s240
          %s242 = sand.u32 %s54, 1
          %s243 = smul.addr %s242, 768
          %s244 = scalar_lea.vmem [#allocation5], %s243
          %s245 = smul.u32 48, %s18
          %s247 = ssub.s32 12288, 12288
          %248 = vsyncadd %s241, %s247
          %s249 = smul.addr %s245, 4
          %s250 = smul.addr %s249, 64
          %s251 = scalar_lea.hbm %s1, %s250
          %s252 = sshll.u32 %s244, 4
          %s253 = int_to_ptr.vmem [resolvable:$true] %s252
          %258 = dma.hbm_to_vmem [thread:$0]  %s251, 12288, %s253, %s241, 256, 256, 16
        $region40: #{bert_lstm_capsule_head.1} parent=31 // pred_fallthru
          _
      $region32: #{bert_lstm_capsule_head.1} parent=5 // pred_fallthru
        _
      %p259 = scmp.le.s32.totalorder 1, %s18
      %p260 = scmp.lt.s32.totalorder %s18, 3
      %p261 = pnand %p259, %p260
      %p262 = pneg %p261
      // Predicated region
      $region41: #{bert_lstm_capsule_head.1} parent=5 // pred_check
        _
      $region42: #{bert_lstm_capsule_head.1} parent=5 // pred_check_branch
        %264 = sbr.rel (%p261) target = $region44
      $region43: #{bert_lstm_capsule_head.1} parent=5 // pred_region
        %s265 = ssub.s32 %s18, 1
        %s266 = sand.u32 %s31, 1
        %s267 = scalar_lea.sflag [#allocation4], %s266
        %s268 = sand.u32 %s31, 1
        %s269 = smul.addr %s268, 288
        %s270 = scalar_lea.vmem [#allocation3], %s269
        // Predicated region
        $region45: #{bert_lstm_capsule_head.1} parent=43 // pred_check
          %p271 = pneg %p44
        $region46: #{bert_lstm_capsule_head.1} parent=43 // pred_check_branch
          %273 = sbr.rel (%p271) target = $region48
        $region47: #{bert_lstm_capsule_head.1} parent=43 // pred_region
          %274 = dma.done %s267, 4608
        $region48: #{bert_lstm_capsule_head.1} parent=43 // pred_fallthru
          _
        %s275 = sand.u32 %s23, 1
        %s276 = scalar_lea.sflag [#allocation6], %s275
        %s277 = sand.u32 %s57, 1
        %s278 = smul.addr %s277, 768
        %s279 = scalar_lea.vmem [#allocation5], %s278
        // Predicated region
        $region49: #{bert_lstm_capsule_head.1} parent=43 // pred_check
          %p280 = pneg %p70
        $region50: #{bert_lstm_capsule_head.1} parent=43 // pred_check_branch
          %282 = sbr.rel (%p280) target = $region52
        $region51: #{bert_lstm_capsule_head.1} parent=43 // pred_region
          %283 = dma.done %s276, 12288
        $region52: #{bert_lstm_capsule_head.1} parent=43 // pred_fallthru
          _
        // Predicated region
        $region53: #{bert_lstm_capsule_head.1} parent=43 // pred_check
          %p284 = pneg %p91
        $region54: #{bert_lstm_capsule_head.1} parent=43 // pred_check_branch
          %286 = sbr.rel (%p284) target = $region56
        $region55: #{bert_lstm_capsule_head.1} parent=43 // pred_region
          %287 = dma.done [#allocation6], 8192
        $region56: #{bert_lstm_capsule_head.1} parent=43 // pred_fallthru
          _
        %s288 = sand.u32 %s31, 1
        %s289 = scalar_lea.sflag [#allocation4], %s288
        %s290 = sand.u32 %s31, 1
        %s291 = smul.addr %s290, 288
        %s292 = scalar_lea.vmem [#allocation3], %s291
        %p293 = pneg %p44
        %p294 = pneg %p41
        %s295 = sand.u32 %s23, 1
        %s296 = scalar_lea.sflag [#allocation6], %s295
        %s297 = sand.u32 %s57, 1
        %s298 = smul.addr %s297, 768
        %s299 = scalar_lea.vmem [#allocation5], %s298
        %p300 = pneg %p70
        %p301 = pneg %p67
        %p302 = pneg %p91
        %p303 = pneg %p88
        %p304 = pneg %p112
        %p305 = pneg %p109
        %p306 = pneg %p133
        %p307 = pneg %p130
        %p308 = pneg %p154
        %p309 = pneg %p151
        %p310 = pneg %p175
        %p311 = pneg %p172
        %s312 = smul.u32 3, %s23
        %s313 = smul.u32 48, %s23
        %v315 = vld [vmem:[%s270] sm:$0xff]
        %v316 = vld [vmem:[%s270 + $0x8] sm:$0xff]
        %v317 = vld [vmem:[%s270 + $0x10] sm:$0xff]
        %v318 = vld [vmem:[%s270 + $0x18] sm:$0xff]
        %v319 = vld [vmem:[%s270 + $0x20] sm:$0xff]
        %v320 = vld [vmem:[%s270 + $0x28] sm:$0xff]
        %v321 = vld [vmem:[%s270 + $0x30] sm:$0xff]
        %v322 = vld [vmem:[%s270 + $0x38] sm:$0xff]
        %v323 = vld [vmem:[%s270 + $0x40] sm:$0xff]
        %v324 = vld [vmem:[%s270 + $0x48] sm:$0xff]
        %v325 = vld [vmem:[%s270 + $0x50] sm:$0xff]
        %v326 = vld [vmem:[%s270 + $0x58] sm:$0xff]
        %v327 = vld [vmem:[%s270 + $0x60] sm:$0xff]
        %v328 = vld [vmem:[%s270 + $0x68] sm:$0xff]
        %v329 = vld [vmem:[%s270 + $0x70] sm:$0xff]
        %v330 = vld [vmem:[%s270 + $0x78] sm:$0xff]
        %v331 = vld [vmem:[%s270 + $0x80] sm:$0xff]
        %v332 = vld [vmem:[%s270 + $0x88] sm:$0xff]
        %v333 = vld [vmem:[%s270 + $0x90] sm:$0xff]
        %v334 = vld [vmem:[%s270 + $0x98] sm:$0xff]
        %v335 = vld [vmem:[%s270 + $0xa0] sm:$0xff]
        %v336 = vld [vmem:[%s270 + $0xa8] sm:$0xff]
        %v337 = vld [vmem:[%s270 + $0xb0] sm:$0xff]
        %v338 = vld [vmem:[%s270 + $0xb8] sm:$0xff]
        %v339 = vld [vmem:[%s270 + $0xc0] sm:$0xff]
        %v340 = vld [vmem:[%s270 + $0xc8] sm:$0xff]
        %v341 = vld [vmem:[%s270 + $0xd0] sm:$0xff]
        %v342 = vld [vmem:[%s270 + $0xd8] sm:$0xff]
        %v343 = vld [vmem:[%s270 + $0xe0] sm:$0xff]
        %v344 = vld [vmem:[%s270 + $0xe8] sm:$0xff]
        %v345 = vld [vmem:[%s270 + $0xf0] sm:$0xff]
        %v346 = vld [vmem:[%s270 + $0xf8] sm:$0xff]
        %v347 = vld [vmem:[%s270 + $0x100] sm:$0xff]
        %v348 = vld [vmem:[%s270 + $0x108] sm:$0xff]
        %v349 = vld [vmem:[%s270 + $0x110] sm:$0xff]
        %v350 = vld [vmem:[%s270 + $0x118] sm:$0xff]
        %v351 = vpack.c.bf16 %v318, %v315
        %v352 = vpack.c.bf16 %v319, %v316
        %v353 = vpack.c.bf16 %v320, %v317
        %v354 = vpack.c.bf16 %v324, %v321
        %v355 = vpack.c.bf16 %v325, %v322
        %v356 = vpack.c.bf16 %v326, %v323
        %v357 = vpack.c.bf16 %v330, %v327
        %v358 = vpack.c.bf16 %v331, %v328
        %v359 = vpack.c.bf16 %v332, %v329
        %v360 = vpack.c.bf16 %v336, %v333
        %v361 = vpack.c.bf16 %v337, %v334
        %v362 = vpack.c.bf16 %v338, %v335
        %v363 = vpack.c.bf16 %v342, %v339
        %v364 = vpack.c.bf16 %v343, %v340
        %v365 = vpack.c.bf16 %v344, %v341
        %v366 = vpack.c.bf16 %v348, %v345
        %v367 = vpack.c.bf16 %v349, %v346
        %v368 = vpack.c.bf16 %v350, %v347
        %v369 = vld [vmem:[%s279] sm:$0xff]
        %v370 = vld [vmem:[%s279 + $0x8] sm:$0xff]
        %v371 = vld [vmem:[%s279 + $0x10] sm:$0xff]
        %v372 = vld [vmem:[%s279 + $0x18] sm:$0xff]
        %v373 = vld [vmem:[%s279 + $0x20] sm:$0xff]
        %v374 = vld [vmem:[%s279 + $0x28] sm:$0xff]
        %v375 = vld [vmem:[%s279 + $0x30] sm:$0xff]
        %v376 = vld [vmem:[%s279 + $0x38] sm:$0xff]
        %v377 = vld [vmem:[%s279 + $0x40] sm:$0xff]
        %v378 = vld [vmem:[%s279 + $0x48] sm:$0xff]
        %v379 = vld [vmem:[%s279 + $0x50] sm:$0xff]
        %v380 = vld [vmem:[%s279 + $0x58] sm:$0xff]
        %v381 = vld [vmem:[%s279 + $0x60] sm:$0xff]
        %v382 = vld [vmem:[%s279 + $0x68] sm:$0xff]
        %v383 = vld [vmem:[%s279 + $0x70] sm:$0xff]
        %v384 = vld [vmem:[%s279 + $0x78] sm:$0xff]
        %v385 = vld [vmem:[%s279 + $0x80] sm:$0xff]
        %v386 = vld [vmem:[%s279 + $0x88] sm:$0xff]
        %v387 = vld [vmem:[%s279 + $0x90] sm:$0xff]
        %v388 = vld [vmem:[%s279 + $0x98] sm:$0xff]
        %v389 = vld [vmem:[%s279 + $0xa0] sm:$0xff]
        %v390 = vld [vmem:[%s279 + $0xa8] sm:$0xff]
        %v391 = vld [vmem:[%s279 + $0xb0] sm:$0xff]
        %v392 = vld [vmem:[%s279 + $0xb8] sm:$0xff]
        %v393 = vld [vmem:[%s279 + $0xc0] sm:$0xff]
        %v394 = vld [vmem:[%s279 + $0xc8] sm:$0xff]
        %v395 = vld [vmem:[%s279 + $0xd0] sm:$0xff]
        %v396 = vld [vmem:[%s279 + $0xd8] sm:$0xff]
        %v397 = vld [vmem:[%s279 + $0xe0] sm:$0xff]
        %v398 = vld [vmem:[%s279 + $0xe8] sm:$0xff]
        %v399 = vld [vmem:[%s279 + $0xf0] sm:$0xff]
        %v400 = vld [vmem:[%s279 + $0xf8] sm:$0xff]
        %v401 = vld [vmem:[%s279 + $0x100] sm:$0xff]
        %v402 = vld [vmem:[%s279 + $0x108] sm:$0xff]
        %v403 = vld [vmem:[%s279 + $0x110] sm:$0xff]
        %v404 = vld [vmem:[%s279 + $0x118] sm:$0xff]
        %v405 = vld [vmem:[%s279 + $0x120] sm:$0xff]
        %v406 = vld [vmem:[%s279 + $0x128] sm:$0xff]
        %v407 = vld [vmem:[%s279 + $0x130] sm:$0xff]
        %v408 = vld [vmem:[%s279 + $0x138] sm:$0xff]
        %v409 = vld [vmem:[%s279 + $0x140] sm:$0xff]
        %v410 = vld [vmem:[%s279 + $0x148] sm:$0xff]
        %v411 = vld [vmem:[%s279 + $0x150] sm:$0xff]
        %v412 = vld [vmem:[%s279 + $0x158] sm:$0xff]
        %v413 = vld [vmem:[%s279 + $0x160] sm:$0xff]
        %v414 = vld [vmem:[%s279 + $0x168] sm:$0xff]
        %v415 = vld [vmem:[%s279 + $0x170] sm:$0xff]
        %v416 = vld [vmem:[%s279 + $0x178] sm:$0xff]
        %v417 = vld [vmem:[%s279 + $0x180] sm:$0xff]
        %v418 = vld [vmem:[%s279 + $0x188] sm:$0xff]
        %v419 = vld [vmem:[%s279 + $0x190] sm:$0xff]
        %v420 = vld [vmem:[%s279 + $0x198] sm:$0xff]
        %v421 = vld [vmem:[%s279 + $0x1a0] sm:$0xff]
        %v422 = vld [vmem:[%s279 + $0x1a8] sm:$0xff]
        %v423 = vld [vmem:[%s279 + $0x1b0] sm:$0xff]
        %v424 = vld [vmem:[%s279 + $0x1b8] sm:$0xff]
        %v425 = vld [vmem:[%s279 + $0x1c0] sm:$0xff]
        %v426 = vld [vmem:[%s279 + $0x1c8] sm:$0xff]
        %v427 = vld [vmem:[%s279 + $0x1d0] sm:$0xff]
        %v428 = vld [vmem:[%s279 + $0x1d8] sm:$0xff]
        %v429 = vld [vmem:[%s279 + $0x1e0] sm:$0xff]
        %v430 = vld [vmem:[%s279 + $0x1e8] sm:$0xff]
        %v431 = vld [vmem:[%s279 + $0x1f0] sm:$0xff]
        %v432 = vld [vmem:[%s279 + $0x1f8] sm:$0xff]
        %v433 = vld [vmem:[%s279 + $0x200] sm:$0xff]
        %v434 = vld [vmem:[%s279 + $0x208] sm:$0xff]
        %v435 = vld [vmem:[%s279 + $0x210] sm:$0xff]
        %v436 = vld [vmem:[%s279 + $0x218] sm:$0xff]
        %v437 = vld [vmem:[%s279 + $0x220] sm:$0xff]
        %v438 = vld [vmem:[%s279 + $0x228] sm:$0xff]
        %v439 = vld [vmem:[%s279 + $0x230] sm:$0xff]
        %v440 = vld [vmem:[%s279 + $0x238] sm:$0xff]
        %v441 = vld [vmem:[%s279 + $0x240] sm:$0xff]
        %v442 = vld [vmem:[%s279 + $0x248] sm:$0xff]
        %v443 = vld [vmem:[%s279 + $0x250] sm:$0xff]
        %v444 = vld [vmem:[%s279 + $0x258] sm:$0xff]
        %v445 = vld [vmem:[%s279 + $0x260] sm:$0xff]
        %v446 = vld [vmem:[%s279 + $0x268] sm:$0xff]
        %v447 = vld [vmem:[%s279 + $0x270] sm:$0xff]
        %v448 = vld [vmem:[%s279 + $0x278] sm:$0xff]
        %v449 = vld [vmem:[%s279 + $0x280] sm:$0xff]
        %v450 = vld [vmem:[%s279 + $0x288] sm:$0xff]
        %v451 = vld [vmem:[%s279 + $0x290] sm:$0xff]
        %v452 = vld [vmem:[%s279 + $0x298] sm:$0xff]
        %v453 = vld [vmem:[%s279 + $0x2a0] sm:$0xff]
        %v454 = vld [vmem:[%s279 + $0x2a8] sm:$0xff]
        %v455 = vld [vmem:[%s279 + $0x2b0] sm:$0xff]
        %v456 = vld [vmem:[%s279 + $0x2b8] sm:$0xff]
        %v457 = vld [vmem:[%s279 + $0x2c0] sm:$0xff]
        %v458 = vld [vmem:[%s279 + $0x2c8] sm:$0xff]
        %v459 = vld [vmem:[%s279 + $0x2d0] sm:$0xff]
        %v460 = vld [vmem:[%s279 + $0x2d8] sm:$0xff]
        %v461 = vld [vmem:[%s279 + $0x2e0] sm:$0xff]
        %v462 = vld [vmem:[%s279 + $0x2e8] sm:$0xff]
        %v463 = vld [vmem:[%s279 + $0x2f0] sm:$0xff]
        %v464 = vld [vmem:[%s279 + $0x2f8] sm:$0xff]
        %v561 = vunpack.c.l.b16 %v369
        %v562 = vunpack.c.h.b16 %v369
        %v563 = vunpack.c.l.b16 %v370
        %v564 = vunpack.c.h.b16 %v370
        %v565 = vunpack.c.l.b16 %v371
        %v566 = vunpack.c.h.b16 %v371
        %v567 = vunpack.c.l.b16 %v372
        %v568 = vunpack.c.h.b16 %v372
        %v569 = vunpack.c.l.b16 %v373
        %v570 = vunpack.c.h.b16 %v373
        %v571 = vunpack.c.l.b16 %v374
        %v572 = vunpack.c.h.b16 %v374
        %v573 = vunpack.c.l.b16 %v375
        %v574 = vunpack.c.h.b16 %v375
        %v575 = vunpack.c.l.b16 %v376
        %v576 = vunpack.c.h.b16 %v376
        %v577 = vunpack.c.l.b16 %v377
        %v578 = vunpack.c.h.b16 %v377
        %v579 = vunpack.c.l.b16 %v378
        %v580 = vunpack.c.h.b16 %v378
        %v581 = vunpack.c.l.b16 %v379
        %v582 = vunpack.c.h.b16 %v379
        %v583 = vunpack.c.l.b16 %v380
        %v584 = vunpack.c.h.b16 %v380
        %v585 = vunpack.c.l.b16 %v381
        %v586 = vunpack.c.h.b16 %v381
        %v587 = vunpack.c.l.b16 %v382
        %v588 = vunpack.c.h.b16 %v382
        %v589 = vunpack.c.l.b16 %v383
        %v590 = vunpack.c.h.b16 %v383
        %v591 = vunpack.c.l.b16 %v384
        %v592 = vunpack.c.h.b16 %v384
        %v593 = vunpack.c.l.b16 %v385
        %v594 = vunpack.c.h.b16 %v385
        %v595 = vunpack.c.l.b16 %v386
        %v596 = vunpack.c.h.b16 %v386
        %v597 = vunpack.c.l.b16 %v387
        %v598 = vunpack.c.h.b16 %v387
        %v599 = vunpack.c.l.b16 %v388
        %v600 = vunpack.c.h.b16 %v388
        %v601 = vunpack.c.l.b16 %v389
        %v602 = vunpack.c.h.b16 %v389
        %v603 = vunpack.c.l.b16 %v390
        %v604 = vunpack.c.h.b16 %v390
        %v605 = vunpack.c.l.b16 %v391
        %v606 = vunpack.c.h.b16 %v391
        %v607 = vunpack.c.l.b16 %v392
        %v608 = vunpack.c.h.b16 %v392
        %v609 = vunpack.c.l.b16 %v393
        %v610 = vunpack.c.h.b16 %v393
        %v611 = vunpack.c.l.b16 %v394
        %v612 = vunpack.c.h.b16 %v394
        %v613 = vunpack.c.l.b16 %v395
        %v614 = vunpack.c.h.b16 %v395
        %v615 = vunpack.c.l.b16 %v396
        %v616 = vunpack.c.h.b16 %v396
        %v617 = vunpack.c.l.b16 %v397
        %v618 = vunpack.c.h.b16 %v397
        %v619 = vunpack.c.l.b16 %v398
        %v620 = vunpack.c.h.b16 %v398
        %v621 = vunpack.c.l.b16 %v399
        %v622 = vunpack.c.h.b16 %v399
        %v623 = vunpack.c.l.b16 %v400
        %v624 = vunpack.c.h.b16 %v400
        %v625 = vunpack.c.l.b16 %v401
        %v626 = vunpack.c.h.b16 %v401
        %v627 = vunpack.c.l.b16 %v402
        %v628 = vunpack.c.h.b16 %v402
        %v629 = vunpack.c.l.b16 %v403
        %v630 = vunpack.c.h.b16 %v403
        %v631 = vunpack.c.l.b16 %v404
        %v632 = vunpack.c.h.b16 %v404
        %v633 = vunpack.c.l.b16 %v405
        %v634 = vunpack.c.h.b16 %v405
        %v635 = vunpack.c.l.b16 %v406
        %v636 = vunpack.c.h.b16 %v406
        %v637 = vunpack.c.l.b16 %v407
        %v638 = vunpack.c.h.b16 %v407
        %v639 = vunpack.c.l.b16 %v408
        %v640 = vunpack.c.h.b16 %v408
        %v641 = vunpack.c.l.b16 %v409
        %v642 = vunpack.c.h.b16 %v409
        %v643 = vunpack.c.l.b16 %v410
        %v644 = vunpack.c.h.b16 %v410
        %v645 = vunpack.c.l.b16 %v411
        %v646 = vunpack.c.h.b16 %v411
        %v647 = vunpack.c.l.b16 %v412
        %v648 = vunpack.c.h.b16 %v412
        %v649 = vunpack.c.l.b16 %v413
        %v650 = vunpack.c.h.b16 %v413
        %v651 = vunpack.c.l.b16 %v414
        %v652 = vunpack.c.h.b16 %v414
        %v653 = vunpack.c.l.b16 %v415
        %v654 = vunpack.c.h.b16 %v415
        %v655 = vunpack.c.l.b16 %v416
        %v656 = vunpack.c.h.b16 %v416
        %v657 = vunpack.c.l.b16 %v417
        %v658 = vunpack.c.h.b16 %v417
        %v659 = vunpack.c.l.b16 %v418
        %v660 = vunpack.c.h.b16 %v418
        %v661 = vunpack.c.l.b16 %v419
        %v662 = vunpack.c.h.b16 %v419
        %v663 = vunpack.c.l.b16 %v420
        %v664 = vunpack.c.h.b16 %v420
        %v665 = vunpack.c.l.b16 %v421
        %v666 = vunpack.c.h.b16 %v421
        %v667 = vunpack.c.l.b16 %v422
        %v668 = vunpack.c.h.b16 %v422
        %v669 = vunpack.c.l.b16 %v423
        %v670 = vunpack.c.h.b16 %v423
        %v671 = vunpack.c.l.b16 %v424
        %v672 = vunpack.c.h.b16 %v424
        %v673 = vunpack.c.l.b16 %v425
        %v674 = vunpack.c.h.b16 %v425
        %v675 = vunpack.c.l.b16 %v426
        %v676 = vunpack.c.h.b16 %v426
        %v677 = vunpack.c.l.b16 %v427
        %v678 = vunpack.c.h.b16 %v427
        %v679 = vunpack.c.l.b16 %v428
        %v680 = vunpack.c.h.b16 %v428
        %v681 = vunpack.c.l.b16 %v429
        %v682 = vunpack.c.h.b16 %v429
        %v683 = vunpack.c.l.b16 %v430
        %v684 = vunpack.c.h.b16 %v430
        %v685 = vunpack.c.l.b16 %v431
        %v686 = vunpack.c.h.b16 %v431
        %v687 = vunpack.c.l.b16 %v432
        %v688 = vunpack.c.h.b16 %v432
        %v689 = vunpack.c.l.b16 %v433
        %v690 = vunpack.c.h.b16 %v433
        %v691 = vunpack.c.l.b16 %v434
        %v692 = vunpack.c.h.b16 %v434
        %v693 = vunpack.c.l.b16 %v435
        %v694 = vunpack.c.h.b16 %v435
        %v695 = vunpack.c.l.b16 %v436
        %v696 = vunpack.c.h.b16 %v436
        %v697 = vunpack.c.l.b16 %v437
        %v698 = vunpack.c.h.b16 %v437
        %v699 = vunpack.c.l.b16 %v438
        %v700 = vunpack.c.h.b16 %v438
        %v701 = vunpack.c.l.b16 %v439
        %v702 = vunpack.c.h.b16 %v439
        %v703 = vunpack.c.l.b16 %v440
        %v704 = vunpack.c.h.b16 %v440
        %v705 = vunpack.c.l.b16 %v441
        %v706 = vunpack.c.h.b16 %v441
        %v707 = vunpack.c.l.b16 %v442
        %v708 = vunpack.c.h.b16 %v442
        %v709 = vunpack.c.l.b16 %v443
        %v710 = vunpack.c.h.b16 %v443
        %v711 = vunpack.c.l.b16 %v444
        %v712 = vunpack.c.h.b16 %v444
        %v713 = vunpack.c.l.b16 %v445
        %v714 = vunpack.c.h.b16 %v445
        %v715 = vunpack.c.l.b16 %v446
        %v716 = vunpack.c.h.b16 %v446
        %v717 = vunpack.c.l.b16 %v447
        %v718 = vunpack.c.h.b16 %v447
        %v719 = vunpack.c.l.b16 %v448
        %v720 = vunpack.c.h.b16 %v448
        %v721 = vunpack.c.l.b16 %v449
        %v722 = vunpack.c.h.b16 %v449
        %v723 = vunpack.c.l.b16 %v450
        %v724 = vunpack.c.h.b16 %v450
        %v725 = vunpack.c.l.b16 %v451
        %v726 = vunpack.c.h.b16 %v451
        %v727 = vunpack.c.l.b16 %v452
        %v728 = vunpack.c.h.b16 %v452
        %v729 = vunpack.c.l.b16 %v453
        %v730 = vunpack.c.h.b16 %v453
        %v731 = vunpack.c.l.b16 %v454
        %v732 = vunpack.c.h.b16 %v454
        %v733 = vunpack.c.l.b16 %v455
        %v734 = vunpack.c.h.b16 %v455
        %v735 = vunpack.c.l.b16 %v456
        %v736 = vunpack.c.h.b16 %v456
        %v737 = vunpack.c.l.b16 %v457
        %v738 = vunpack.c.h.b16 %v457
        %v739 = vunpack.c.l.b16 %v458
        %v740 = vunpack.c.h.b16 %v458
        %v741 = vunpack.c.l.b16 %v459
        %v742 = vunpack.c.h.b16 %v459
        %v743 = vunpack.c.l.b16 %v460
        %v744 = vunpack.c.h.b16 %v460
        %v745 = vunpack.c.l.b16 %v461
        %v746 = vunpack.c.h.b16 %v461
        %v747 = vunpack.c.l.b16 %v462
        %v748 = vunpack.c.h.b16 %v462
        %v749 = vunpack.c.l.b16 %v463
        %v750 = vunpack.c.h.b16 %v463
        %v751 = vunpack.c.l.b16 %v464
        %v752 = vunpack.c.h.b16 %v464
        %v753 = vpack.c.b16 %v565, %v561
        %v754 = vpack.c.b16 %v566, %v562
        %v755 = vpack.c.b16 %v567, %v563
        %v756 = vpack.c.b16 %v568, %v564
        %v757 = vpack.c.b16 %v573, %v569
        %v758 = vpack.c.b16 %v574, %v570
        %v759 = vpack.c.b16 %v575, %v571
        %v760 = vpack.c.b16 %v576, %v572
        %v761 = vpack.c.b16 %v581, %v577
        %v762 = vpack.c.b16 %v582, %v578
        %v763 = vpack.c.b16 %v583, %v579
        %v764 = vpack.c.b16 %v584, %v580
        %v765 = vpack.c.b16 %v589, %v585
        %v766 = vpack.c.b16 %v590, %v586
        %v767 = vpack.c.b16 %v591, %v587
        %v768 = vpack.c.b16 %v592, %v588
        %v769 = vpack.c.b16 %v597, %v593
        %v770 = vpack.c.b16 %v598, %v594
        %v771 = vpack.c.b16 %v599, %v595
        %v772 = vpack.c.b16 %v600, %v596
        %v773 = vpack.c.b16 %v605, %v601
        %v774 = vpack.c.b16 %v606, %v602
        %v775 = vpack.c.b16 %v607, %v603
        %v776 = vpack.c.b16 %v608, %v604
        %v777 = vpack.c.b16 %v613, %v609
        %v778 = vpack.c.b16 %v614, %v610
        %v779 = vpack.c.b16 %v615, %v611
        %v780 = vpack.c.b16 %v616, %v612
        %v781 = vpack.c.b16 %v621, %v617
        %v782 = vpack.c.b16 %v622, %v618
        %v783 = vpack.c.b16 %v623, %v619
        %v784 = vpack.c.b16 %v624, %v620
        %v785 = vpack.c.b16 %v629, %v625
        %v786 = vpack.c.b16 %v630, %v626
        %v787 = vpack.c.b16 %v631, %v627
        %v788 = vpack.c.b16 %v632, %v628
        %v789 = vpack.c.b16 %v637, %v633
        %v790 = vpack.c.b16 %v638, %v634
        %v791 = vpack.c.b16 %v639, %v635
        %v792 = vpack.c.b16 %v640, %v636
        %v793 = vpack.c.b16 %v645, %v641
        %v794 = vpack.c.b16 %v646, %v642
        %v795 = vpack.c.b16 %v647, %v643
        %v796 = vpack.c.b16 %v648, %v644
        %v797 = vpack.c.b16 %v653, %v649
        %v798 = vpack.c.b16 %v654, %v650
        %v799 = vpack.c.b16 %v655, %v651
        %v800 = vpack.c.b16 %v656, %v652
        %v801 = vpack.c.b16 %v661, %v657
        %v802 = vpack.c.b16 %v662, %v658
        %v803 = vpack.c.b16 %v663, %v659
        %v804 = vpack.c.b16 %v664, %v660
        %v805 = vpack.c.b16 %v669, %v665
        %v806 = vpack.c.b16 %v670, %v666
        %v807 = vpack.c.b16 %v671, %v667
        %v808 = vpack.c.b16 %v672, %v668
        %v809 = vpack.c.b16 %v677, %v673
        %v810 = vpack.c.b16 %v678, %v674
        %v811 = vpack.c.b16 %v679, %v675
        %v812 = vpack.c.b16 %v680, %v676
        %v813 = vpack.c.b16 %v685, %v681
        %v814 = vpack.c.b16 %v686, %v682
        %v815 = vpack.c.b16 %v687, %v683
        %v816 = vpack.c.b16 %v688, %v684
        %v817 = vpack.c.b16 %v693, %v689
        %v818 = vpack.c.b16 %v694, %v690
        %v819 = vpack.c.b16 %v695, %v691
        %v820 = vpack.c.b16 %v696, %v692
        %v821 = vpack.c.b16 %v701, %v697
        %v822 = vpack.c.b16 %v702, %v698
        %v823 = vpack.c.b16 %v703, %v699
        %v824 = vpack.c.b16 %v704, %v700
        %v825 = vpack.c.b16 %v709, %v705
        %v826 = vpack.c.b16 %v710, %v706
        %v827 = vpack.c.b16 %v711, %v707
        %v828 = vpack.c.b16 %v712, %v708
        %v829 = vpack.c.b16 %v717, %v713
        %v830 = vpack.c.b16 %v718, %v714
        %v831 = vpack.c.b16 %v719, %v715
        %v832 = vpack.c.b16 %v720, %v716
        %v833 = vpack.c.b16 %v725, %v721
        %v834 = vpack.c.b16 %v726, %v722
        %v835 = vpack.c.b16 %v727, %v723
        %v836 = vpack.c.b16 %v728, %v724
        %v837 = vpack.c.b16 %v733, %v729
        %v838 = vpack.c.b16 %v734, %v730
        %v839 = vpack.c.b16 %v735, %v731
        %v840 = vpack.c.b16 %v736, %v732
        %v841 = vpack.c.b16 %v741, %v737
        %v842 = vpack.c.b16 %v742, %v738
        %v843 = vpack.c.b16 %v743, %v739
        %v844 = vpack.c.b16 %v744, %v740
        %v845 = vpack.c.b16 %v749, %v745
        %v846 = vpack.c.b16 %v750, %v746
        %v847 = vpack.c.b16 %v751, %v747
        %v848 = vpack.c.b16 %v752, %v748
        %945 = vmatprep.subr.bf16.mxu0 %v754
        %946 = vmatpush1.bf16.msra.mxu0 %v753
        %947 = vmatprep.subr.bf16.mxu0 %v758
        %948 = vmatpush1.bf16.msra.mxu0 %v757
        %949 = vmatprep.subr.bf16.mxu0 %v762
        %950 = vmatpush1.bf16.msra.mxu0 %v761
        %951 = vmatprep.subr.bf16.mxu0 %v766
        %952 = vmatpush1.bf16.msra.mxu0 %v765
        %953 = vmatprep.subr.bf16.mxu0 %v770
        %954 = vmatpush1.bf16.msra.mxu0 %v769
        %955 = vmatprep.subr.bf16.mxu0 %v774
        %956 = vmatpush1.bf16.msra.mxu0 %v773
        %957 = vmatprep.subr.bf16.mxu0 %v778
        %958 = vmatpush1.bf16.msra.mxu0 %v777
        %959 = vmatprep.subr.bf16.mxu0 %v782
        %960 = vmatpush1.bf16.msra.mxu0 %v781
        %961 = vmatprep.subr.bf16.mxu0 %v786
        %962 = vmatpush1.bf16.msra.mxu0 %v785
        %963 = vmatprep.subr.bf16.mxu0 %v790
        %964 = vmatpush1.bf16.msra.mxu0 %v789
        %965 = vmatprep.subr.bf16.mxu0 %v794
        %966 = vmatpush1.bf16.msra.mxu0 %v793
        %967 = vmatprep.subr.bf16.mxu0 %v798
        %968 = vmatpush1.bf16.msra.mxu0 %v797
        %969 = vmatprep.subr.bf16.mxu0 %v802
        %970 = vmatpush1.bf16.msra.mxu0 %v801
        %971 = vmatprep.subr.bf16.mxu0 %v806
        %972 = vmatpush1.bf16.msra.mxu0 %v805
        %973 = vmatprep.subr.bf16.mxu0 %v810
        %974 = vmatpush1.bf16.msra.mxu0 %v809
        %975 = vmatprep.subr.bf16.mxu0 %v814
        %976 = vmatpush1.bf16.msra.mxu0 %v813
        %977 = vmatprep.mubr.bf16.mxu0 %v352
        %978 = vmatmul.mubr.bf16.gmra.mrb[0].mxu0 %v351
        %v979 = vpop.f32.mrb[0].mxu0
        %v980 = vadd.f32 0.0, %v979
        %v981 = vpop.f32.mrb[0].mxu0
        %v982 = vadd.f32 0.0, %v981
        %v983 = vpop.f32.mrb[0].mxu0
        %v984 = vadd.f32 0.0, %v983
        %v985 = vpop.f32.mrb[0].mxu0
        %v986 = vadd.f32 0.0, %v985
        %987 = vmatprep.mubr.bf16.mxu0 %v355
        %988 = vmatmul.mubr.bf16.gmra.mrb[0].mxu0 %v354
        %v989 = vpop.f32.mrb[0].mxu0
        %v990 = vadd.f32 0.0, %v989
        %v991 = vpop.f32.mrb[0].mxu0
        %v992 = vadd.f32 0.0, %v991
        %v993 = vpop.f32.mrb[0].mxu0
        %v994 = vadd.f32 0.0, %v993
        %v995 = vpop.f32.mrb[0].mxu0
        %v996 = vadd.f32 0.0, %v995
        %997 = vmatprep.mubr.bf16.mxu0 %v358
        %998 = vmatmul.mubr.bf16.gmra.mrb[0].mxu0 %v357
        %v999 = vpop.f32.mrb[0].mxu0
        %v1000 = vadd.f32 0.0, %v999
        %v1001 = vpop.f32.mrb[0].mxu0
        %v1002 = vadd.f32 0.0, %v1001
        %v1003 = vpop.f32.mrb[0].mxu0
        %v1004 = vadd.f32 0.0, %v1003
        %v1005 = vpop.f32.mrb[0].mxu0
        %v1006 = vadd.f32 0.0, %v1005
        %1007 = vmatprep.mubr.bf16.mxu0 %v361
        %1008 = vmatmul.mubr.bf16.gmra.mrb[0].mxu0 %v360
        %v1009 = vpop.f32.mrb[0].mxu0
        %v1010 = vadd.f32 0.0, %v1009
        %v1011 = vpop.f32.mrb[0].mxu0
        %v1012 = vadd.f32 0.0, %v1011
        %v1013 = vpop.f32.mrb[0].mxu0
        %v1014 = vadd.f32 0.0, %v1013
        %v1015 = vpop.f32.mrb[0].mxu0
        %v1016 = vadd.f32 0.0, %v1015
        %1017 = vmatprep.mubr.bf16.mxu0 %v364
        %1018 = vmatmul.mubr.bf16.gmra.mrb[0].mxu0 %v363
        %v1019 = vpop.f32.mrb[0].mxu0
        %v1020 = vadd.f32 0.0, %v1019
        %v1021 = vpop.f32.mrb[0].mxu0
        %v1022 = vadd.f32 0.0, %v1021
        %v1023 = vpop.f32.mrb[0].mxu0
        %v1024 = vadd.f32 0.0, %v1023
        %v1025 = vpop.f32.mrb[0].mxu0
        %v1026 = vadd.f32 0.0, %v1025
        %1027 = vmatprep.mubr.bf16.mxu0 %v367
        %1028 = vmatmul.mubr.bf16.gmra.mrb[0].mxu0 %v366
        %v1029 = vpop.f32.mrb[0].mxu0
        %v1030 = vadd.f32 0.0, %v1029
        %v1031 = vpop.f32.mrb[0].mxu0
        %v1032 = vadd.f32 0.0, %v1031
        %v1033 = vpop.f32.mrb[0].mxu0
        %v1034 = vadd.f32 0.0, %v1033
        %v1035 = vpop.f32.mrb[0].mxu0
        %v1036 = vadd.f32 0.0, %v1035
        %1037 = vdwg.mxu0
        %1038 = vmatprep.subr.bf16.mxu0 %v818
        %1039 = vmatpush1.bf16.msra.mxu0 %v817
        %1040 = vmatprep.subr.bf16.mxu0 %v822
        %1041 = vmatpush1.bf16.msra.mxu0 %v821
        %1042 = vmatprep.subr.bf16.mxu0 %v826
        %1043 = vmatpush1.bf16.msra.mxu0 %v825
        %1044 = vmatprep.subr.bf16.mxu0 %v830
        %1045 = vmatpush1.bf16.msra.mxu0 %v829
        %1046 = vmatprep.subr.bf16.mxu0 %v834
        %1047 = vmatpush1.bf16.msra.mxu0 %v833
        %1048 = vmatprep.subr.bf16.mxu0 %v838
        %1049 = vmatpush1.bf16.msra.mxu0 %v837
        %1050 = vmatprep.subr.bf16.mxu0 %v842
        %1051 = vmatpush1.bf16.msra.mxu0 %v841
        %1052 = vmatprep.subr.bf16.mxu0 %v846
        %1053 = vmatpush1.bf16.msra.mxu0 %v845
        %1054 = vmatprep.subr.bf16.mxu0 0
        %1055 = vmatpush1.bf16.msra.mxu0 0
        %1056 = vmatprep.subr.bf16.mxu0 0
        %1057 = vmatpush1.bf16.msra.mxu0 0
        %1058 = vmatprep.subr.bf16.mxu0 0
        %1059 = vmatpush1.bf16.msra.mxu0 0
        %1060 = vmatprep.subr.bf16.mxu0 0
        %1061 = vmatpush1.bf16.msra.mxu0 0
        %1062 = vmatprep.subr.bf16.mxu0 0
        %1063 = vmatpush1.bf16.msra.mxu0 0
        %1064 = vmatprep.subr.bf16.mxu0 0
        %1065 = vmatpush1.bf16.msra.mxu0 0
        %1066 = vmatprep.subr.bf16.mxu0 0
        %1067 = vmatpush1.bf16.msra.mxu0 0
        %1068 = vmatprep.subr.bf16.mxu0 0
        %1069 = vmatpush1.bf16.msra.mxu0 0
        %1070 = vmatprep.mubr.bf16.mxu0 0
        %1071 = vmatmul.mubr.bf16.gmra.mrb[0].mxu0 %v353
        %v1072 = vpop.f32.mrb[0].mxu0
        %v1073 = vadd.f32 %v980, %v1072
        %v1074 = vpop.f32.mrb[0].mxu0
        %v1075 = vadd.f32 %v982, %v1074
        %v1076 = vpop.f32.mrb[0].mxu0
        %v1077 = vadd.f32 %v984, %v1076
        %v1078 = vpop.f32.mrb[0].mxu0
        %v1079 = vadd.f32 %v986, %v1078
        %1080 = vmatprep.mubr.bf16.mxu0 0
        %1081 = vmatmul.mubr.bf16.gmra.mrb[0].mxu0 %v356
        %v1082 = vpop.f32.mrb[0].mxu0
        %v1083 = vadd.f32 %v990, %v1082
        %v1084 = vpop.f32.mrb[0].mxu0
        %v1085 = vadd.f32 %v992, %v1084
        %v1086 = vpop.f32.mrb[0].mxu0
        %v1087 = vadd.f32 %v994, %v1086
        %v1088 = vpop.f32.mrb[0].mxu0
        %v1089 = vadd.f32 %v996, %v1088
        %1090 = vmatprep.mubr.bf16.mxu0 0
        %1091 = vmatmul.mubr.bf16.gmra.mrb[0].mxu0 %v359
        %v1092 = vpop.f32.mrb[0].mxu0
        %v1093 = vadd.f32 %v1000, %v1092
        %v1094 = vpop.f32.mrb[0].mxu0
        %v1095 = vadd.f32 %v1002, %v1094
        %v1096 = vpop.f32.mrb[0].mxu0
        %v1097 = vadd.f32 %v1004, %v1096
        %v1098 = vpop.f32.mrb[0].mxu0
        %v1099 = vadd.f32 %v1006, %v1098
        %1100 = vmatprep.mubr.bf16.mxu0 0
        %1101 = vmatmul.mubr.bf16.gmra.mrb[0].mxu0 %v362
        %v1102 = vpop.f32.mrb[0].mxu0
        %v1103 = vadd.f32 %v1010, %v1102
        %v1104 = vpop.f32.mrb[0].mxu0
        %v1105 = vadd.f32 %v1012, %v1104
        %v1106 = vpop.f32.mrb[0].mxu0
        %v1107 = vadd.f32 %v1014, %v1106
        %v1108 = vpop.f32.mrb[0].mxu0
        %v1109 = vadd.f32 %v1016, %v1108
        %1110 = vmatprep.mubr.bf16.mxu0 0
        %1111 = vmatmul.mubr.bf16.gmra.mrb[0].mxu0 %v365
        %v1112 = vpop.f32.mrb[0].mxu0
        %v1113 = vadd.f32 %v1020, %v1112
        %v1114 = vpop.f32.mrb[0].mxu0
        %v1115 = vadd.f32 %v1022, %v1114
        %v1116 = vpop.f32.mrb[0].mxu0
        %v1117 = vadd.f32 %v1024, %v1116
        %v1118 = vpop.f32.mrb[0].mxu0
        %v1119 = vadd.f32 %v1026, %v1118
        %1120 = vmatprep.mubr.bf16.mxu0 0
        %1121 = vmatmul.mubr.bf16.gmra.mrb[0].mxu0 %v368
        %v1122 = vpop.f32.mrb[0].mxu0
        %v1123 = vadd.f32 %v1030, %v1122
        %v1124 = vpop.f32.mrb[0].mxu0
        %v1125 = vadd.f32 %v1032, %v1124
        %v1126 = vpop.f32.mrb[0].mxu0
        %v1127 = vadd.f32 %v1034, %v1126
        %v1128 = vpop.f32.mrb[0].mxu0
        %v1129 = vadd.f32 %v1036, %v1128
        %1130 = vdwg.mxu0
        %1131 = vmatprep.subr.bf16.mxu0 %v756
        %1132 = vmatpush1.bf16.msra.mxu0 %v755
        %1133 = vmatprep.subr.bf16.mxu0 %v760
        %1134 = vmatpush1.bf16.msra.mxu0 %v759
        %1135 = vmatprep.subr.bf16.mxu0 %v764
        %1136 = vmatpush1.bf16.msra.mxu0 %v763
        %1137 = vmatprep.subr.bf16.mxu0 %v768
        %1138 = vmatpush1.bf16.msra.mxu0 %v767
        %1139 = vmatprep.subr.bf16.mxu0 %v772
        %1140 = vmatpush1.bf16.msra.mxu0 %v771
        %1141 = vmatprep.subr.bf16.mxu0 %v776
        %1142 = vmatpush1.bf16.msra.mxu0 %v775
        %1143 = vmatprep.subr.bf16.mxu0 %v780
        %1144 = vmatpush1.bf16.msra.mxu0 %v779
        %1145 = vmatprep.subr.bf16.mxu0 %v784
        %1146 = vmatpush1.bf16.msra.mxu0 %v783
        %1147 = vmatprep.subr.bf16.mxu0 %v788
        %1148 = vmatpush1.bf16.msra.mxu0 %v787
        %1149 = vmatprep.subr.bf16.mxu0 %v792
        %1150 = vmatpush1.bf16.msra.mxu0 %v791
        %1151 = vmatprep.subr.bf16.mxu0 %v796
        %1152 = vmatpush1.bf16.msra.mxu0 %v795
        %1153 = vmatprep.subr.bf16.mxu0 %v800
        %1154 = vmatpush1.bf16.msra.mxu0 %v799
        %1155 = vmatprep.subr.bf16.mxu0 %v804
        %1156 = vmatpush1.bf16.msra.mxu0 %v803
        %1157 = vmatprep.subr.bf16.mxu0 %v808
        %1158 = vmatpush1.bf16.msra.mxu0 %v807
        %1159 = vmatprep.subr.bf16.mxu0 %v812
        %1160 = vmatpush1.bf16.msra.mxu0 %v811
        %1161 = vmatprep.subr.bf16.mxu0 %v816
        %1162 = vmatpush1.bf16.msra.mxu0 %v815
        %1163 = vmatprep.mubr.bf16.mxu0 %v352
        %1164 = vmatmul.mubr.bf16.gmra.mrb[0].mxu0 %v351
        %v1165 = vpop.f32.mrb[0].mxu0
        %v1166 = vadd.f32 0.0, %v1165
        %v1167 = vpop.f32.mrb[0].mxu0
        %v1168 = vadd.f32 0.0, %v1167
        %v1169 = vpop.f32.mrb[0].mxu0
        %v1170 = vadd.f32 0.0, %v1169
        %v1171 = vpop.f32.mrb[0].mxu0
        %v1172 = vadd.f32 0.0, %v1171
        %1173 = vmatprep.mubr.bf16.mxu0 %v355
        %1174 = vmatmul.mubr.bf16.gmra.mrb[0].mxu0 %v354
        %v1175 = vpop.f32.mrb[0].mxu0
        %v1176 = vadd.f32 0.0, %v1175
        %v1177 = vpop.f32.mrb[0].mxu0
        %v1178 = vadd.f32 0.0, %v1177
        %v1179 = vpop.f32.mrb[0].mxu0
        %v1180 = vadd.f32 0.0, %v1179
        %v1181 = vpop.f32.mrb[0].mxu0
        %v1182 = vadd.f32 0.0, %v1181
        %1183 = vmatprep.mubr.bf16.mxu0 %v358
        %1184 = vmatmul.mubr.bf16.gmra.mrb[0].mxu0 %v357
        %v1185 = vpop.f32.mrb[0].mxu0
        %v1186 = vadd.f32 0.0, %v1185
        %v1187 = vpop.f32.mrb[0].mxu0
        %v1188 = vadd.f32 0.0, %v1187
        %v1189 = vpop.f32.mrb[0].mxu0
        %v1190 = vadd.f32 0.0, %v1189
        %v1191 = vpop.f32.mrb[0].mxu0
        %v1192 = vadd.f32 0.0, %v1191
        %1193 = vmatprep.mubr.bf16.mxu0 %v361
        %1194 = vmatmul.mubr.bf16.gmra.mrb[0].mxu0 %v360
        %v1195 = vpop.f32.mrb[0].mxu0
        %v1196 = vadd.f32 0.0, %v1195
        %v1197 = vpop.f32.mrb[0].mxu0
        %v1198 = vadd.f32 0.0, %v1197
        %v1199 = vpop.f32.mrb[0].mxu0
        %v1200 = vadd.f32 0.0, %v1199
        %v1201 = vpop.f32.mrb[0].mxu0
        %v1202 = vadd.f32 0.0, %v1201
        %1203 = vmatprep.mubr.bf16.mxu0 %v364
        %1204 = vmatmul.mubr.bf16.gmra.mrb[0].mxu0 %v363
        %v1205 = vpop.f32.mrb[0].mxu0
        %v1206 = vadd.f32 0.0, %v1205
        %v1207 = vpop.f32.mrb[0].mxu0
        %v1208 = vadd.f32 0.0, %v1207
        %v1209 = vpop.f32.mrb[0].mxu0
        %v1210 = vadd.f32 0.0, %v1209
        %v1211 = vpop.f32.mrb[0].mxu0
        %v1212 = vadd.f32 0.0, %v1211
        %1213 = vmatprep.mubr.bf16.mxu0 %v367
        %1214 = vmatmul.mubr.bf16.gmra.mrb[0].mxu0 %v366
        %v1215 = vpop.f32.mrb[0].mxu0
        %v1216 = vadd.f32 0.0, %v1215
        %v1217 = vpop.f32.mrb[0].mxu0
        %v1218 = vadd.f32 0.0, %v1217
        %v1219 = vpop.f32.mrb[0].mxu0
        %v1220 = vadd.f32 0.0, %v1219
        %v1221 = vpop.f32.mrb[0].mxu0
        %v1222 = vadd.f32 0.0, %v1221
        %1223 = vdwg.mxu0
        %1224 = vmatprep.subr.bf16.mxu0 %v820
        %1225 = vmatpush1.bf16.msra.mxu0 %v819
        %1226 = vmatprep.subr.bf16.mxu0 %v824
        %1227 = vmatpush1.bf16.msra.mxu0 %v823
        %1228 = vmatprep.subr.bf16.mxu0 %v828
        %1229 = vmatpush1.bf16.msra.mxu0 %v827
        %1230 = vmatprep.subr.bf16.mxu0 %v832
        %1231 = vmatpush1.bf16.msra.mxu0 %v831
        %1232 = vmatprep.subr.bf16.mxu0 %v836
        %1233 = vmatpush1.bf16.msra.mxu0 %v835
        %1234 = vmatprep.subr.bf16.mxu0 %v840
        %1235 = vmatpush1.bf16.msra.mxu0 %v839
        %1236 = vmatprep.subr.bf16.mxu0 %v844
        %1237 = vmatpush1.bf16.msra.mxu0 %v843
        %1238 = vmatprep.subr.bf16.mxu0 %v848
        %1239 = vmatpush1.bf16.msra.mxu0 %v847
        %1240 = vmatprep.subr.bf16.mxu0 0
        %1241 = vmatpush1.bf16.msra.mxu0 0
        %1242 = vmatprep.subr.bf16.mxu0 0
        %1243 = vmatpush1.bf16.msra.mxu0 0
        %1244 = vmatprep.subr.bf16.mxu0 0
        %1245 = vmatpush1.bf16.msra.mxu0 0
        %1246 = vmatprep.subr.bf16.mxu0 0
        %1247 = vmatpush1.bf16.msra.mxu0 0
        %1248 = vmatprep.subr.bf16.mxu0 0
        %1249 = vmatpush1.bf16.msra.mxu0 0
        %1250 = vmatprep.subr.bf16.mxu0 0
        %1251 = vmatpush1.bf16.msra.mxu0 0
        %1252 = vmatprep.subr.bf16.mxu0 0
        %1253 = vmatpush1.bf16.msra.mxu0 0
        %1254 = vmatprep.subr.bf16.mxu0 0
        %1255 = vmatpush1.bf16.msra.mxu0 0
        %1256 = vmatprep.mubr.bf16.mxu0 0
        %1257 = vmatmul.mubr.bf16.gmra.mrb[0].mxu0 %v353
        %v1258 = vpop.f32.mrb[0].mxu0
        %v1259 = vadd.f32 %v1166, %v1258
        %v1260 = vpop.f32.mrb[0].mxu0
        %v1261 = vadd.f32 %v1168, %v1260
        %v1262 = vpop.f32.mrb[0].mxu0
        %v1263 = vadd.f32 %v1170, %v1262
        %v1264 = vpop.f32.mrb[0].mxu0
        %v1265 = vadd.f32 %v1172, %v1264
        %1266 = vmatprep.mubr.bf16.mxu0 0
        %1267 = vmatmul.mubr.bf16.gmra.mrb[0].mxu0 %v356
        %v1268 = vpop.f32.mrb[0].mxu0
        %v1269 = vadd.f32 %v1176, %v1268
        %v1270 = vpop.f32.mrb[0].mxu0
        %v1271 = vadd.f32 %v1178, %v1270
        %v1272 = vpop.f32.mrb[0].mxu0
        %v1273 = vadd.f32 %v1180, %v1272
        %v1274 = vpop.f32.mrb[0].mxu0
        %v1275 = vadd.f32 %v1182, %v1274
        %1276 = vmatprep.mubr.bf16.mxu0 0
        %1277 = vmatmul.mubr.bf16.gmra.mrb[0].mxu0 %v359
        %v1278 = vpop.f32.mrb[0].mxu0
        %v1279 = vadd.f32 %v1186, %v1278
        %v1280 = vpop.f32.mrb[0].mxu0
        %v1281 = vadd.f32 %v1188, %v1280
        %v1282 = vpop.f32.mrb[0].mxu0
        %v1283 = vadd.f32 %v1190, %v1282
        %v1284 = vpop.f32.mrb[0].mxu0
        %v1285 = vadd.f32 %v1192, %v1284
        %1286 = vmatprep.mubr.bf16.mxu0 0
        %1287 = vmatmul.mubr.bf16.gmra.mrb[0].mxu0 %v362
        %v1288 = vpop.f32.mrb[0].mxu0
        %v1289 = vadd.f32 %v1196, %v1288
        %v1290 = vpop.f32.mrb[0].mxu0
        %v1291 = vadd.f32 %v1198, %v1290
        %v1292 = vpop.f32.mrb[0].mxu0
        %v1293 = vadd.f32 %v1200, %v1292
        %v1294 = vpop.f32.mrb[0].mxu0
        %v1295 = vadd.f32 %v1202, %v1294
        %1296 = vmatprep.mubr.bf16.mxu0 0
        %1297 = vmatmul.mubr.bf16.gmra.mrb[0].mxu0 %v365
        %v1298 = vpop.f32.mrb[0].mxu0
        %v1299 = vadd.f32 %v1206, %v1298
        %v1300 = vpop.f32.mrb[0].mxu0
        %v1301 = vadd.f32 %v1208, %v1300
        %v1302 = vpop.f32.mrb[0].mxu0
        %v1303 = vadd.f32 %v1210, %v1302
        %v1304 = vpop.f32.mrb[0].mxu0
        %v1305 = vadd.f32 %v1212, %v1304
        %1306 = vmatprep.mubr.bf16.mxu0 0
        %1307 = vmatmul.mubr.bf16.gmra.mrb[0].mxu0 %v368
        %v1308 = vpop.f32.mrb[0].mxu0
        %v1309 = vadd.f32 %v1216, %v1308
        %v1310 = vpop.f32.mrb[0].mxu0
        %v1311 = vadd.f32 %v1218, %v1310
        %v1312 = vpop.f32.mrb[0].mxu0
        %v1313 = vadd.f32 %v1220, %v1312
        %v1314 = vpop.f32.mrb[0].mxu0
        %v1315 = vadd.f32 %v1222, %v1314
        %1316 = vdwg.mxu0
        %p1317 = scmp.eq.s32.totalorder %s23, 0
        // Predicated region
        $region57: #{bert_lstm_capsule_head.1} parent=43 // pred_check
          %p1318 = pneg %p1317
        $region58: #{bert_lstm_capsule_head.1} parent=43 // pred_check_branch
          %1320 = sbr.rel (%p1318) target = $region60
        $region59: #{bert_lstm_capsule_head.1} parent=43 // pred_region
          %v1321 = vld [vmem:[%s3] sm:$0xf]
          %v1323 = vlaneseq
          %v1324 = vshrl.u32 %v1323, 7
          %v1325 = vsub.s32 0, %v1324
          %v1326 = vrot.slane %v1321, %v1325
          %v1327 = vlaneseq
          %v1328 = vshrl.u32 %v1327, 7
          %v1329 = vsub.s32 1, %v1328
          %v1330 = vrot.slane %v1321, %v1329
          %v1331 = vlaneseq
          %v1332 = vshrl.u32 %v1331, 7
          %v1333 = vsub.s32 2, %v1332
          %v1334 = vrot.slane %v1321, %v1333
          %v1335 = vlaneseq
          %v1336 = vshrl.u32 %v1335, 7
          %v1337 = vsub.s32 3, %v1336
          %v1338 = vrot.slane %v1321, %v1337
          %v1343 = vadd.f32 %v1073, %v1326
          %v1344 = vadd.f32 %v1075, %v1330
          %v1345 = vadd.f32 %v1259, %v1334
          %v1346 = vadd.f32 %v1261, %v1338
          %v1347 = vadd.f32 %v1077, %v1326
          %v1348 = vadd.f32 %v1079, %v1330
          %v1349 = vadd.f32 %v1263, %v1334
          %v1350 = vadd.f32 %v1265, %v1338
          %v1351 = vadd.f32 %v1083, %v1326
          %v1352 = vadd.f32 %v1085, %v1330
          %v1353 = vadd.f32 %v1269, %v1334
          %v1354 = vadd.f32 %v1271, %v1338
          %v1355 = vadd.f32 %v1087, %v1326
          %v1356 = vadd.f32 %v1089, %v1330
          %v1357 = vadd.f32 %v1273, %v1334
          %v1358 = vadd.f32 %v1275, %v1338
          %v1359 = vadd.f32 %v1093, %v1326
          %v1360 = vadd.f32 %v1095, %v1330
          %v1361 = vadd.f32 %v1279, %v1334
          %v1362 = vadd.f32 %v1281, %v1338
          %v1363 = vadd.f32 %v1097, %v1326
          %v1364 = vadd.f32 %v1099, %v1330
          %v1365 = vadd.f32 %v1283, %v1334
          %v1366 = vadd.f32 %v1285, %v1338
          %v1367 = vadd.f32 %v1103, %v1326
          %v1368 = vadd.f32 %v1105, %v1330
          %v1369 = vadd.f32 %v1289, %v1334
          %v1370 = vadd.f32 %v1291, %v1338
          %v1371 = vadd.f32 %v1107, %v1326
          %v1372 = vadd.f32 %v1109, %v1330
          %v1373 = vadd.f32 %v1293, %v1334
          %v1374 = vadd.f32 %v1295, %v1338
          %v1375 = vadd.f32 %v1113, %v1326
          %v1376 = vadd.f32 %v1115, %v1330
          %v1377 = vadd.f32 %v1299, %v1334
          %v1378 = vadd.f32 %v1301, %v1338
          %v1379 = vadd.f32 %v1117, %v1326
          %v1380 = vadd.f32 %v1119, %v1330
          %v1381 = vadd.f32 %v1303, %v1334
          %v1382 = vadd.f32 %v1305, %v1338
          %v1383 = vadd.f32 %v1123, %v1326
          %v1384 = vadd.f32 %v1125, %v1330
          %v1385 = vadd.f32 %v1309, %v1334
          %v1386 = vadd.f32 %v1311, %v1338
          %v1387 = vadd.f32 %v1127, %v1326
          %v1388 = vadd.f32 %v1129, %v1330
          %v1389 = vadd.f32 %v1313, %v1334
          %v1390 = vadd.f32 %v1315, %v1338
          %1391 = vst [vmem:[#allocation2] sm:$0xff] %v1343
          %1392 = vst [vmem:[#allocation2 + $0x8] sm:$0xff] %v1344
          %1393 = vst [vmem:[#allocation2 + $0x10] sm:$0xff] %v1345
          %1394 = vst [vmem:[#allocation2 + $0x18] sm:$0xff] %v1346
          %1395 = vst [vmem:[#allocation2 + $0x20] sm:$0xff] %v1347
          %1396 = vst [vmem:[#allocation2 + $0x28] sm:$0xff] %v1348
          %1397 = vst [vmem:[#allocation2 + $0x30] sm:$0xff] %v1349
          %1398 = vst [vmem:[#allocation2 + $0x38] sm:$0xff] %v1350
          %1399 = vst [vmem:[#allocation2 + $0x40] sm:$0xff] %v1351
          %1400 = vst [vmem:[#allocation2 + $0x48] sm:$0xff] %v1352
          %1401 = vst [vmem:[#allocation2 + $0x50] sm:$0xff] %v1353
          %1402 = vst [vmem:[#allocation2 + $0x58] sm:$0xff] %v1354
          %1403 = vst [vmem:[#allocation2 + $0x60] sm:$0xff] %v1355
          %1404 = vst [vmem:[#allocation2 + $0x68] sm:$0xff] %v1356
          %1405 = vst [vmem:[#allocation2 + $0x70] sm:$0xff] %v1357
          %1406 = vst [vmem:[#allocation2 + $0x78] sm:$0xff] %v1358
          %1407 = vst [vmem:[#allocation2 + $0x80] sm:$0xff] %v1359
          %1408 = vst [vmem:[#allocation2 + $0x88] sm:$0xff] %v1360
          %1409 = vst [vmem:[#allocation2 + $0x90] sm:$0xff] %v1361
          %1410 = vst [vmem:[#allocation2 + $0x98] sm:$0xff] %v1362
          %1411 = vst [vmem:[#allocation2 + $0xa0] sm:$0xff] %v1363
          %1412 = vst [vmem:[#allocation2 + $0xa8] sm:$0xff] %v1364
          %1413 = vst [vmem:[#allocation2 + $0xb0] sm:$0xff] %v1365
          %1414 = vst [vmem:[#allocation2 + $0xb8] sm:$0xff] %v1366
          %1415 = vst [vmem:[#allocation2 + $0xc0] sm:$0xff] %v1367
          %1416 = vst [vmem:[#allocation2 + $0xc8] sm:$0xff] %v1368
          %1417 = vst [vmem:[#allocation2 + $0xd0] sm:$0xff] %v1369
          %1418 = vst [vmem:[#allocation2 + $0xd8] sm:$0xff] %v1370
          %1419 = vst [vmem:[#allocation2 + $0xe0] sm:$0xff] %v1371
          %1420 = vst [vmem:[#allocation2 + $0xe8] sm:$0xff] %v1372
          %1421 = vst [vmem:[#allocation2 + $0xf0] sm:$0xff] %v1373
          %1422 = vst [vmem:[#allocation2 + $0xf8] sm:$0xff] %v1374
          %1423 = vst [vmem:[#allocation2 + $0x100] sm:$0xff] %v1375
          %1424 = vst [vmem:[#allocation2 + $0x108] sm:$0xff] %v1376
          %1425 = vst [vmem:[#allocation2 + $0x110] sm:$0xff] %v1377
          %1426 = vst [vmem:[#allocation2 + $0x118] sm:$0xff] %v1378
          %1427 = vst [vmem:[#allocation2 + $0x120] sm:$0xff] %v1379
          %1428 = vst [vmem:[#allocation2 + $0x128] sm:$0xff] %v1380
          %1429 = vst [vmem:[#allocation2 + $0x130] sm:$0xff] %v1381
          %1430 = vst [vmem:[#allocation2 + $0x138] sm:$0xff] %v1382
          %1431 = vst [vmem:[#allocation2 + $0x140] sm:$0xff] %v1383
          %1432 = vst [vmem:[#allocation2 + $0x148] sm:$0xff] %v1384
          %1433 = vst [vmem:[#allocation2 + $0x150] sm:$0xff] %v1385
          %1434 = vst [vmem:[#allocation2 + $0x158] sm:$0xff] %v1386
          %1435 = vst [vmem:[#allocation2 + $0x160] sm:$0xff] %v1387
          %1436 = vst [vmem:[#allocation2 + $0x168] sm:$0xff] %v1388
          %1437 = vst [vmem:[#allocation2 + $0x170] sm:$0xff] %v1389
          %1438 = vst [vmem:[#allocation2 + $0x178] sm:$0xff] %v1390
        $region60: #{bert_lstm_capsule_head.1} parent=43 // pred_fallthru
          _
        %p1439 = scmp.ne.s32.totalorder %s23, 0
        // Predicated region
        $region61: #{bert_lstm_capsule_head.1} parent=43 // pred_check
          %p1440 = pneg %p1439
        $region62: #{bert_lstm_capsule_head.1} parent=43 // pred_check_branch
          %1442 = sbr.rel (%p1440) target = $region64
        $region63: #{bert_lstm_capsule_head.1} parent=43 // pred_region
          %v1443 = vld [vmem:[#allocation2] sm:$0xff]
          %v1444 = vld [vmem:[#allocation2 + $0x8] sm:$0xff]
          %v1445 = vld [vmem:[#allocation2 + $0x10] sm:$0xff]
          %v1446 = vld [vmem:[#allocation2 + $0x18] sm:$0xff]
          %v1447 = vld [vmem:[#allocation2 + $0x20] sm:$0xff]
          %v1448 = vld [vmem:[#allocation2 + $0x28] sm:$0xff]
          %v1449 = vld [vmem:[#allocation2 + $0x30] sm:$0xff]
          %v1450 = vld [vmem:[#allocation2 + $0x38] sm:$0xff]
          %v1451 = vld [vmem:[#allocation2 + $0x40] sm:$0xff]
          %v1452 = vld [vmem:[#allocation2 + $0x48] sm:$0xff]
          %v1453 = vld [vmem:[#allocation2 + $0x50] sm:$0xff]
          %v1454 = vld [vmem:[#allocation2 + $0x58] sm:$0xff]
          %v1455 = vld [vmem:[#allocation2 + $0x60] sm:$0xff]
          %v1456 = vld [vmem:[#allocation2 + $0x68] sm:$0xff]
          %v1457 = vld [vmem:[#allocation2 + $0x70] sm:$0xff]
          %v1458 = vld [vmem:[#allocation2 + $0x78] sm:$0xff]
          %v1459 = vld [vmem:[#allocation2 + $0x80] sm:$0xff]
          %v1460 = vld [vmem:[#allocation2 + $0x88] sm:$0xff]
          %v1461 = vld [vmem:[#allocation2 + $0x90] sm:$0xff]
          %v1462 = vld [vmem:[#allocation2 + $0x98] sm:$0xff]
          %v1463 = vld [vmem:[#allocation2 + $0xa0] sm:$0xff]
          %v1464 = vld [vmem:[#allocation2 + $0xa8] sm:$0xff]
          %v1465 = vld [vmem:[#allocation2 + $0xb0] sm:$0xff]
          %v1466 = vld [vmem:[#allocation2 + $0xb8] sm:$0xff]
          %v1467 = vld [vmem:[#allocation2 + $0xc0] sm:$0xff]
          %v1468 = vld [vmem:[#allocation2 + $0xc8] sm:$0xff]
          %v1469 = vld [vmem:[#allocation2 + $0xd0] sm:$0xff]
          %v1470 = vld [vmem:[#allocation2 + $0xd8] sm:$0xff]
          %v1471 = vld [vmem:[#allocation2 + $0xe0] sm:$0xff]
          %v1472 = vld [vmem:[#allocation2 + $0xe8] sm:$0xff]
          %v1473 = vld [vmem:[#allocation2 + $0xf0] sm:$0xff]
          %v1474 = vld [vmem:[#allocation2 + $0xf8] sm:$0xff]
          %v1475 = vld [vmem:[#allocation2 + $0x100] sm:$0xff]
          %v1476 = vld [vmem:[#allocation2 + $0x108] sm:$0xff]
          %v1477 = vld [vmem:[#allocation2 + $0x110] sm:$0xff]
          %v1478 = vld [vmem:[#allocation2 + $0x118] sm:$0xff]
          %v1479 = vld [vmem:[#allocation2 + $0x120] sm:$0xff]
          %v1480 = vld [vmem:[#allocation2 + $0x128] sm:$0xff]
          %v1481 = vld [vmem:[#allocation2 + $0x130] sm:$0xff]
          %v1482 = vld [vmem:[#allocation2 + $0x138] sm:$0xff]
          %v1483 = vld [vmem:[#allocation2 + $0x140] sm:$0xff]
          %v1484 = vld [vmem:[#allocation2 + $0x148] sm:$0xff]
          %v1485 = vld [vmem:[#allocation2 + $0x150] sm:$0xff]
          %v1486 = vld [vmem:[#allocation2 + $0x158] sm:$0xff]
          %v1487 = vld [vmem:[#allocation2 + $0x160] sm:$0xff]
          %v1488 = vld [vmem:[#allocation2 + $0x168] sm:$0xff]
          %v1489 = vld [vmem:[#allocation2 + $0x170] sm:$0xff]
          %v1490 = vld [vmem:[#allocation2 + $0x178] sm:$0xff]
          %v1491 = vadd.f32 %v1443, %v1073
          %v1492 = vadd.f32 %v1444, %v1075
          %v1493 = vadd.f32 %v1445, %v1259
          %v1494 = vadd.f32 %v1446, %v1261
          %v1495 = vadd.f32 %v1447, %v1077
          %v1496 = vadd.f32 %v1448, %v1079
          %v1497 = vadd.f32 %v1449, %v1263
          %v1498 = vadd.f32 %v1450, %v1265
          %v1499 = vadd.f32 %v1451, %v1083
          %v1500 = vadd.f32 %v1452, %v1085
          %v1501 = vadd.f32 %v1453, %v1269
          %v1502 = vadd.f32 %v1454, %v1271
          %v1503 = vadd.f32 %v1455, %v1087
          %v1504 = vadd.f32 %v1456, %v1089
          %v1505 = vadd.f32 %v1457, %v1273
          %v1506 = vadd.f32 %v1458, %v1275
          %v1507 = vadd.f32 %v1459, %v1093
          %v1508 = vadd.f32 %v1460, %v1095
          %v1509 = vadd.f32 %v1461, %v1279
          %v1510 = vadd.f32 %v1462, %v1281
          %v1511 = vadd.f32 %v1463, %v1097
          %v1512 = vadd.f32 %v1464, %v1099
          %v1513 = vadd.f32 %v1465, %v1283
          %v1514 = vadd.f32 %v1466, %v1285
          %v1515 = vadd.f32 %v1467, %v1103
          %v1516 = vadd.f32 %v1468, %v1105
          %v1517 = vadd.f32 %v1469, %v1289
          %v1518 = vadd.f32 %v1470, %v1291
          %v1519 = vadd.f32 %v1471, %v1107
          %v1520 = vadd.f32 %v1472, %v1109
          %v1521 = vadd.f32 %v1473, %v1293
          %v1522 = vadd.f32 %v1474, %v1295
          %v1523 = vadd.f32 %v1475, %v1113
          %v1524 = vadd.f32 %v1476, %v1115
          %v1525 = vadd.f32 %v1477, %v1299
          %v1526 = vadd.f32 %v1478, %v1301
          %v1527 = vadd.f32 %v1479, %v1117
          %v1528 = vadd.f32 %v1480, %v1119
          %v1529 = vadd.f32 %v1481, %v1303
          %v1530 = vadd.f32 %v1482, %v1305
          %v1531 = vadd.f32 %v1483, %v1123
          %v1532 = vadd.f32 %v1484, %v1125
          %v1533 = vadd.f32 %v1485, %v1309
          %v1534 = vadd.f32 %v1486, %v1311
          %v1535 = vadd.f32 %v1487, %v1127
          %v1536 = vadd.f32 %v1488, %v1129
          %v1537 = vadd.f32 %v1489, %v1313
          %v1538 = vadd.f32 %v1490, %v1315
          %1539 = vst [vmem:[#allocation2] sm:$0xff] %v1491
          %1540 = vst [vmem:[#allocation2 + $0x8] sm:$0xff] %v1492
          %1541 = vst [vmem:[#allocation2 + $0x10] sm:$0xff] %v1493
          %1542 = vst [vmem:[#allocation2 + $0x18] sm:$0xff] %v1494
          %1543 = vst [vmem:[#allocation2 + $0x20] sm:$0xff] %v1495
          %1544 = vst [vmem:[#allocation2 + $0x28] sm:$0xff] %v1496
          %1545 = vst [vmem:[#allocation2 + $0x30] sm:$0xff] %v1497
          %1546 = vst [vmem:[#allocation2 + $0x38] sm:$0xff] %v1498
          %1547 = vst [vmem:[#allocation2 + $0x40] sm:$0xff] %v1499
          %1548 = vst [vmem:[#allocation2 + $0x48] sm:$0xff] %v1500
          %1549 = vst [vmem:[#allocation2 + $0x50] sm:$0xff] %v1501
          %1550 = vst [vmem:[#allocation2 + $0x58] sm:$0xff] %v1502
          %1551 = vst [vmem:[#allocation2 + $0x60] sm:$0xff] %v1503
          %1552 = vst [vmem:[#allocation2 + $0x68] sm:$0xff] %v1504
          %1553 = vst [vmem:[#allocation2 + $0x70] sm:$0xff] %v1505
          %1554 = vst [vmem:[#allocation2 + $0x78] sm:$0xff] %v1506
          %1555 = vst [vmem:[#allocation2 + $0x80] sm:$0xff] %v1507
          %1556 = vst [vmem:[#allocation2 + $0x88] sm:$0xff] %v1508
          %1557 = vst [vmem:[#allocation2 + $0x90] sm:$0xff] %v1509
          %1558 = vst [vmem:[#allocation2 + $0x98] sm:$0xff] %v1510
          %1559 = vst [vmem:[#allocation2 + $0xa0] sm:$0xff] %v1511
          %1560 = vst [vmem:[#allocation2 + $0xa8] sm:$0xff] %v1512
          %1561 = vst [vmem:[#allocation2 + $0xb0] sm:$0xff] %v1513
          %1562 = vst [vmem:[#allocation2 + $0xb8] sm:$0xff] %v1514
          %1563 = vst [vmem:[#allocation2 + $0xc0] sm:$0xff] %v1515
          %1564 = vst [vmem:[#allocation2 + $0xc8] sm:$0xff] %v1516
          %1565 = vst [vmem:[#allocation2 + $0xd0] sm:$0xff] %v1517
          %1566 = vst [vmem:[#allocation2 + $0xd8] sm:$0xff] %v1518
          %1567 = vst [vmem:[#allocation2 + $0xe0] sm:$0xff] %v1519
          %1568 = vst [vmem:[#allocation2 + $0xe8] sm:$0xff] %v1520
          %1569 = vst [vmem:[#allocation2 + $0xf0] sm:$0xff] %v1521
          %1570 = vst [vmem:[#allocation2 + $0xf8] sm:$0xff] %v1522
          %1571 = vst [vmem:[#allocation2 + $0x100] sm:$0xff] %v1523
          %1572 = vst [vmem:[#allocation2 + $0x108] sm:$0xff] %v1524
          %1573 = vst [vmem:[#allocation2 + $0x110] sm:$0xff] %v1525
          %1574 = vst [vmem:[#allocation2 + $0x118] sm:$0xff] %v1526
          %1575 = vst [vmem:[#allocation2 + $0x120] sm:$0xff] %v1527
          %1576 = vst [vmem:[#allocation2 + $0x128] sm:$0xff] %v1528
          %1577 = vst [vmem:[#allocation2 + $0x130] sm:$0xff] %v1529
          %1578 = vst [vmem:[#allocation2 + $0x138] sm:$0xff] %v1530
          %1579 = vst [vmem:[#allocation2 + $0x140] sm:$0xff] %v1531
          %1580 = vst [vmem:[#allocation2 + $0x148] sm:$0xff] %v1532
          %1581 = vst [vmem:[#allocation2 + $0x150] sm:$0xff] %v1533
          %1582 = vst [vmem:[#allocation2 + $0x158] sm:$0xff] %v1534
          %1583 = vst [vmem:[#allocation2 + $0x160] sm:$0xff] %v1535
          %1584 = vst [vmem:[#allocation2 + $0x168] sm:$0xff] %v1536
          %1585 = vst [vmem:[#allocation2 + $0x170] sm:$0xff] %v1537
          %1586 = vst [vmem:[#allocation2 + $0x178] sm:$0xff] %v1538
        $region64: #{bert_lstm_capsule_head.1} parent=43 // pred_fallthru
          _
        %p1587 = scmp.eq.s32.totalorder %s23, 1
        // Predicated region
        $region65: #{bert_lstm_capsule_head.1} parent=43 // pred_check
          %p1588 = pneg %p1587
        $region66: #{bert_lstm_capsule_head.1} parent=43 // pred_check_branch
          %1590 = sbr.rel (%p1588) target = $region68
        $region67: #{bert_lstm_capsule_head.1} parent=43 // pred_region
          %v1591 = vld [vmem:[#allocation2] sm:$0xff]
          %v1592 = vld [vmem:[#allocation2 + $0x8] sm:$0xff]
          %v1593 = vld [vmem:[#allocation2 + $0x10] sm:$0xff]
          %v1594 = vld [vmem:[#allocation2 + $0x18] sm:$0xff]
          %v1595 = vld [vmem:[#allocation7] sm:$0xff]
          %v1596 = vld [vmem:[#allocation7 + $0x8] sm:$0xff]
          %v1597 = vld [vmem:[#allocation7 + $0x10] sm:$0xff]
          %v1598 = vld [vmem:[#allocation7 + $0x18] sm:$0xff]
          %v1599 = vld [vmem:[#allocation7 + $0x20] sm:$0xff]
          %v1600 = vld [vmem:[#allocation7 + $0x28] sm:$0xff]
          %v1601 = vld [vmem:[#allocation7 + $0x30] sm:$0xff]
          %v1602 = vld [vmem:[#allocation7 + $0x38] sm:$0xff]
          %v1603 = vld [vmem:[#allocation7 + $0x40] sm:$0xff]
          %v1604 = vld [vmem:[#allocation7 + $0x48] sm:$0xff]
          %v1605 = vld [vmem:[#allocation7 + $0x50] sm:$0xff]
          %v1606 = vld [vmem:[#allocation7 + $0x58] sm:$0xff]
          %v1607 = vld [vmem:[#allocation7 + $0x60] sm:$0xff]
          %v1608 = vld [vmem:[#allocation7 + $0x68] sm:$0xff]
          %v1609 = vld [vmem:[#allocation7 + $0x70] sm:$0xff]
          %v1610 = vld [vmem:[#allocation7 + $0x78] sm:$0xff]
          %v1611 = vld [vmem:[#allocation7 + $0x80] sm:$0xff]
          %v1612 = vld [vmem:[#allocation7 + $0x88] sm:$0xff]
          %v1613 = vld [vmem:[#allocation7 + $0x90] sm:$0xff]
          %v1614 = vld [vmem:[#allocation7 + $0x98] sm:$0xff]
          %v1615 = vld [vmem:[#allocation7 + $0xa0] sm:$0xff]
          %v1616 = vld [vmem:[#allocation7 + $0xa8] sm:$0xff]
          %v1617 = vld [vmem:[#allocation7 + $0xb0] sm:$0xff]
          %v1618 = vld [vmem:[#allocation7 + $0xb8] sm:$0xff]
          %v1619 = vld [vmem:[#allocation7 + $0xc0] sm:$0xff]
          %v1620 = vld [vmem:[#allocation7 + $0xc8] sm:$0xff]
          %v1621 = vld [vmem:[#allocation7 + $0xd0] sm:$0xff]
          %v1622 = vld [vmem:[#allocation7 + $0xd8] sm:$0xff]
          %v1623 = vld [vmem:[#allocation7 + $0xe0] sm:$0xff]
          %v1624 = vld [vmem:[#allocation7 + $0xe8] sm:$0xff]
          %v1625 = vld [vmem:[#allocation7 + $0xf0] sm:$0xff]
          %v1626 = vld [vmem:[#allocation7 + $0xf8] sm:$0xff]
          %v1627 = vld [vmem:[#allocation7 + $0x100] sm:$0xff]
          %v1628 = vld [vmem:[#allocation7 + $0x108] sm:$0xff]
          %v1629 = vld [vmem:[#allocation7 + $0x110] sm:$0xff]
          %v1630 = vld [vmem:[#allocation7 + $0x118] sm:$0xff]
          %v1631 = vld [vmem:[#allocation7 + $0x120] sm:$0xff]
          %v1632 = vld [vmem:[#allocation7 + $0x128] sm:$0xff]
          %v1633 = vld [vmem:[#allocation7 + $0x130] sm:$0xff]
          %v1634 = vld [vmem:[#allocation7 + $0x138] sm:$0xff]
          %v1635 = vld [vmem:[#allocation7 + $0x140] sm:$0xff]
          %v1636 = vld [vmem:[#allocation7 + $0x148] sm:$0xff]
          %v1637 = vld [vmem:[#allocation7 + $0x150] sm:$0xff]
          %v1638 = vld [vmem:[#allocation7 + $0x158] sm:$0xff]
          %v1639 = vld [vmem:[#allocation7 + $0x160] sm:$0xff]
          %v1640 = vld [vmem:[#allocation7 + $0x168] sm:$0xff]
          %v1641 = vld [vmem:[#allocation7 + $0x170] sm:$0xff]
          %v1642 = vld [vmem:[#allocation7 + $0x178] sm:$0xff]
          %v1643 = vld [vmem:[#allocation7 + $0x180] sm:$0xff]
          %v1644 = vld [vmem:[#allocation7 + $0x188] sm:$0xff]
          %v1645 = vld [vmem:[#allocation7 + $0x190] sm:$0xff]
          %v1646 = vld [vmem:[#allocation7 + $0x198] sm:$0xff]
          %v1647 = vld [vmem:[#allocation7 + $0x1a0] sm:$0xff]
          %v1648 = vld [vmem:[#allocation7 + $0x1a8] sm:$0xff]
          %v1649 = vld [vmem:[#allocation7 + $0x1b0] sm:$0xff]
          %v1650 = vld [vmem:[#allocation7 + $0x1b8] sm:$0xff]
          %v1651 = vld [vmem:[#allocation7 + $0x1c0] sm:$0xff]
          %v1652 = vld [vmem:[#allocation7 + $0x1c8] sm:$0xff]
          %v1653 = vld [vmem:[#allocation7 + $0x1d0] sm:$0xff]
          %v1654 = vld [vmem:[#allocation7 + $0x1d8] sm:$0xff]
          %v1655 = vld [vmem:[#allocation7 + $0x1e0] sm:$0xff]
          %v1656 = vld [vmem:[#allocation7 + $0x1e8] sm:$0xff]
          %v1657 = vld [vmem:[#allocation7 + $0x1f0] sm:$0xff]
          %v1658 = vld [vmem:[#allocation7 + $0x1f8] sm:$0xff]
          %1659 = vmatprep.subr.mxu0 %v1596
          %1660 = vmatpush1.msra.mxu0 %v1595
          %1661 = vmatprep.subr.mxu0 %v1600
          %1662 = vmatpush1.msra.mxu0 %v1599
          %1663 = vmatprep.subr.mxu0 %v1604
          %1664 = vmatpush1.msra.mxu0 %v1603
          %1665 = vmatprep.subr.mxu0 %v1608
          %1666 = vmatpush1.msra.mxu0 %v1607
          %1667 = vmatprep.subr.mxu0 %v1612
          %1668 = vmatpush1.msra.mxu0 %v1611
          %1669 = vmatprep.subr.mxu0 %v1616
          %1670 = vmatpush1.msra.mxu0 %v1615
          %1671 = vmatprep.subr.mxu0 %v1620
          %1672 = vmatpush1.msra.mxu0 %v1619
          %1673 = vmatprep.subr.mxu0 %v1624
          %1674 = vmatpush1.msra.mxu0 %v1623
          %1675 = vmatprep.subr.mxu0 %v1628
          %1676 = vmatpush1.msra.mxu0 %v1627
          %1677 = vmatprep.subr.mxu0 %v1632
          %1678 = vmatpush1.msra.mxu0 %v1631
          %1679 = vmatprep.subr.mxu0 %v1636
          %1680 = vmatpush1.msra.mxu0 %v1635
          %1681 = vmatprep.subr.mxu0 %v1640
          %1682 = vmatpush1.msra.mxu0 %v1639
          %1683 = vmatprep.subr.mxu0 %v1644
          %1684 = vmatpush1.msra.mxu0 %v1643
          %1685 = vmatprep.subr.mxu0 %v1648
          %1686 = vmatpush1.msra.mxu0 %v1647
          %1687 = vmatprep.subr.mxu0 %v1652
          %1688 = vmatpush1.msra.mxu0 %v1651
          %1689 = vmatprep.subr.mxu0 %v1656
          %1690 = vmatpush1.msra.mxu0 %v1655
          %1691 = vmatprep.subr.mxu0 0.0
          %1692 = vmatpush1.msra.mxu0 0.0
          %1693 = vmatprep.subr.mxu0 0.0
          %1694 = vmatpush1.msra.mxu0 0.0
          %1695 = vmatprep.subr.mxu0 0.0
          %1696 = vmatpush1.msra.mxu0 0.0
          %1697 = vmatprep.subr.mxu0 0.0
          %1698 = vmatpush1.msra.mxu0 0.0
          %1699 = vmatprep.subr.mxu0 0.0
          %1700 = vmatpush1.msra.mxu0 0.0
          %1701 = vmatprep.subr.mxu0 0.0
          %1702 = vmatpush1.msra.mxu0 0.0
          %1703 = vmatprep.subr.mxu0 0.0
          %1704 = vmatpush1.msra.mxu0 0.0
          %1705 = vmatprep.subr.mxu0 0.0
          %1706 = vmatpush1.msra.mxu0 0.0
          %1707 = vmatprep.subr.mxu0 0.0
          %1708 = vmatpush1.msra.mxu0 0.0
          %1709 = vmatprep.subr.mxu0 0.0
          %1710 = vmatpush1.msra.mxu0 0.0
          %1711 = vmatprep.subr.mxu0 0.0
          %1712 = vmatpush1.msra.mxu0 0.0
          %1713 = vmatprep.subr.mxu0 0.0
          %1714 = vmatpush1.msra.mxu0 0.0
          %1715 = vmatprep.subr.mxu0 0.0
          %1716 = vmatpush1.msra.mxu0 0.0
          %1717 = vmatprep.subr.mxu0 0.0
          %1718 = vmatpush1.msra.mxu0 0.0
          %1719 = vmatprep.subr.mxu0 0.0
          %1720 = vmatpush1.msra.mxu0 0.0
          %1721 = vmatprep.subr.mxu0 0.0
          %1722 = vmatpush1.msra.mxu0 0.0
          %1723 = vmatprep.mubr.f32.mxu0 0.0
          %1724 = vmatmul.mubr.f32.gmra.mrb[0].mxu0 0.0
          %v1725 = vpop.f32.mrb[0].mxu0
          %v1726 = vadd.f32 0.0, %v1725
          %v1727 = vpop.f32.mrb[0].mxu0
          %v1728 = vadd.f32 0.0, %v1727
          %1729 = vdwg.mxu0
          %1730 = vmatprep.subr.mxu0 %v1598
          %1731 = vmatpush1.msra.mxu0 %v1597
          %1732 = vmatprep.subr.mxu0 %v1602
          %1733 = vmatpush1.msra.mxu0 %v1601
          %1734 = vmatprep.subr.mxu0 %v1606
          %1735 = vmatpush1.msra.mxu0 %v1605
          %1736 = vmatprep.subr.mxu0 %v1610
          %1737 = vmatpush1.msra.mxu0 %v1609
          %1738 = vmatprep.subr.mxu0 %v1614
          %1739 = vmatpush1.msra.mxu0 %v1613
          %1740 = vmatprep.subr.mxu0 %v1618
          %1741 = vmatpush1.msra.mxu0 %v1617
          %1742 = vmatprep.subr.mxu0 %v1622
          %1743 = vmatpush1.msra.mxu0 %v1621
          %1744 = vmatprep.subr.mxu0 %v1626
          %1745 = vmatpush1.msra.mxu0 %v1625
          %1746 = vmatprep.subr.mxu0 %v1630
          %1747 = vmatpush1.msra.mxu0 %v1629
          %1748 = vmatprep.subr.mxu0 %v1634
          %1749 = vmatpush1.msra.mxu0 %v1633
          %1750 = vmatprep.subr.mxu0 %v1638
          %1751 = vmatpush1.msra.mxu0 %v1637
          %1752 = vmatprep.subr.mxu0 %v1642
          %1753 = vmatpush1.msra.mxu0 %v1641
          %1754 = vmatprep.subr.mxu0 %v1646
          %1755 = vmatpush1.msra.mxu0 %v1645
          %1756 = vmatprep.subr.mxu0 %v1650
          %1757 = vmatpush1.msra.mxu0 %v1649
          %1758 = vmatprep.subr.mxu0 %v1654
          %1759 = vmatpush1.msra.mxu0 %v1653
          %1760 = vmatprep.subr.mxu0 %v1658
          %1761 = vmatpush1.msra.mxu0 %v1657
          %1762 = vmatprep.subr.mxu0 0.0
          %1763 = vmatpush1.msra.mxu0 0.0
          %1764 = vmatprep.subr.mxu0 0.0
          %1765 = vmatpush1.msra.mxu0 0.0
          %1766 = vmatprep.subr.mxu0 0.0
          %1767 = vmatpush1.msra.mxu0 0.0
          %1768 = vmatprep.subr.mxu0 0.0
          %1769 = vmatpush1.msra.mxu0 0.0
          %1770 = vmatprep.subr.mxu0 0.0
          %1771 = vmatpush1.msra.mxu0 0.0
          %1772 = vmatprep.subr.mxu0 0.0
          %1773 = vmatpush1.msra.mxu0 0.0
          %1774 = vmatprep.subr.mxu0 0.0
          %1775 = vmatpush1.msra.mxu0 0.0
          %1776 = vmatprep.subr.mxu0 0.0
          %1777 = vmatpush1.msra.mxu0 0.0
          %1778 = vmatprep.subr.mxu0 0.0
          %1779 = vmatpush1.msra.mxu0 0.0
          %1780 = vmatprep.subr.mxu0 0.0
          %1781 = vmatpush1.msra.mxu0 0.0
          %1782 = vmatprep.subr.mxu0 0.0
          %1783 = vmatpush1.msra.mxu0 0.0
          %1784 = vmatprep.subr.mxu0 0.0
          %1785 = vmatpush1.msra.mxu0 0.0
          %1786 = vmatprep.subr.mxu0 0.0
          %1787 = vmatpush1.msra.mxu0 0.0
          %1788 = vmatprep.subr.mxu0 0.0
          %1789 = vmatpush1.msra.mxu0 0.0
          %1790 = vmatprep.subr.mxu0 0.0
          %1791 = vmatpush1.msra.mxu0 0.0
          %1792 = vmatprep.subr.mxu0 0.0
          %1793 = vmatpush1.msra.mxu0 0.0
          %1794 = vmatprep.mubr.f32.mxu0 0.0
          %1795 = vmatmul.mubr.f32.gmra.mrb[0].mxu0 0.0
          %v1796 = vpop.f32.mrb[0].mxu0
          %v1797 = vadd.f32 0.0, %v1796
          %v1798 = vpop.f32.mrb[0].mxu0
          %v1799 = vadd.f32 0.0, %v1798
          %1800 = vdwg.mxu0
          %v1801 = vadd.f32 %v1591, %v1726
          %v1802 = vadd.f32 %v1592, %v1728
          %v1803 = vadd.f32 %v1593, %v1797
          %v1804 = vadd.f32 %v1594, %v1799
          %v1805 = vxor.u32 %v1801, 2147483648
          %v1806 = vmul.f32 %v1805, 1.442695
          %v1807 = vpow.pop %v1806
          %v1808 = vadd.f32 %v1807, 1.0
          %v1809 = vrcp.pop %v1808
          %v1810 = vmul.f32 1.0, %v1809
          %v1811 = vxor.u32 %v1802, 2147483648
          %v1812 = vmul.f32 %v1811, 1.442695
          %v1813 = vpow.pop %v1812
          %v1814 = vadd.f32 %v1813, 1.0
          %v1815 = vrcp.pop %v1814
          %v1816 = vmul.f32 1.0, %v1815
          %v1817 = vtanh.pop %v1803
          %v1818 = vxor.u32 %v1804, 2147483648
          %v1819 = vmul.f32 %v1818, 1.442695
          %v1820 = vpow.pop %v1819
          %v1821 = vadd.f32 %v1820, 1.0
          %v1822 = vrcp.pop %v1821
          %v1823 = vmul.f32 1.0, %v1822
          %v1824 = vmul.f32 %v1816, 0.0
          %v1825 = vmul.f32 %v1810, %v1817
          %v1826 = vadd.f32 %v1824, %v1825
          %v1827 = vtanh.pop %v1826
          %v1828 = vmul.f32 %v1823, %v1827
          %v1829 = vld [vmem:[#allocation2 + $0x20] sm:$0xff]
          %v1830 = vld [vmem:[#allocation2 + $0x28] sm:$0xff]
          %v1831 = vld [vmem:[#allocation2 + $0x30] sm:$0xff]
          %v1832 = vld [vmem:[#allocation2 + $0x38] sm:$0xff]
          %1833 = vmatprep.subr.mxu0 %v1596
          %1834 = vmatpush1.msra.mxu0 %v1595
          %1835 = vmatprep.subr.mxu0 %v1600
          %1836 = vmatpush1.msra.mxu0 %v1599
          %1837 = vmatprep.subr.mxu0 %v1604
          %1838 = vmatpush1.msra.mxu0 %v1603
          %1839 = vmatprep.subr.mxu0 %v1608
          %1840 = vmatpush1.msra.mxu0 %v1607
          %1841 = vmatprep.subr.mxu0 %v1612
          %1842 = vmatpush1.msra.mxu0 %v1611
          %1843 = vmatprep.subr.mxu0 %v1616
          %1844 = vmatpush1.msra.mxu0 %v1615
          %1845 = vmatprep.subr.mxu0 %v1620
          %1846 = vmatpush1.msra.mxu0 %v1619
          %1847 = vmatprep.subr.mxu0 %v1624
          %1848 = vmatpush1.msra.mxu0 %v1623
          %1849 = vmatprep.subr.mxu0 %v1628
          %1850 = vmatpush1.msra.mxu0 %v1627
          %1851 = vmatprep.subr.mxu0 %v1632
          %1852 = vmatpush1.msra.mxu0 %v1631
          %1853 = vmatprep.subr.mxu0 %v1636
          %1854 = vmatpush1.msra.mxu0 %v1635
          %1855 = vmatprep.subr.mxu0 %v1640
          %1856 = vmatpush1.msra.mxu0 %v1639
          %1857 = vmatprep.subr.mxu0 %v1644
          %1858 = vmatpush1.msra.mxu0 %v1643
          %1859 = vmatprep.subr.mxu0 %v1648
          %1860 = vmatpush1.msra.mxu0 %v1647
          %1861 = vmatprep.subr.mxu0 %v1652
          %1862 = vmatpush1.msra.mxu0 %v1651
          %1863 = vmatprep.subr.mxu0 %v1656
          %1864 = vmatpush1.msra.mxu0 %v1655
          %1865 = vmatprep.subr.mxu0 0.0
          %1866 = vmatpush1.msra.mxu0 0.0
          %1867 = vmatprep.subr.mxu0 0.0
          %1868 = vmatpush1.msra.mxu0 0.0
          %1869 = vmatprep.subr.mxu0 0.0
          %1870 = vmatpush1.msra.mxu0 0.0
          %1871 = vmatprep.subr.mxu0 0.0
          %1872 = vmatpush1.msra.mxu0 0.0
          %1873 = vmatprep.subr.mxu0 0.0
          %1874 = vmatpush1.msra.mxu0 0.0
          %1875 = vmatprep.subr.mxu0 0.0
          %1876 = vmatpush1.msra.mxu0 0.0
          %1877 = vmatprep.subr.mxu0 0.0
          %1878 = vmatpush1.msra.mxu0 0.0
          %1879 = vmatprep.subr.mxu0 0.0
          %1880 = vmatpush1.msra.mxu0 0.0
          %1881 = vmatprep.subr.mxu0 0.0
          %1882 = vmatpush1.msra.mxu0 0.0
          %1883 = vmatprep.subr.mxu0 0.0
          %1884 = vmatpush1.msra.mxu0 0.0
          %1885 = vmatprep.subr.mxu0 0.0
          %1886 = vmatpush1.msra.mxu0 0.0
          %1887 = vmatprep.subr.mxu0 0.0
          %1888 = vmatpush1.msra.mxu0 0.0
          %1889 = vmatprep.subr.mxu0 0.0
          %1890 = vmatpush1.msra.mxu0 0.0
          %1891 = vmatprep.subr.mxu0 0.0
          %1892 = vmatpush1.msra.mxu0 0.0
          %1893 = vmatprep.subr.mxu0 0.0
          %1894 = vmatpush1.msra.mxu0 0.0
          %1895 = vmatprep.subr.mxu0 0.0
          %1896 = vmatpush1.msra.mxu0 0.0
          %1897 = vmatprep.mubr.f32.mxu0 0.0
          %1898 = vmatmul.mubr.f32.gmra.mrb[0].mxu0 %v1828
          %v1899 = vpop.f32.mrb[0].mxu0
          %v1900 = vadd.f32 0.0, %v1899
          %v1901 = vpop.f32.mrb[0].mxu0
          %v1902 = vadd.f32 0.0, %v1901
          %1903 = vdwg.mxu0
          %1904 = vmatprep.subr.mxu0 %v1598
          %1905 = vmatpush1.msra.mxu0 %v1597
          %1906 = vmatprep.subr.mxu0 %v1602
          %1907 = vmatpush1.msra.mxu0 %v1601
          %1908 = vmatprep.subr.mxu0 %v1606
          %1909 = vmatpush1.msra.mxu0 %v1605
          %1910 = vmatprep.subr.mxu0 %v1610
          %1911 = vmatpush1.msra.mxu0 %v1609
          %1912 = vmatprep.subr.mxu0 %v1614
          %1913 = vmatpush1.msra.mxu0 %v1613
          %1914 = vmatprep.subr.mxu0 %v1618
          %1915 = vmatpush1.msra.mxu0 %v1617
          %1916 = vmatprep.subr.mxu0 %v1622
          %1917 = vmatpush1.msra.mxu0 %v1621
          %1918 = vmatprep.subr.mxu0 %v1626
          %1919 = vmatpush1.msra.mxu0 %v1625
          %1920 = vmatprep.subr.mxu0 %v1630
          %1921 = vmatpush1.msra.mxu0 %v1629
          %1922 = vmatprep.subr.mxu0 %v1634
          %1923 = vmatpush1.msra.mxu0 %v1633
          %1924 = vmatprep.subr.mxu0 %v1638
          %1925 = vmatpush1.msra.mxu0 %v1637
          %1926 = vmatprep.subr.mxu0 %v1642
          %1927 = vmatpush1.msra.mxu0 %v1641
          %1928 = vmatprep.subr.mxu0 %v1646
          %1929 = vmatpush1.msra.mxu0 %v1645
          %1930 = vmatprep.subr.mxu0 %v1650
          %1931 = vmatpush1.msra.mxu0 %v1649
          %1932 = vmatprep.subr.mxu0 %v1654
          %1933 = vmatpush1.msra.mxu0 %v1653
          %1934 = vmatprep.subr.mxu0 %v1658
          %1935 = vmatpush1.msra.mxu0 %v1657
          %1936 = vmatprep.subr.mxu0 0.0
          %1937 = vmatpush1.msra.mxu0 0.0
          %1938 = vmatprep.subr.mxu0 0.0
          %1939 = vmatpush1.msra.mxu0 0.0
          %1940 = vmatprep.subr.mxu0 0.0
          %1941 = vmatpush1.msra.mxu0 0.0
          %1942 = vmatprep.subr.mxu0 0.0
          %1943 = vmatpush1.msra.mxu0 0.0
          %1944 = vmatprep.subr.mxu0 0.0
          %1945 = vmatpush1.msra.mxu0 0.0
          %1946 = vmatprep.subr.mxu0 0.0
          %1947 = vmatpush1.msra.mxu0 0.0
          %1948 = vmatprep.subr.mxu0 0.0
          %1949 = vmatpush1.msra.mxu0 0.0
          %1950 = vmatprep.subr.mxu0 0.0
          %1951 = vmatpush1.msra.mxu0 0.0
          %1952 = vmatprep.subr.mxu0 0.0
          %1953 = vmatpush1.msra.mxu0 0.0
          %1954 = vmatprep.subr.mxu0 0.0
          %1955 = vmatpush1.msra.mxu0 0.0
          %1956 = vmatprep.subr.mxu0 0.0
          %1957 = vmatpush1.msra.mxu0 0.0
          %1958 = vmatprep.subr.mxu0 0.0
          %1959 = vmatpush1.msra.mxu0 0.0
          %1960 = vmatprep.subr.mxu0 0.0
          %1961 = vmatpush1.msra.mxu0 0.0
          %1962 = vmatprep.subr.mxu0 0.0
          %1963 = vmatpush1.msra.mxu0 0.0
          %1964 = vmatprep.subr.mxu0 0.0
          %1965 = vmatpush1.msra.mxu0 0.0
          %1966 = vmatprep.subr.mxu0 0.0
          %1967 = vmatpush1.msra.mxu0 0.0
          %1968 = vmatprep.mubr.f32.mxu0 0.0
          %1969 = vmatmul.mubr.f32.gmra.mrb[0].mxu0 %v1828
          %v1970 = vpop.f32.mrb[0].mxu0
          %v1971 = vadd.f32 0.0, %v1970
          %v1972 = vpop.f32.mrb[0].mxu0
          %v1973 = vadd.f32 0.0, %v1972
          %1974 = vdwg.mxu0
          %v1975 = vadd.f32 %v1829, %v1900
          %v1976 = vadd.f32 %v1830, %v1902
          %v1977 = vadd.f32 %v1831, %v1971
          %v1978 = vadd.f32 %v1832, %v1973
          %v1979 = vxor.u32 %v1975, 2147483648
          %v1980 = vmul.f32 %v1979, 1.442695
          %v1981 = vpow.pop %v1980
          %v1982 = vadd.f32 %v1981, 1.0
          %v1983 = vrcp.pop %v1982
          %v1984 = vmul.f32 1.0, %v1983
          %v1985 = vxor.u32 %v1976, 2147483648
          %v1986 = vmul.f32 %v1985, 1.442695
          %v1987 = vpow.pop %v1986
          %v1988 = vadd.f32 %v1987, 1.0
          %v1989 = vrcp.pop %v1988
          %v1990 = vmul.f32 1.0, %v1989
          %v1991 = vtanh.pop %v1977
          %v1992 = vxor.u32 %v1978, 2147483648
          %v1993 = vmul.f32 %v1992, 1.442695
          %v1994 = vpow.pop %v1993
          %v1995 = vadd.f32 %v1994, 1.0
          %v1996 = vrcp.pop %v1995
          %v1997 = vmul.f32 1.0, %v1996
          %v1998 = vmul.f32 %v1990, %v1826
          %v1999 = vmul.f32 %v1984, %v1991
          %v2000 = vadd.f32 %v1998, %v1999
          %v2001 = vtanh.pop %v2000
          %v2002 = vmul.f32 %v1997, %v2001
          %v2003 = vld [vmem:[#allocation2 + $0x40] sm:$0xff]
          %v2004 = vld [vmem:[#allocation2 + $0x48] sm:$0xff]
          %v2005 = vld [vmem:[#allocation2 + $0x50] sm:$0xff]
          %v2006 = vld [vmem:[#allocation2 + $0x58] sm:$0xff]
          %2007 = vmatprep.subr.mxu0 %v1596
          %2008 = vmatpush1.msra.mxu0 %v1595
          %2009 = vmatprep.subr.mxu0 %v1600
          %2010 = vmatpush1.msra.mxu0 %v1599
          %2011 = vmatprep.subr.mxu0 %v1604
          %2012 = vmatpush1.msra.mxu0 %v1603
          %2013 = vmatprep.subr.mxu0 %v1608
          %2014 = vmatpush1.msra.mxu0 %v1607
          %2015 = vmatprep.subr.mxu0 %v1612
          %2016 = vmatpush1.msra.mxu0 %v1611
          %2017 = vmatprep.subr.mxu0 %v1616
          %2018 = vmatpush1.msra.mxu0 %v1615
          %2019 = vmatprep.subr.mxu0 %v1620
          %2020 = vmatpush1.msra.mxu0 %v1619
          %2021 = vmatprep.subr.mxu0 %v1624
          %2022 = vmatpush1.msra.mxu0 %v1623
          %2023 = vmatprep.subr.mxu0 %v1628
          %2024 = vmatpush1.msra.mxu0 %v1627
          %2025 = vmatprep.subr.mxu0 %v1632
          %2026 = vmatpush1.msra.mxu0 %v1631
          %2027 = vmatprep.subr.mxu0 %v1636
          %2028 = vmatpush1.msra.mxu0 %v1635
          %2029 = vmatprep.subr.mxu0 %v1640
          %2030 = vmatpush1.msra.mxu0 %v1639
          %2031 = vmatprep.subr.mxu0 %v1644
          %2032 = vmatpush1.msra.mxu0 %v1643
          %2033 = vmatprep.subr.mxu0 %v1648
          %2034 = vmatpush1.msra.mxu0 %v1647
          %2035 = vmatprep.subr.mxu0 %v1652
          %2036 = vmatpush1.msra.mxu0 %v1651
          %2037 = vmatprep.subr.mxu0 %v1656
          %2038 = vmatpush1.msra.mxu0 %v1655
          %2039 = vmatprep.subr.mxu0 0.0
          %2040 = vmatpush1.msra.mxu0 0.0
          %2041 = vmatprep.subr.mxu0 0.0
          %2042 = vmatpush1.msra.mxu0 0.0
          %2043 = vmatprep.subr.mxu0 0.0
          %2044 = vmatpush1.msra.mxu0 0.0
          %2045 = vmatprep.subr.mxu0 0.0
          %2046 = vmatpush1.msra.mxu0 0.0
          %2047 = vmatprep.subr.mxu0 0.0
          %2048 = vmatpush1.msra.mxu0 0.0
          %2049 = vmatprep.subr.mxu0 0.0
          %2050 = vmatpush1.msra.mxu0 0.0
          %2051 = vmatprep.subr.mxu0 0.0
          %2052 = vmatpush1.msra.mxu0 0.0
          %2053 = vmatprep.subr.mxu0 0.0
          %2054 = vmatpush1.msra.mxu0 0.0
          %2055 = vmatprep.subr.mxu0 0.0
          %2056 = vmatpush1.msra.mxu0 0.0
          %2057 = vmatprep.subr.mxu0 0.0
          %2058 = vmatpush1.msra.mxu0 0.0
          %2059 = vmatprep.subr.mxu0 0.0
          %2060 = vmatpush1.msra.mxu0 0.0
          %2061 = vmatprep.subr.mxu0 0.0
          %2062 = vmatpush1.msra.mxu0 0.0
          %2063 = vmatprep.subr.mxu0 0.0
          %2064 = vmatpush1.msra.mxu0 0.0
          %2065 = vmatprep.subr.mxu0 0.0
          %2066 = vmatpush1.msra.mxu0 0.0
          %2067 = vmatprep.subr.mxu0 0.0
          %2068 = vmatpush1.msra.mxu0 0.0
          %2069 = vmatprep.subr.mxu0 0.0
          %2070 = vmatpush1.msra.mxu0 0.0
          %2071 = vmatprep.mubr.f32.mxu0 0.0
          %2072 = vmatmul.mubr.f32.gmra.mrb[0].mxu0 %v2002
          %v2073 = vpop.f32.mrb[0].mxu0
          %v2074 = vadd.f32 0.0, %v2073
          %v2075 = vpop.f32.mrb[0].mxu0
          %v2076 = vadd.f32 0.0, %v2075
          %2077 = vdwg.mxu0
          %2078 = vmatprep.subr.mxu0 %v1598
          %2079 = vmatpush1.msra.mxu0 %v1597
          %2080 = vmatprep.subr.mxu0 %v1602
          %2081 = vmatpush1.msra.mxu0 %v1601
          %2082 = vmatprep.subr.mxu0 %v1606
          %2083 = vmatpush1.msra.mxu0 %v1605
          %2084 = vmatprep.subr.mxu0 %v1610
          %2085 = vmatpush1.msra.mxu0 %v1609
          %2086 = vmatprep.subr.mxu0 %v1614
          %2087 = vmatpush1.msra.mxu0 %v1613
          %2088 = vmatprep.subr.mxu0 %v1618
          %2089 = vmatpush1.msra.mxu0 %v1617
          %2090 = vmatprep.subr.mxu0 %v1622
          %2091 = vmatpush1.msra.mxu0 %v1621
          %2092 = vmatprep.subr.mxu0 %v1626
          %2093 = vmatpush1.msra.mxu0 %v1625
          %2094 = vmatprep.subr.mxu0 %v1630
          %2095 = vmatpush1.msra.mxu0 %v1629
          %2096 = vmatprep.subr.mxu0 %v1634
          %2097 = vmatpush1.msra.mxu0 %v1633
          %2098 = vmatprep.subr.mxu0 %v1638
          %2099 = vmatpush1.msra.mxu0 %v1637
          %2100 = vmatprep.subr.mxu0 %v1642
          %2101 = vmatpush1.msra.mxu0 %v1641
          %2102 = vmatprep.subr.mxu0 %v1646
          %2103 = vmatpush1.msra.mxu0 %v1645
          %2104 = vmatprep.subr.mxu0 %v1650
          %2105 = vmatpush1.msra.mxu0 %v1649
          %2106 = vmatprep.subr.mxu0 %v1654
          %2107 = vmatpush1.msra.mxu0 %v1653
          %2108 = vmatprep.subr.mxu0 %v1658
          %2109 = vmatpush1.msra.mxu0 %v1657
          %2110 = vmatprep.subr.mxu0 0.0
          %2111 = vmatpush1.msra.mxu0 0.0
          %2112 = vmatprep.subr.mxu0 0.0
          %2113 = vmatpush1.msra.mxu0 0.0
          %2114 = vmatprep.subr.mxu0 0.0
          %2115 = vmatpush1.msra.mxu0 0.0
          %2116 = vmatprep.subr.mxu0 0.0
          %2117 = vmatpush1.msra.mxu0 0.0
          %2118 = vmatprep.subr.mxu0 0.0
          %2119 = vmatpush1.msra.mxu0 0.0
          %2120 = vmatprep.subr.mxu0 0.0
          %2121 = vmatpush1.msra.mxu0 0.0
          %2122 = vmatprep.subr.mxu0 0.0
          %2123 = vmatpush1.msra.mxu0 0.0
          %2124 = vmatprep.subr.mxu0 0.0
          %2125 = vmatpush1.msra.mxu0 0.0
          %2126 = vmatprep.subr.mxu0 0.0
          %2127 = vmatpush1.msra.mxu0 0.0
          %2128 = vmatprep.subr.mxu0 0.0
          %2129 = vmatpush1.msra.mxu0 0.0
          %2130 = vmatprep.subr.mxu0 0.0
          %2131 = vmatpush1.msra.mxu0 0.0
          %2132 = vmatprep.subr.mxu0 0.0
          %2133 = vmatpush1.msra.mxu0 0.0
          %2134 = vmatprep.subr.mxu0 0.0
          %2135 = vmatpush1.msra.mxu0 0.0
          %2136 = vmatprep.subr.mxu0 0.0
          %2137 = vmatpush1.msra.mxu0 0.0
          %2138 = vmatprep.subr.mxu0 0.0
          %2139 = vmatpush1.msra.mxu0 0.0
          %2140 = vmatprep.subr.mxu0 0.0
          %2141 = vmatpush1.msra.mxu0 0.0
          %2142 = vmatprep.mubr.f32.mxu0 0.0
          %2143 = vmatmul.mubr.f32.gmra.mrb[0].mxu0 %v2002
          %v2144 = vpop.f32.mrb[0].mxu0
          %v2145 = vadd.f32 0.0, %v2144
          %v2146 = vpop.f32.mrb[0].mxu0
          %v2147 = vadd.f32 0.0, %v2146
          %2148 = vdwg.mxu0
          %v2149 = vadd.f32 %v2003, %v2074
          %v2150 = vadd.f32 %v2004, %v2076
          %v2151 = vadd.f32 %v2005, %v2145
          %v2152 = vadd.f32 %v2006, %v2147
          %v2153 = vxor.u32 %v2149, 2147483648
          %v2154 = vmul.f32 %v2153, 1.442695
          %v2155 = vpow.pop %v2154
          %v2156 = vadd.f32 %v2155, 1.0
          %v2157 = vrcp.pop %v2156
          %v2158 = vmul.f32 1.0, %v2157
          %v2159 = vxor.u32 %v2150, 2147483648
          %v2160 = vmul.f32 %v2159, 1.442695
          %v2161 = vpow.pop %v2160
          %v2162 = vadd.f32 %v2161, 1.0
          %v2163 = vrcp.pop %v2162
          %v2164 = vmul.f32 1.0, %v2163
          %v2165 = vtanh.pop %v2151
          %v2166 = vxor.u32 %v2152, 2147483648
          %v2167 = vmul.f32 %v2166, 1.442695
          %v2168 = vpow.pop %v2167
          %v2169 = vadd.f32 %v2168, 1.0
          %v2170 = vrcp.pop %v2169
          %v2171 = vmul.f32 1.0, %v2170
          %v2172 = vmul.f32 %v2164, %v2000
          %v2173 = vmul.f32 %v2158, %v2165
          %v2174 = vadd.f32 %v2172, %v2173
          %v2175 = vtanh.pop %v2174
          %v2176 = vmul.f32 %v2171, %v2175
          %v2177 = vld [vmem:[#allocation2 + $0x60] sm:$0xff]
          %v2178 = vld [vmem:[#allocation2 + $0x68] sm:$0xff]
          %v2179 = vld [vmem:[#allocation2 + $0x70] sm:$0xff]
          %v2180 = vld [vmem:[#allocation2 + $0x78] sm:$0xff]
          %2181 = vmatprep.subr.mxu0 %v1596
          %2182 = vmatpush1.msra.mxu0 %v1595
          %2183 = vmatprep.subr.mxu0 %v1600
          %2184 = vmatpush1.msra.mxu0 %v1599
          %2185 = vmatprep.subr.mxu0 %v1604
          %2186 = vmatpush1.msra.mxu0 %v1603
          %2187 = vmatprep.subr.mxu0 %v1608
          %2188 = vmatpush1.msra.mxu0 %v1607
          %2189 = vmatprep.subr.mxu0 %v1612
          %2190 = vmatpush1.msra.mxu0 %v1611
          %2191 = vmatprep.subr.mxu0 %v1616
          %2192 = vmatpush1.msra.mxu0 %v1615
          %2193 = vmatprep.subr.mxu0 %v1620
          %2194 = vmatpush1.msra.mxu0 %v1619
          %2195 = vmatprep.subr.mxu0 %v1624
          %2196 = vmatpush1.msra.mxu0 %v1623
          %2197 = vmatprep.subr.mxu0 %v1628
          %2198 = vmatpush1.msra.mxu0 %v1627
          %2199 = vmatprep.subr.mxu0 %v1632
          %2200 = vmatpush1.msra.mxu0 %v1631
          %2201 = vmatprep.subr.mxu0 %v1636
          %2202 = vmatpush1.msra.mxu0 %v1635
          %2203 = vmatprep.subr.mxu0 %v1640
          %2204 = vmatpush1.msra.mxu0 %v1639
          %2205 = vmatprep.subr.mxu0 %v1644
          %2206 = vmatpush1.msra.mxu0 %v1643
          %2207 = vmatprep.subr.mxu0 %v1648
          %2208 = vmatpush1.msra.mxu0 %v1647
          %2209 = vmatprep.subr.mxu0 %v1652
          %2210 = vmatpush1.msra.mxu0 %v1651
          %2211 = vmatprep.subr.mxu0 %v1656
          %2212 = vmatpush1.msra.mxu0 %v1655
          %2213 = vmatprep.subr.mxu0 0.0
          %2214 = vmatpush1.msra.mxu0 0.0
          %2215 = vmatprep.subr.mxu0 0.0
          %2216 = vmatpush1.msra.mxu0 0.0
          %2217 = vmatprep.subr.mxu0 0.0
          %2218 = vmatpush1.msra.mxu0 0.0
          %2219 = vmatprep.subr.mxu0 0.0
          %2220 = vmatpush1.msra.mxu0 0.0
          %2221 = vmatprep.subr.mxu0 0.0
          %2222 = vmatpush1.msra.mxu0 0.0
          %2223 = vmatprep.subr.mxu0 0.0
          %2224 = vmatpush1.msra.mxu0 0.0
          %2225 = vmatprep.subr.mxu0 0.0
          %2226 = vmatpush1.msra.mxu0 0.0
          %2227 = vmatprep.subr.mxu0 0.0
          %2228 = vmatpush1.msra.mxu0 0.0
          %2229 = vmatprep.subr.mxu0 0.0
          %2230 = vmatpush1.msra.mxu0 0.0
          %2231 = vmatprep.subr.mxu0 0.0
          %2232 = vmatpush1.msra.mxu0 0.0
          %2233 = vmatprep.subr.mxu0 0.0
          %2234 = vmatpush1.msra.mxu0 0.0
          %2235 = vmatprep.subr.mxu0 0.0
          %2236 = vmatpush1.msra.mxu0 0.0
          %2237 = vmatprep.subr.mxu0 0.0
          %2238 = vmatpush1.msra.mxu0 0.0
          %2239 = vmatprep.subr.mxu0 0.0
          %2240 = vmatpush1.msra.mxu0 0.0
          %2241 = vmatprep.subr.mxu0 0.0
          %2242 = vmatpush1.msra.mxu0 0.0
          %2243 = vmatprep.subr.mxu0 0.0
          %2244 = vmatpush1.msra.mxu0 0.0
          %2245 = vmatprep.mubr.f32.mxu0 0.0
          %2246 = vmatmul.mubr.f32.gmra.mrb[0].mxu0 %v2176
          %v2247 = vpop.f32.mrb[0].mxu0
          %v2248 = vadd.f32 0.0, %v2247
          %v2249 = vpop.f32.mrb[0].mxu0
          %v2250 = vadd.f32 0.0, %v2249
          %2251 = vdwg.mxu0
          %2252 = vmatprep.subr.mxu0 %v1598
          %2253 = vmatpush1.msra.mxu0 %v1597
          %2254 = vmatprep.subr.mxu0 %v1602
          %2255 = vmatpush1.msra.mxu0 %v1601
          %2256 = vmatprep.subr.mxu0 %v1606
          %2257 = vmatpush1.msra.mxu0 %v1605
          %2258 = vmatprep.subr.mxu0 %v1610
          %2259 = vmatpush1.msra.mxu0 %v1609
          %2260 = vmatprep.subr.mxu0 %v1614
          %2261 = vmatpush1.msra.mxu0 %v1613
          %2262 = vmatprep.subr.mxu0 %v1618
          %2263 = vmatpush1.msra.mxu0 %v1617
          %2264 = vmatprep.subr.mxu0 %v1622
          %2265 = vmatpush1.msra.mxu0 %v1621
          %2266 = vmatprep.subr.mxu0 %v1626
          %2267 = vmatpush1.msra.mxu0 %v1625
          %2268 = vmatprep.subr.mxu0 %v1630
          %2269 = vmatpush1.msra.mxu0 %v1629
          %2270 = vmatprep.subr.mxu0 %v1634
          %2271 = vmatpush1.msra.mxu0 %v1633
          %2272 = vmatprep.subr.mxu0 %v1638
          %2273 = vmatpush1.msra.mxu0 %v1637
          %2274 = vmatprep.subr.mxu0 %v1642
          %2275 = vmatpush1.msra.mxu0 %v1641
          %2276 = vmatprep.subr.mxu0 %v1646
          %2277 = vmatpush1.msra.mxu0 %v1645
          %2278 = vmatprep.subr.mxu0 %v1650
          %2279 = vmatpush1.msra.mxu0 %v1649
          %2280 = vmatprep.subr.mxu0 %v1654
          %2281 = vmatpush1.msra.mxu0 %v1653
          %2282 = vmatprep.subr.mxu0 %v1658
          %2283 = vmatpush1.msra.mxu0 %v1657
          %2284 = vmatprep.subr.mxu0 0.0
          %2285 = vmatpush1.msra.mxu0 0.0
          %2286 = vmatprep.subr.mxu0 0.0
          %2287 = vmatpush1.msra.mxu0 0.0
          %2288 = vmatprep.subr.mxu0 0.0
          %2289 = vmatpush1.msra.mxu0 0.0
          %2290 = vmatprep.subr.mxu0 0.0
          %2291 = vmatpush1.msra.mxu0 0.0
          %2292 = vmatprep.subr.mxu0 0.0
          %2293 = vmatpush1.msra.mxu0 0.0
          %2294 = vmatprep.subr.mxu0 0.0
          %2295 = vmatpush1.msra.mxu0 0.0
          %2296 = vmatprep.subr.mxu0 0.0
          %2297 = vmatpush1.msra.mxu0 0.0
          %2298 = vmatprep.subr.mxu0 0.0
          %2299 = vmatpush1.msra.mxu0 0.0
          %2300 = vmatprep.subr.mxu0 0.0
          %2301 = vmatpush1.msra.mxu0 0.0
          %2302 = vmatprep.subr.mxu0 0.0
          %2303 = vmatpush1.msra.mxu0 0.0
          %2304 = vmatprep.subr.mxu0 0.0
          %2305 = vmatpush1.msra.mxu0 0.0
          %2306 = vmatprep.subr.mxu0 0.0
          %2307 = vmatpush1.msra.mxu0 0.0
          %2308 = vmatprep.subr.mxu0 0.0
          %2309 = vmatpush1.msra.mxu0 0.0
          %2310 = vmatprep.subr.mxu0 0.0
          %2311 = vmatpush1.msra.mxu0 0.0
          %2312 = vmatprep.subr.mxu0 0.0
          %2313 = vmatpush1.msra.mxu0 0.0
          %2314 = vmatprep.subr.mxu0 0.0
          %2315 = vmatpush1.msra.mxu0 0.0
          %2316 = vmatprep.mubr.f32.mxu0 0.0
          %2317 = vmatmul.mubr.f32.gmra.mrb[0].mxu0 %v2176
          %v2318 = vpop.f32.mrb[0].mxu0
          %v2319 = vadd.f32 0.0, %v2318
          %v2320 = vpop.f32.mrb[0].mxu0
          %v2321 = vadd.f32 0.0, %v2320
          %2322 = vdwg.mxu0
          %v2323 = vadd.f32 %v2177, %v2248
          %v2324 = vadd.f32 %v2178, %v2250
          %v2325 = vadd.f32 %v2179, %v2319
          %v2326 = vadd.f32 %v2180, %v2321
          %v2327 = vxor.u32 %v2323, 2147483648
          %v2328 = vmul.f32 %v2327, 1.442695
          %v2329 = vpow.pop %v2328
          %v2330 = vadd.f32 %v2329, 1.0
          %v2331 = vrcp.pop %v2330
          %v2332 = vmul.f32 1.0, %v2331
          %v2333 = vxor.u32 %v2324, 2147483648
          %v2334 = vmul.f32 %v2333, 1.442695
          %v2335 = vpow.pop %v2334
          %v2336 = vadd.f32 %v2335, 1.0
          %v2337 = vrcp.pop %v2336
          %v2338 = vmul.f32 1.0, %v2337
          %v2339 = vtanh.pop %v2325
          %v2340 = vxor.u32 %v2326, 2147483648
          %v2341 = vmul.f32 %v2340, 1.442695
          %v2342 = vpow.pop %v2341
          %v2343 = vadd.f32 %v2342, 1.0
          %v2344 = vrcp.pop %v2343
          %v2345 = vmul.f32 1.0, %v2344
          %v2346 = vmul.f32 %v2338, %v2174
          %v2347 = vmul.f32 %v2332, %v2339
          %v2348 = vadd.f32 %v2346, %v2347
          %v2349 = vtanh.pop %v2348
          %v2350 = vmul.f32 %v2345, %v2349
          %v2351 = vld [vmem:[#allocation2 + $0x80] sm:$0xff]
          %v2352 = vld [vmem:[#allocation2 + $0x88] sm:$0xff]
          %v2353 = vld [vmem:[#allocation2 + $0x90] sm:$0xff]
          %v2354 = vld [vmem:[#allocation2 + $0x98] sm:$0xff]
          %2355 = vmatprep.subr.mxu0 %v1596
          %2356 = vmatpush1.msra.mxu0 %v1595
          %2357 = vmatprep.subr.mxu0 %v1600
          %2358 = vmatpush1.msra.mxu0 %v1599
          %2359 = vmatprep.subr.mxu0 %v1604
          %2360 = vmatpush1.msra.mxu0 %v1603
          %2361 = vmatprep.subr.mxu0 %v1608
          %2362 = vmatpush1.msra.mxu0 %v1607
          %2363 = vmatprep.subr.mxu0 %v1612
          %2364 = vmatpush1.msra.mxu0 %v1611
          %2365 = vmatprep.subr.mxu0 %v1616
          %2366 = vmatpush1.msra.mxu0 %v1615
          %2367 = vmatprep.subr.mxu0 %v1620
          %2368 = vmatpush1.msra.mxu0 %v1619
          %2369 = vmatprep.subr.mxu0 %v1624
          %2370 = vmatpush1.msra.mxu0 %v1623
          %2371 = vmatprep.subr.mxu0 %v1628
          %2372 = vmatpush1.msra.mxu0 %v1627
          %2373 = vmatprep.subr.mxu0 %v1632
          %2374 = vmatpush1.msra.mxu0 %v1631
          %2375 = vmatprep.subr.mxu0 %v1636
          %2376 = vmatpush1.msra.mxu0 %v1635
          %2377 = vmatprep.subr.mxu0 %v1640
          %2378 = vmatpush1.msra.mxu0 %v1639
          %2379 = vmatprep.subr.mxu0 %v1644
          %2380 = vmatpush1.msra.mxu0 %v1643
          %2381 = vmatprep.subr.mxu0 %v1648
          %2382 = vmatpush1.msra.mxu0 %v1647
          %2383 = vmatprep.subr.mxu0 %v1652
          %2384 = vmatpush1.msra.mxu0 %v1651
          %2385 = vmatprep.subr.mxu0 %v1656
          %2386 = vmatpush1.msra.mxu0 %v1655
          %2387 = vmatprep.subr.mxu0 0.0
          %2388 = vmatpush1.msra.mxu0 0.0
          %2389 = vmatprep.subr.mxu0 0.0
          %2390 = vmatpush1.msra.mxu0 0.0
          %2391 = vmatprep.subr.mxu0 0.0
          %2392 = vmatpush1.msra.mxu0 0.0
          %2393 = vmatprep.subr.mxu0 0.0
          %2394 = vmatpush1.msra.mxu0 0.0
          %2395 = vmatprep.subr.mxu0 0.0
          %2396 = vmatpush1.msra.mxu0 0.0
          %2397 = vmatprep.subr.mxu0 0.0
          %2398 = vmatpush1.msra.mxu0 0.0
          %2399 = vmatprep.subr.mxu0 0.0
          %2400 = vmatpush1.msra.mxu0 0.0
          %2401 = vmatprep.subr.mxu0 0.0
          %2402 = vmatpush1.msra.mxu0 0.0
          %2403 = vmatprep.subr.mxu0 0.0
          %2404 = vmatpush1.msra.mxu0 0.0
          %2405 = vmatprep.subr.mxu0 0.0
          %2406 = vmatpush1.msra.mxu0 0.0
          %2407 = vmatprep.subr.mxu0 0.0
          %2408 = vmatpush1.msra.mxu0 0.0
          %2409 = vmatprep.subr.mxu0 0.0
          %2410 = vmatpush1.msra.mxu0 0.0
          %2411 = vmatprep.subr.mxu0 0.0
          %2412 = vmatpush1.msra.mxu0 0.0
          %2413 = vmatprep.subr.mxu0 0.0
          %2414 = vmatpush1.msra.mxu0 0.0
          %2415 = vmatprep.subr.mxu0 0.0
          %2416 = vmatpush1.msra.mxu0 0.0
          %2417 = vmatprep.subr.mxu0 0.0
          %2418 = vmatpush1.msra.mxu0 0.0
          %2419 = vmatprep.mubr.f32.mxu0 0.0
          %2420 = vmatmul.mubr.f32.gmra.mrb[0].mxu0 %v2350
          %v2421 = vpop.f32.mrb[0].mxu0
          %v2422 = vadd.f32 0.0, %v2421
          %v2423 = vpop.f32.mrb[0].mxu0
          %v2424 = vadd.f32 0.0, %v2423
          %2425 = vdwg.mxu0
          %2426 = vmatprep.subr.mxu0 %v1598
          %2427 = vmatpush1.msra.mxu0 %v1597
          %2428 = vmatprep.subr.mxu0 %v1602
          %2429 = vmatpush1.msra.mxu0 %v1601
          %2430 = vmatprep.subr.mxu0 %v1606
          %2431 = vmatpush1.msra.mxu0 %v1605
          %2432 = vmatprep.subr.mxu0 %v1610
          %2433 = vmatpush1.msra.mxu0 %v1609
          %2434 = vmatprep.subr.mxu0 %v1614
          %2435 = vmatpush1.msra.mxu0 %v1613
          %2436 = vmatprep.subr.mxu0 %v1618
          %2437 = vmatpush1.msra.mxu0 %v1617
          %2438 = vmatprep.subr.mxu0 %v1622
          %2439 = vmatpush1.msra.mxu0 %v1621
          %2440 = vmatprep.subr.mxu0 %v1626
          %2441 = vmatpush1.msra.mxu0 %v1625
          %2442 = vmatprep.subr.mxu0 %v1630
          %2443 = vmatpush1.msra.mxu0 %v1629
          %2444 = vmatprep.subr.mxu0 %v1634
          %2445 = vmatpush1.msra.mxu0 %v1633
          %2446 = vmatprep.subr.mxu0 %v1638
          %2447 = vmatpush1.msra.mxu0 %v1637
          %2448 = vmatprep.subr.mxu0 %v1642
          %2449 = vmatpush1.msra.mxu0 %v1641
          %2450 = vmatprep.subr.mxu0 %v1646
          %2451 = vmatpush1.msra.mxu0 %v1645
          %2452 = vmatprep.subr.mxu0 %v1650
          %2453 = vmatpush1.msra.mxu0 %v1649
          %2454 = vmatprep.subr.mxu0 %v1654
          %2455 = vmatpush1.msra.mxu0 %v1653
          %2456 = vmatprep.subr.mxu0 %v1658
          %2457 = vmatpush1.msra.mxu0 %v1657
          %2458 = vmatprep.subr.mxu0 0.0
          %2459 = vmatpush1.msra.mxu0 0.0
          %2460 = vmatprep.subr.mxu0 0.0
          %2461 = vmatpush1.msra.mxu0 0.0
          %2462 = vmatprep.subr.mxu0 0.0
          %2463 = vmatpush1.msra.mxu0 0.0
          %2464 = vmatprep.subr.mxu0 0.0
          %2465 = vmatpush1.msra.mxu0 0.0
          %2466 = vmatprep.subr.mxu0 0.0
          %2467 = vmatpush1.msra.mxu0 0.0
          %2468 = vmatprep.subr.mxu0 0.0
          %2469 = vmatpush1.msra.mxu0 0.0
          %2470 = vmatprep.subr.mxu0 0.0
          %2471 = vmatpush1.msra.mxu0 0.0
          %2472 = vmatprep.subr.mxu0 0.0
          %2473 = vmatpush1.msra.mxu0 0.0
          %2474 = vmatprep.subr.mxu0 0.0
          %2475 = vmatpush1.msra.mxu0 0.0
          %2476 = vmatprep.subr.mxu0 0.0
          %2477 = vmatpush1.msra.mxu0 0.0
          %2478 = vmatprep.subr.mxu0 0.0
          %2479 = vmatpush1.msra.mxu0 0.0
          %2480 = vmatprep.subr.mxu0 0.0
          %2481 = vmatpush1.msra.mxu0 0.0
          %2482 = vmatprep.subr.mxu0 0.0
          %2483 = vmatpush1.msra.mxu0 0.0
          %2484 = vmatprep.subr.mxu0 0.0
          %2485 = vmatpush1.msra.mxu0 0.0
          %2486 = vmatprep.subr.mxu0 0.0
          %2487 = vmatpush1.msra.mxu0 0.0
          %2488 = vmatprep.subr.mxu0 0.0
          %2489 = vmatpush1.msra.mxu0 0.0
          %2490 = vmatprep.mubr.f32.mxu0 0.0
          %2491 = vmatmul.mubr.f32.gmra.mrb[0].mxu0 %v2350
          %v2492 = vpop.f32.mrb[0].mxu0
          %v2493 = vadd.f32 0.0, %v2492
          %v2494 = vpop.f32.mrb[0].mxu0
          %v2495 = vadd.f32 0.0, %v2494
          %2496 = vdwg.mxu0
          %v2497 = vadd.f32 %v2351, %v2422
          %v2498 = vadd.f32 %v2352, %v2424
          %v2499 = vadd.f32 %v2353, %v2493
          %v2500 = vadd.f32 %v2354, %v2495
          %v2501 = vxor.u32 %v2497, 2147483648
          %v2502 = vmul.f32 %v2501, 1.442695
          %v2503 = vpow.pop %v2502
          %v2504 = vadd.f32 %v2503, 1.0
          %v2505 = vrcp.pop %v2504
          %v2506 = vmul.f32 1.0, %v2505
          %v2507 = vxor.u32 %v2498, 2147483648
          %v2508 = vmul.f32 %v2507, 1.442695
          %v2509 = vpow.pop %v2508
          %v2510 = vadd.f32 %v2509, 1.0
          %v2511 = vrcp.pop %v2510
          %v2512 = vmul.f32 1.0, %v2511
          %v2513 = vtanh.pop %v2499
          %v2514 = vxor.u32 %v2500, 2147483648
          %v2515 = vmul.f32 %v2514, 1.442695
          %v2516 = vpow.pop %v2515
          %v2517 = vadd.f32 %v2516, 1.0
          %v2518 = vrcp.pop %v2517
          %v2519 = vmul.f32 1.0, %v2518
          %v2520 = vmul.f32 %v2512, %v2348
          %v2521 = vmul.f32 %v2506, %v2513
          %v2522 = vadd.f32 %v2520, %v2521
          %v2523 = vtanh.pop %v2522
          %v2524 = vmul.f32 %v2519, %v2523
          %v2525 = vld [vmem:[#allocation2 + $0xa0] sm:$0xff]
          %v2526 = vld [vmem:[#allocation2 + $0xa8] sm:$0xff]
          %v2527 = vld [vmem:[#allocation2 + $0xb0] sm:$0xff]
          %v2528 = vld [vmem:[#allocation2 + $0xb8] sm:$0xff]
          %2529 = vmatprep.subr.mxu0 %v1596
          %2530 = vmatpush1.msra.mxu0 %v1595
          %2531 = vmatprep.subr.mxu0 %v1600
          %2532 = vmatpush1.msra.mxu0 %v1599
          %2533 = vmatprep.subr.mxu0 %v1604
          %2534 = vmatpush1.msra.mxu0 %v1603
          %2535 = vmatprep.subr.mxu0 %v1608
          %2536 = vmatpush1.msra.mxu0 %v1607
          %2537 = vmatprep.subr.mxu0 %v1612
          %2538 = vmatpush1.msra.mxu0 %v1611
          %2539 = vmatprep.subr.mxu0 %v1616
          %2540 = vmatpush1.msra.mxu0 %v1615
          %2541 = vmatprep.subr.mxu0 %v1620
          %2542 = vmatpush1.msra.mxu0 %v1619
          %2543 = vmatprep.subr.mxu0 %v1624
          %2544 = vmatpush1.msra.mxu0 %v1623
          %2545 = vmatprep.subr.mxu0 %v1628
          %2546 = vmatpush1.msra.mxu0 %v1627
          %2547 = vmatprep.subr.mxu0 %v1632
          %2548 = vmatpush1.msra.mxu0 %v1631
          %2549 = vmatprep.subr.mxu0 %v1636
          %2550 = vmatpush1.msra.mxu0 %v1635
          %2551 = vmatprep.subr.mxu0 %v1640
          %2552 = vmatpush1.msra.mxu0 %v1639
          %2553 = vmatprep.subr.mxu0 %v1644
          %2554 = vmatpush1.msra.mxu0 %v1643
          %2555 = vmatprep.subr.mxu0 %v1648
          %2556 = vmatpush1.msra.mxu0 %v1647
          %2557 = vmatprep.subr.mxu0 %v1652
          %2558 = vmatpush1.msra.mxu0 %v1651
          %2559 = vmatprep.subr.mxu0 %v1656
          %2560 = vmatpush1.msra.mxu0 %v1655
          %2561 = vmatprep.subr.mxu0 0.0
          %2562 = vmatpush1.msra.mxu0 0.0
          %2563 = vmatprep.subr.mxu0 0.0
          %2564 = vmatpush1.msra.mxu0 0.0
          %2565 = vmatprep.subr.mxu0 0.0
          %2566 = vmatpush1.msra.mxu0 0.0
          %2567 = vmatprep.subr.mxu0 0.0
          %2568 = vmatpush1.msra.mxu0 0.0
          %2569 = vmatprep.subr.mxu0 0.0
          %2570 = vmatpush1.msra.mxu0 0.0
          %2571 = vmatprep.subr.mxu0 0.0
          %2572 = vmatpush1.msra.mxu0 0.0
          %2573 = vmatprep.subr.mxu0 0.0
          %2574 = vmatpush1.msra.mxu0 0.0
          %2575 = vmatprep.subr.mxu0 0.0
          %2576 = vmatpush1.msra.mxu0 0.0
          %2577 = vmatprep.subr.mxu0 0.0
          %2578 = vmatpush1.msra.mxu0 0.0
          %2579 = vmatprep.subr.mxu0 0.0
          %2580 = vmatpush1.msra.mxu0 0.0
          %2581 = vmatprep.subr.mxu0 0.0
          %2582 = vmatpush1.msra.mxu0 0.0
          %2583 = vmatprep.subr.mxu0 0.0
          %2584 = vmatpush1.msra.mxu0 0.0
          %2585 = vmatprep.subr.mxu0 0.0
          %2586 = vmatpush1.msra.mxu0 0.0
          %2587 = vmatprep.subr.mxu0 0.0
          %2588 = vmatpush1.msra.mxu0 0.0
          %2589 = vmatprep.subr.mxu0 0.0
          %2590 = vmatpush1.msra.mxu0 0.0
          %2591 = vmatprep.subr.mxu0 0.0
          %2592 = vmatpush1.msra.mxu0 0.0
          %2593 = vmatprep.mubr.f32.mxu0 0.0
          %2594 = vmatmul.mubr.f32.gmra.mrb[0].mxu0 %v2524
          %v2595 = vpop.f32.mrb[0].mxu0
          %v2596 = vadd.f32 0.0, %v2595
          %v2597 = vpop.f32.mrb[0].mxu0
          %v2598 = vadd.f32 0.0, %v2597
          %2599 = vdwg.mxu0
          %2600 = vmatprep.subr.mxu0 %v1598
          %2601 = vmatpush1.msra.mxu0 %v1597
          %2602 = vmatprep.subr.mxu0 %v1602
          %2603 = vmatpush1.msra.mxu0 %v1601
          %2604 = vmatprep.subr.mxu0 %v1606
          %2605 = vmatpush1.msra.mxu0 %v1605
          %2606 = vmatprep.subr.mxu0 %v1610
          %2607 = vmatpush1.msra.mxu0 %v1609
          %2608 = vmatprep.subr.mxu0 %v1614
          %2609 = vmatpush1.msra.mxu0 %v1613
          %2610 = vmatprep.subr.mxu0 %v1618
          %2611 = vmatpush1.msra.mxu0 %v1617
          %2612 = vmatprep.subr.mxu0 %v1622
          %2613 = vmatpush1.msra.mxu0 %v1621
          %2614 = vmatprep.subr.mxu0 %v1626
          %2615 = vmatpush1.msra.mxu0 %v1625
          %2616 = vmatprep.subr.mxu0 %v1630
          %2617 = vmatpush1.msra.mxu0 %v1629
          %2618 = vmatprep.subr.mxu0 %v1634
          %2619 = vmatpush1.msra.mxu0 %v1633
          %2620 = vmatprep.subr.mxu0 %v1638
          %2621 = vmatpush1.msra.mxu0 %v1637
          %2622 = vmatprep.subr.mxu0 %v1642
          %2623 = vmatpush1.msra.mxu0 %v1641
          %2624 = vmatprep.subr.mxu0 %v1646
          %2625 = vmatpush1.msra.mxu0 %v1645
          %2626 = vmatprep.subr.mxu0 %v1650
          %2627 = vmatpush1.msra.mxu0 %v1649
          %2628 = vmatprep.subr.mxu0 %v1654
          %2629 = vmatpush1.msra.mxu0 %v1653
          %2630 = vmatprep.subr.mxu0 %v1658
          %2631 = vmatpush1.msra.mxu0 %v1657
          %2632 = vmatprep.subr.mxu0 0.0
          %2633 = vmatpush1.msra.mxu0 0.0
          %2634 = vmatprep.subr.mxu0 0.0
          %2635 = vmatpush1.msra.mxu0 0.0
          %2636 = vmatprep.subr.mxu0 0.0
          %2637 = vmatpush1.msra.mxu0 0.0
          %2638 = vmatprep.subr.mxu0 0.0
          %2639 = vmatpush1.msra.mxu0 0.0
          %2640 = vmatprep.subr.mxu0 0.0
          %2641 = vmatpush1.msra.mxu0 0.0
          %2642 = vmatprep.subr.mxu0 0.0
          %2643 = vmatpush1.msra.mxu0 0.0
          %2644 = vmatprep.subr.mxu0 0.0
          %2645 = vmatpush1.msra.mxu0 0.0
          %2646 = vmatprep.subr.mxu0 0.0
          %2647 = vmatpush1.msra.mxu0 0.0
          %2648 = vmatprep.subr.mxu0 0.0
          %2649 = vmatpush1.msra.mxu0 0.0
          %2650 = vmatprep.subr.mxu0 0.0
          %2651 = vmatpush1.msra.mxu0 0.0
          %2652 = vmatprep.subr.mxu0 0.0
          %2653 = vmatpush1.msra.mxu0 0.0
          %2654 = vmatprep.subr.mxu0 0.0
          %2655 = vmatpush1.msra.mxu0 0.0
          %2656 = vmatprep.subr.mxu0 0.0
          %2657 = vmatpush1.msra.mxu0 0.0
          %2658 = vmatprep.subr.mxu0 0.0
          %2659 = vmatpush1.msra.mxu0 0.0
          %2660 = vmatprep.subr.mxu0 0.0
          %2661 = vmatpush1.msra.mxu0 0.0
          %2662 = vmatprep.subr.mxu0 0.0
          %2663 = vmatpush1.msra.mxu0 0.0
          %2664 = vmatprep.mubr.f32.mxu0 0.0
          %2665 = vmatmul.mubr.f32.gmra.mrb[0].mxu0 %v2524
          %v2666 = vpop.f32.mrb[0].mxu0
          %v2667 = vadd.f32 0.0, %v2666
          %v2668 = vpop.f32.mrb[0].mxu0
          %v2669 = vadd.f32 0.0, %v2668
          %2670 = vdwg.mxu0
          %v2671 = vadd.f32 %v2525, %v2596
          %v2672 = vadd.f32 %v2526, %v2598
          %v2673 = vadd.f32 %v2527, %v2667
          %v2674 = vadd.f32 %v2528, %v2669
          %v2675 = vxor.u32 %v2671, 2147483648
          %v2676 = vmul.f32 %v2675, 1.442695
          %v2677 = vpow.pop %v2676
          %v2678 = vadd.f32 %v2677, 1.0
          %v2679 = vrcp.pop %v2678
          %v2680 = vmul.f32 1.0, %v2679
          %v2681 = vxor.u32 %v2672, 2147483648
          %v2682 = vmul.f32 %v2681, 1.442695
          %v2683 = vpow.pop %v2682
          %v2684 = vadd.f32 %v2683, 1.0
          %v2685 = vrcp.pop %v2684
          %v2686 = vmul.f32 1.0, %v2685
          %v2687 = vtanh.pop %v2673
          %v2688 = vxor.u32 %v2674, 2147483648
          %v2689 = vmul.f32 %v2688, 1.442695
          %v2690 = vpow.pop %v2689
          %v2691 = vadd.f32 %v2690, 1.0
          %v2692 = vrcp.pop %v2691
          %v2693 = vmul.f32 1.0, %v2692
          %v2694 = vmul.f32 %v2686, %v2522
          %v2695 = vmul.f32 %v2680, %v2687
          %v2696 = vadd.f32 %v2694, %v2695
          %v2697 = vtanh.pop %v2696
          %v2698 = vmul.f32 %v2693, %v2697
          %v2699 = vld [vmem:[#allocation2 + $0xc0] sm:$0xff]
          %v2700 = vld [vmem:[#allocation2 + $0xc8] sm:$0xff]
          %v2701 = vld [vmem:[#allocation2 + $0xd0] sm:$0xff]
          %v2702 = vld [vmem:[#allocation2 + $0xd8] sm:$0xff]
          %2703 = vmatprep.subr.mxu0 %v1596
          %2704 = vmatpush1.msra.mxu0 %v1595
          %2705 = vmatprep.subr.mxu0 %v1600
          %2706 = vmatpush1.msra.mxu0 %v1599
          %2707 = vmatprep.subr.mxu0 %v1604
          %2708 = vmatpush1.msra.mxu0 %v1603
          %2709 = vmatprep.subr.mxu0 %v1608
          %2710 = vmatpush1.msra.mxu0 %v1607
          %2711 = vmatprep.subr.mxu0 %v1612
          %2712 = vmatpush1.msra.mxu0 %v1611
          %2713 = vmatprep.subr.mxu0 %v1616
          %2714 = vmatpush1.msra.mxu0 %v1615
          %2715 = vmatprep.subr.mxu0 %v1620
          %2716 = vmatpush1.msra.mxu0 %v1619
          %2717 = vmatprep.subr.mxu0 %v1624
          %2718 = vmatpush1.msra.mxu0 %v1623
          %2719 = vmatprep.subr.mxu0 %v1628
          %2720 = vmatpush1.msra.mxu0 %v1627
          %2721 = vmatprep.subr.mxu0 %v1632
          %2722 = vmatpush1.msra.mxu0 %v1631
          %2723 = vmatprep.subr.mxu0 %v1636
          %2724 = vmatpush1.msra.mxu0 %v1635
          %2725 = vmatprep.subr.mxu0 %v1640
          %2726 = vmatpush1.msra.mxu0 %v1639
          %2727 = vmatprep.subr.mxu0 %v1644
          %2728 = vmatpush1.msra.mxu0 %v1643
          %2729 = vmatprep.subr.mxu0 %v1648
          %2730 = vmatpush1.msra.mxu0 %v1647
          %2731 = vmatprep.subr.mxu0 %v1652
          %2732 = vmatpush1.msra.mxu0 %v1651
          %2733 = vmatprep.subr.mxu0 %v1656
          %2734 = vmatpush1.msra.mxu0 %v1655
          %2735 = vmatprep.subr.mxu0 0.0
          %2736 = vmatpush1.msra.mxu0 0.0
          %2737 = vmatprep.subr.mxu0 0.0
          %2738 = vmatpush1.msra.mxu0 0.0
          %2739 = vmatprep.subr.mxu0 0.0
          %2740 = vmatpush1.msra.mxu0 0.0
          %2741 = vmatprep.subr.mxu0 0.0
          %2742 = vmatpush1.msra.mxu0 0.0
          %2743 = vmatprep.subr.mxu0 0.0
          %2744 = vmatpush1.msra.mxu0 0.0
          %2745 = vmatprep.subr.mxu0 0.0
          %2746 = vmatpush1.msra.mxu0 0.0
          %2747 = vmatprep.subr.mxu0 0.0
          %2748 = vmatpush1.msra.mxu0 0.0
          %2749 = vmatprep.subr.mxu0 0.0
          %2750 = vmatpush1.msra.mxu0 0.0
          %2751 = vmatprep.subr.mxu0 0.0
          %2752 = vmatpush1.msra.mxu0 0.0
          %2753 = vmatprep.subr.mxu0 0.0
          %2754 = vmatpush1.msra.mxu0 0.0
          %2755 = vmatprep.subr.mxu0 0.0
          %2756 = vmatpush1.msra.mxu0 0.0
          %2757 = vmatprep.subr.mxu0 0.0
          %2758 = vmatpush1.msra.mxu0 0.0
          %2759 = vmatprep.subr.mxu0 0.0
          %2760 = vmatpush1.msra.mxu0 0.0
          %2761 = vmatprep.subr.mxu0 0.0
          %2762 = vmatpush1.msra.mxu0 0.0
          %2763 = vmatprep.subr.mxu0 0.0
          %2764 = vmatpush1.msra.mxu0 0.0
          %2765 = vmatprep.subr.mxu0 0.0
          %2766 = vmatpush1.msra.mxu0 0.0
          %2767 = vmatprep.mubr.f32.mxu0 0.0
          %2768 = vmatmul.mubr.f32.gmra.mrb[0].mxu0 %v2698
          %v2769 = vpop.f32.mrb[0].mxu0
          %v2770 = vadd.f32 0.0, %v2769
          %v2771 = vpop.f32.mrb[0].mxu0
          %v2772 = vadd.f32 0.0, %v2771
          %2773 = vdwg.mxu0
          %2774 = vmatprep.subr.mxu0 %v1598
          %2775 = vmatpush1.msra.mxu0 %v1597
          %2776 = vmatprep.subr.mxu0 %v1602
          %2777 = vmatpush1.msra.mxu0 %v1601
          %2778 = vmatprep.subr.mxu0 %v1606
          %2779 = vmatpush1.msra.mxu0 %v1605
          %2780 = vmatprep.subr.mxu0 %v1610
          %2781 = vmatpush1.msra.mxu0 %v1609
          %2782 = vmatprep.subr.mxu0 %v1614
          %2783 = vmatpush1.msra.mxu0 %v1613
          %2784 = vmatprep.subr.mxu0 %v1618
          %2785 = vmatpush1.msra.mxu0 %v1617
          %2786 = vmatprep.subr.mxu0 %v1622
          %2787 = vmatpush1.msra.mxu0 %v1621
          %2788 = vmatprep.subr.mxu0 %v1626
          %2789 = vmatpush1.msra.mxu0 %v1625
          %2790 = vmatprep.subr.mxu0 %v1630
          %2791 = vmatpush1.msra.mxu0 %v1629
          %2792 = vmatprep.subr.mxu0 %v1634
          %2793 = vmatpush1.msra.mxu0 %v1633
          %2794 = vmatprep.subr.mxu0 %v1638
          %2795 = vmatpush1.msra.mxu0 %v1637
          %2796 = vmatprep.subr.mxu0 %v1642
          %2797 = vmatpush1.msra.mxu0 %v1641
          %2798 = vmatprep.subr.mxu0 %v1646
          %2799 = vmatpush1.msra.mxu0 %v1645
          %2800 = vmatprep.subr.mxu0 %v1650
          %2801 = vmatpush1.msra.mxu0 %v1649
          %2802 = vmatprep.subr.mxu0 %v1654
          %2803 = vmatpush1.msra.mxu0 %v1653
          %2804 = vmatprep.subr.mxu0 %v1658
          %2805 = vmatpush1.msra.mxu0 %v1657
          %2806 = vmatprep.subr.mxu0 0.0
          %2807 = vmatpush1.msra.mxu0 0.0
          %2808 = vmatprep.subr.mxu0 0.0
          %2809 = vmatpush1.msra.mxu0 0.0
          %2810 = vmatprep.subr.mxu0 0.0
          %2811 = vmatpush1.msra.mxu0 0.0
          %2812 = vmatprep.subr.mxu0 0.0
          %2813 = vmatpush1.msra.mxu0 0.0
          %2814 = vmatprep.subr.mxu0 0.0
          %2815 = vmatpush1.msra.mxu0 0.0
          %2816 = vmatprep.subr.mxu0 0.0
          %2817 = vmatpush1.msra.mxu0 0.0
          %2818 = vmatprep.subr.mxu0 0.0
          %2819 = vmatpush1.msra.mxu0 0.0
          %2820 = vmatprep.subr.mxu0 0.0
          %2821 = vmatpush1.msra.mxu0 0.0
          %2822 = vmatprep.subr.mxu0 0.0
          %2823 = vmatpush1.msra.mxu0 0.0
          %2824 = vmatprep.subr.mxu0 0.0
          %2825 = vmatpush1.msra.mxu0 0.0
          %2826 = vmatprep.subr.mxu0 0.0
          %2827 = vmatpush1.msra.mxu0 0.0
          %2828 = vmatprep.subr.mxu0 0.0
          %2829 = vmatpush1.msra.mxu0 0.0
          %2830 = vmatprep.subr.mxu0 0.0
          %2831 = vmatpush1.msra.mxu0 0.0
          %2832 = vmatprep.subr.mxu0 0.0
          %2833 = vmatpush1.msra.mxu0 0.0
          %2834 = vmatprep.subr.mxu0 0.0
          %2835 = vmatpush1.msra.mxu0 0.0
          %2836 = vmatprep.subr.mxu0 0.0
          %2837 = vmatpush1.msra.mxu0 0.0
          %2838 = vmatprep.mubr.f32.mxu0 0.0
          %2839 = vmatmul.mubr.f32.gmra.mrb[0].mxu0 %v2698
          %v2840 = vpop.f32.mrb[0].mxu0
          %v2841 = vadd.f32 0.0, %v2840
          %v2842 = vpop.f32.mrb[0].mxu0
          %v2843 = vadd.f32 0.0, %v2842
          %2844 = vdwg.mxu0
          %v2845 = vadd.f32 %v2699, %v2770
          %v2846 = vadd.f32 %v2700, %v2772
          %v2847 = vadd.f32 %v2701, %v2841
          %v2848 = vadd.f32 %v2702, %v2843
          %v2849 = vxor.u32 %v2845, 2147483648
          %v2850 = vmul.f32 %v2849, 1.442695
          %v2851 = vpow.pop %v2850
          %v2852 = vadd.f32 %v2851, 1.0
          %v2853 = vrcp.pop %v2852
          %v2854 = vmul.f32 1.0, %v2853
          %v2855 = vxor.u32 %v2846, 2147483648
          %v2856 = vmul.f32 %v2855, 1.442695
          %v2857 = vpow.pop %v2856
          %v2858 = vadd.f32 %v2857, 1.0
          %v2859 = vrcp.pop %v2858
          %v2860 = vmul.f32 1.0, %v2859
          %v2861 = vtanh.pop %v2847
          %v2862 = vxor.u32 %v2848, 2147483648
          %v2863 = vmul.f32 %v2862, 1.442695
          %v2864 = vpow.pop %v2863
          %v2865 = vadd.f32 %v2864, 1.0
          %v2866 = vrcp.pop %v2865
          %v2867 = vmul.f32 1.0, %v2866
          %v2868 = vmul.f32 %v2860, %v2696
          %v2869 = vmul.f32 %v2854, %v2861
          %v2870 = vadd.f32 %v2868, %v2869
          %v2871 = vtanh.pop %v2870
          %v2872 = vmul.f32 %v2867, %v2871
          %v2873 = vld [vmem:[#allocation2 + $0xe0] sm:$0xff]
          %v2874 = vld [vmem:[#allocation2 + $0xe8] sm:$0xff]
          %v2875 = vld [vmem:[#allocation2 + $0xf0] sm:$0xff]
          %v2876 = vld [vmem:[#allocation2 + $0xf8] sm:$0xff]
          %2877 = vmatprep.subr.mxu0 %v1596
          %2878 = vmatpush1.msra.mxu0 %v1595
          %2879 = vmatprep.subr.mxu0 %v1600
          %2880 = vmatpush1.msra.mxu0 %v1599
          %2881 = vmatprep.subr.mxu0 %v1604
          %2882 = vmatpush1.msra.mxu0 %v1603
          %2883 = vmatprep.subr.mxu0 %v1608
          %2884 = vmatpush1.msra.mxu0 %v1607
          %2885 = vmatprep.subr.mxu0 %v1612
          %2886 = vmatpush1.msra.mxu0 %v1611
          %2887 = vmatprep.subr.mxu0 %v1616
          %2888 = vmatpush1.msra.mxu0 %v1615
          %2889 = vmatprep.subr.mxu0 %v1620
          %2890 = vmatpush1.msra.mxu0 %v1619
          %2891 = vmatprep.subr.mxu0 %v1624
          %2892 = vmatpush1.msra.mxu0 %v1623
          %2893 = vmatprep.subr.mxu0 %v1628
          %2894 = vmatpush1.msra.mxu0 %v1627
          %2895 = vmatprep.subr.mxu0 %v1632
          %2896 = vmatpush1.msra.mxu0 %v1631
          %2897 = vmatprep.subr.mxu0 %v1636
          %2898 = vmatpush1.msra.mxu0 %v1635
          %2899 = vmatprep.subr.mxu0 %v1640
          %2900 = vmatpush1.msra.mxu0 %v1639
          %2901 = vmatprep.subr.mxu0 %v1644
          %2902 = vmatpush1.msra.mxu0 %v1643
          %2903 = vmatprep.subr.mxu0 %v1648
          %2904 = vmatpush1.msra.mxu0 %v1647
          %2905 = vmatprep.subr.mxu0 %v1652
          %2906 = vmatpush1.msra.mxu0 %v1651
          %2907 = vmatprep.subr.mxu0 %v1656
          %2908 = vmatpush1.msra.mxu0 %v1655
          %2909 = vmatprep.subr.mxu0 0.0
          %2910 = vmatpush1.msra.mxu0 0.0
          %2911 = vmatprep.subr.mxu0 0.0
          %2912 = vmatpush1.msra.mxu0 0.0
          %2913 = vmatprep.subr.mxu0 0.0
          %2914 = vmatpush1.msra.mxu0 0.0
          %2915 = vmatprep.subr.mxu0 0.0
          %2916 = vmatpush1.msra.mxu0 0.0
          %2917 = vmatprep.subr.mxu0 0.0
          %2918 = vmatpush1.msra.mxu0 0.0
          %2919 = vmatprep.subr.mxu0 0.0
          %2920 = vmatpush1.msra.mxu0 0.0
          %2921 = vmatprep.subr.mxu0 0.0
          %2922 = vmatpush1.msra.mxu0 0.0
          %2923 = vmatprep.subr.mxu0 0.0
          %2924 = vmatpush1.msra.mxu0 0.0
          %2925 = vmatprep.subr.mxu0 0.0
          %2926 = vmatpush1.msra.mxu0 0.0
          %2927 = vmatprep.subr.mxu0 0.0
          %2928 = vmatpush1.msra.mxu0 0.0
          %2929 = vmatprep.subr.mxu0 0.0
          %2930 = vmatpush1.msra.mxu0 0.0
          %2931 = vmatprep.subr.mxu0 0.0
          %2932 = vmatpush1.msra.mxu0 0.0
          %2933 = vmatprep.subr.mxu0 0.0
          %2934 = vmatpush1.msra.mxu0 0.0
          %2935 = vmatprep.subr.mxu0 0.0
          %2936 = vmatpush1.msra.mxu0 0.0
          %2937 = vmatprep.subr.mxu0 0.0
          %2938 = vmatpush1.msra.mxu0 0.0
          %2939 = vmatprep.subr.mxu0 0.0
          %2940 = vmatpush1.msra.mxu0 0.0
          %2941 = vmatprep.mubr.f32.mxu0 0.0
          %2942 = vmatmul.mubr.f32.gmra.mrb[0].mxu0 %v2872
          %v2943 = vpop.f32.mrb[0].mxu0
          %v2944 = vadd.f32 0.0, %v2943
          %v2945 = vpop.f32.mrb[0].mxu0
          %v2946 = vadd.f32 0.0, %v2945
          %2947 = vdwg.mxu0
          %2948 = vmatprep.subr.mxu0 %v1598
          %2949 = vmatpush1.msra.mxu0 %v1597
          %2950 = vmatprep.subr.mxu0 %v1602
          %2951 = vmatpush1.msra.mxu0 %v1601
          %2952 = vmatprep.subr.mxu0 %v1606
          %2953 = vmatpush1.msra.mxu0 %v1605
          %2954 = vmatprep.subr.mxu0 %v1610
          %2955 = vmatpush1.msra.mxu0 %v1609
          %2956 = vmatprep.subr.mxu0 %v1614
          %2957 = vmatpush1.msra.mxu0 %v1613
          %2958 = vmatprep.subr.mxu0 %v1618
          %2959 = vmatpush1.msra.mxu0 %v1617
          %2960 = vmatprep.subr.mxu0 %v1622
          %2961 = vmatpush1.msra.mxu0 %v1621
          %2962 = vmatprep.subr.mxu0 %v1626
          %2963 = vmatpush1.msra.mxu0 %v1625
          %2964 = vmatprep.subr.mxu0 %v1630
          %2965 = vmatpush1.msra.mxu0 %v1629
          %2966 = vmatprep.subr.mxu0 %v1634
          %2967 = vmatpush1.msra.mxu0 %v1633
          %2968 = vmatprep.subr.mxu0 %v1638
          %2969 = vmatpush1.msra.mxu0 %v1637
          %2970 = vmatprep.subr.mxu0 %v1642
          %2971 = vmatpush1.msra.mxu0 %v1641
          %2972 = vmatprep.subr.mxu0 %v1646
          %2973 = vmatpush1.msra.mxu0 %v1645
          %2974 = vmatprep.subr.mxu0 %v1650
          %2975 = vmatpush1.msra.mxu0 %v1649
          %2976 = vmatprep.subr.mxu0 %v1654
          %2977 = vmatpush1.msra.mxu0 %v1653
          %2978 = vmatprep.subr.mxu0 %v1658
          %2979 = vmatpush1.msra.mxu0 %v1657
          %2980 = vmatprep.subr.mxu0 0.0
          %2981 = vmatpush1.msra.mxu0 0.0
          %2982 = vmatprep.subr.mxu0 0.0
          %2983 = vmatpush1.msra.mxu0 0.0
          %2984 = vmatprep.subr.mxu0 0.0
          %2985 = vmatpush1.msra.mxu0 0.0
          %2986 = vmatprep.subr.mxu0 0.0
          %2987 = vmatpush1.msra.mxu0 0.0
          %2988 = vmatprep.subr.mxu0 0.0
          %2989 = vmatpush1.msra.mxu0 0.0
          %2990 = vmatprep.subr.mxu0 0.0
          %2991 = vmatpush1.msra.mxu0 0.0
          %2992 = vmatprep.subr.mxu0 0.0
          %2993 = vmatpush1.msra.mxu0 0.0
          %2994 = vmatprep.subr.mxu0 0.0
          %2995 = vmatpush1.msra.mxu0 0.0
          %2996 = vmatprep.subr.mxu0 0.0
          %2997 = vmatpush1.msra.mxu0 0.0
          %2998 = vmatprep.subr.mxu0 0.0
          %2999 = vmatpush1.msra.mxu0 0.0
          %3000 = vmatprep.subr.mxu0 0.0
          %3001 = vmatpush1.msra.mxu0 0.0
          %3002 = vmatprep.subr.mxu0 0.0
          %3003 = vmatpush1.msra.mxu0 0.0
          %3004 = vmatprep.subr.mxu0 0.0
          %3005 = vmatpush1.msra.mxu0 0.0
          %3006 = vmatprep.subr.mxu0 0.0
          %3007 = vmatpush1.msra.mxu0 0.0
          %3008 = vmatprep.subr.mxu0 0.0
          %3009 = vmatpush1.msra.mxu0 0.0
          %3010 = vmatprep.subr.mxu0 0.0
          %3011 = vmatpush1.msra.mxu0 0.0
          %3012 = vmatprep.mubr.f32.mxu0 0.0
          %3013 = vmatmul.mubr.f32.gmra.mrb[0].mxu0 %v2872
          %v3014 = vpop.f32.mrb[0].mxu0
          %v3015 = vadd.f32 0.0, %v3014
          %v3016 = vpop.f32.mrb[0].mxu0
          %v3017 = vadd.f32 0.0, %v3016
          %3018 = vdwg.mxu0
          %v3019 = vadd.f32 %v2873, %v2944
          %v3020 = vadd.f32 %v2874, %v2946
          %v3021 = vadd.f32 %v2875, %v3015
          %v3022 = vadd.f32 %v2876, %v3017
          %v3023 = vxor.u32 %v3019, 2147483648
          %v3024 = vmul.f32 %v3023, 1.442695
          %v3025 = vpow.pop %v3024
          %v3026 = vadd.f32 %v3025, 1.0
          %v3027 = vrcp.pop %v3026
          %v3028 = vmul.f32 1.0, %v3027
          %v3029 = vxor.u32 %v3020, 2147483648
          %v3030 = vmul.f32 %v3029, 1.442695
          %v3031 = vpow.pop %v3030
          %v3032 = vadd.f32 %v3031, 1.0
          %v3033 = vrcp.pop %v3032
          %v3034 = vmul.f32 1.0, %v3033
          %v3035 = vtanh.pop %v3021
          %v3036 = vxor.u32 %v3022, 2147483648
          %v3037 = vmul.f32 %v3036, 1.442695
          %v3038 = vpow.pop %v3037
          %v3039 = vadd.f32 %v3038, 1.0
          %v3040 = vrcp.pop %v3039
          %v3041 = vmul.f32 1.0, %v3040
          %v3042 = vmul.f32 %v3034, %v2870
          %v3043 = vmul.f32 %v3028, %v3035
          %v3044 = vadd.f32 %v3042, %v3043
          %v3045 = vtanh.pop %v3044
          %v3046 = vmul.f32 %v3041, %v3045
          %v3047 = vld [vmem:[#allocation2 + $0x100] sm:$0xff]
          %v3048 = vld [vmem:[#allocation2 + $0x108] sm:$0xff]
          %v3049 = vld [vmem:[#allocation2 + $0x110] sm:$0xff]
          %v3050 = vld [vmem:[#allocation2 + $0x118] sm:$0xff]
          %3051 = vmatprep.subr.mxu0 %v1596
          %3052 = vmatpush1.msra.mxu0 %v1595
          %3053 = vmatprep.subr.mxu0 %v1600
          %3054 = vmatpush1.msra.mxu0 %v1599
          %3055 = vmatprep.subr.mxu0 %v1604
          %3056 = vmatpush1.msra.mxu0 %v1603
          %3057 = vmatprep.subr.mxu0 %v1608
          %3058 = vmatpush1.msra.mxu0 %v1607
          %3059 = vmatprep.subr.mxu0 %v1612
          %3060 = vmatpush1.msra.mxu0 %v1611
          %3061 = vmatprep.subr.mxu0 %v1616
          %3062 = vmatpush1.msra.mxu0 %v1615
          %3063 = vmatprep.subr.mxu0 %v1620
          %3064 = vmatpush1.msra.mxu0 %v1619
          %3065 = vmatprep.subr.mxu0 %v1624
          %3066 = vmatpush1.msra.mxu0 %v1623
          %3067 = vmatprep.subr.mxu0 %v1628
          %3068 = vmatpush1.msra.mxu0 %v1627
          %3069 = vmatprep.subr.mxu0 %v1632
          %3070 = vmatpush1.msra.mxu0 %v1631
          %3071 = vmatprep.subr.mxu0 %v1636
          %3072 = vmatpush1.msra.mxu0 %v1635
          %3073 = vmatprep.subr.mxu0 %v1640
          %3074 = vmatpush1.msra.mxu0 %v1639
          %3075 = vmatprep.subr.mxu0 %v1644
          %3076 = vmatpush1.msra.mxu0 %v1643
          %3077 = vmatprep.subr.mxu0 %v1648
          %3078 = vmatpush1.msra.mxu0 %v1647
          %3079 = vmatprep.subr.mxu0 %v1652
          %3080 = vmatpush1.msra.mxu0 %v1651
          %3081 = vmatprep.subr.mxu0 %v1656
          %3082 = vmatpush1.msra.mxu0 %v1655
          %3083 = vmatprep.subr.mxu0 0.0
          %3084 = vmatpush1.msra.mxu0 0.0
          %3085 = vmatprep.subr.mxu0 0.0
          %3086 = vmatpush1.msra.mxu0 0.0
          %3087 = vmatprep.subr.mxu0 0.0
          %3088 = vmatpush1.msra.mxu0 0.0
          %3089 = vmatprep.subr.mxu0 0.0
          %3090 = vmatpush1.msra.mxu0 0.0
          %3091 = vmatprep.subr.mxu0 0.0
          %3092 = vmatpush1.msra.mxu0 0.0
          %3093 = vmatprep.subr.mxu0 0.0
          %3094 = vmatpush1.msra.mxu0 0.0
          %3095 = vmatprep.subr.mxu0 0.0
          %3096 = vmatpush1.msra.mxu0 0.0
          %3097 = vmatprep.subr.mxu0 0.0
          %3098 = vmatpush1.msra.mxu0 0.0
          %3099 = vmatprep.subr.mxu0 0.0
          %3100 = vmatpush1.msra.mxu0 0.0
          %3101 = vmatprep.subr.mxu0 0.0
          %3102 = vmatpush1.msra.mxu0 0.0
          %3103 = vmatprep.subr.mxu0 0.0
          %3104 = vmatpush1.msra.mxu0 0.0
          %3105 = vmatprep.subr.mxu0 0.0
          %3106 = vmatpush1.msra.mxu0 0.0
          %3107 = vmatprep.subr.mxu0 0.0
          %3108 = vmatpush1.msra.mxu0 0.0
          %3109 = vmatprep.subr.mxu0 0.0
          %3110 = vmatpush1.msra.mxu0 0.0
          %3111 = vmatprep.subr.mxu0 0.0
          %3112 = vmatpush1.msra.mxu0 0.0
          %3113 = vmatprep.subr.mxu0 0.0
          %3114 = vmatpush1.msra.mxu0 0.0
          %3115 = vmatprep.mubr.f32.mxu0 0.0
          %3116 = vmatmul.mubr.f32.gmra.mrb[0].mxu0 %v3046
          %v3117 = vpop.f32.mrb[0].mxu0
          %v3118 = vadd.f32 0.0, %v3117
          %v3119 = vpop.f32.mrb[0].mxu0
          %v3120 = vadd.f32 0.0, %v3119
          %3121 = vdwg.mxu0
          %3122 = vmatprep.subr.mxu0 %v1598
          %3123 = vmatpush1.msra.mxu0 %v1597
          %3124 = vmatprep.subr.mxu0 %v1602
          %3125 = vmatpush1.msra.mxu0 %v1601
          %3126 = vmatprep.subr.mxu0 %v1606
          %3127 = vmatpush1.msra.mxu0 %v1605
          %3128 = vmatprep.subr.mxu0 %v1610
          %3129 = vmatpush1.msra.mxu0 %v1609
          %3130 = vmatprep.subr.mxu0 %v1614
          %3131 = vmatpush1.msra.mxu0 %v1613
          %3132 = vmatprep.subr.mxu0 %v1618
          %3133 = vmatpush1.msra.mxu0 %v1617
          %3134 = vmatprep.subr.mxu0 %v1622
          %3135 = vmatpush1.msra.mxu0 %v1621
          %3136 = vmatprep.subr.mxu0 %v1626
          %3137 = vmatpush1.msra.mxu0 %v1625
          %3138 = vmatprep.subr.mxu0 %v1630
          %3139 = vmatpush1.msra.mxu0 %v1629
          %3140 = vmatprep.subr.mxu0 %v1634
          %3141 = vmatpush1.msra.mxu0 %v1633
          %3142 = vmatprep.subr.mxu0 %v1638
          %3143 = vmatpush1.msra.mxu0 %v1637
          %3144 = vmatprep.subr.mxu0 %v1642
          %3145 = vmatpush1.msra.mxu0 %v1641
          %3146 = vmatprep.subr.mxu0 %v1646
          %3147 = vmatpush1.msra.mxu0 %v1645
          %3148 = vmatprep.subr.mxu0 %v1650
          %3149 = vmatpush1.msra.mxu0 %v1649
          %3150 = vmatprep.subr.mxu0 %v1654
          %3151 = vmatpush1.msra.mxu0 %v1653
          %3152 = vmatprep.subr.mxu0 %v1658
          %3153 = vmatpush1.msra.mxu0 %v1657
          %3154 = vmatprep.subr.mxu0 0.0
          %3155 = vmatpush1.msra.mxu0 0.0
          %3156 = vmatprep.subr.mxu0 0.0
          %3157 = vmatpush1.msra.mxu0 0.0
          %3158 = vmatprep.subr.mxu0 0.0
          %3159 = vmatpush1.msra.mxu0 0.0
          %3160 = vmatprep.subr.mxu0 0.0
          %3161 = vmatpush1.msra.mxu0 0.0
          %3162 = vmatprep.subr.mxu0 0.0
          %3163 = vmatpush1.msra.mxu0 0.0
          %3164 = vmatprep.subr.mxu0 0.0
          %3165 = vmatpush1.msra.mxu0 0.0
          %3166 = vmatprep.subr.mxu0 0.0
          %3167 = vmatpush1.msra.mxu0 0.0
          %3168 = vmatprep.subr.mxu0 0.0
          %3169 = vmatpush1.msra.mxu0 0.0
          %3170 = vmatprep.subr.mxu0 0.0
          %3171 = vmatpush1.msra.mxu0 0.0
          %3172 = vmatprep.subr.mxu0 0.0
          %3173 = vmatpush1.msra.mxu0 0.0
          %3174 = vmatprep.subr.mxu0 0.0
          %3175 = vmatpush1.msra.mxu0 0.0
          %3176 = vmatprep.subr.mxu0 0.0
          %3177 = vmatpush1.msra.mxu0 0.0
          %3178 = vmatprep.subr.mxu0 0.0
          %3179 = vmatpush1.msra.mxu0 0.0
          %3180 = vmatprep.subr.mxu0 0.0
          %3181 = vmatpush1.msra.mxu0 0.0
          %3182 = vmatprep.subr.mxu0 0.0
          %3183 = vmatpush1.msra.mxu0 0.0
          %3184 = vmatprep.subr.mxu0 0.0
          %3185 = vmatpush1.msra.mxu0 0.0
          %3186 = vmatprep.mubr.f32.mxu0 0.0
          %3187 = vmatmul.mubr.f32.gmra.mrb[0].mxu0 %v3046
          %v3188 = vpop.f32.mrb[0].mxu0
          %v3189 = vadd.f32 0.0, %v3188
          %v3190 = vpop.f32.mrb[0].mxu0
          %v3191 = vadd.f32 0.0, %v3190
          %3192 = vdwg.mxu0
          %v3193 = vadd.f32 %v3047, %v3118
          %v3194 = vadd.f32 %v3048, %v3120
          %v3195 = vadd.f32 %v3049, %v3189
          %v3196 = vadd.f32 %v3050, %v3191
          %v3197 = vxor.u32 %v3193, 2147483648
          %v3198 = vmul.f32 %v3197, 1.442695
          %v3199 = vpow.pop %v3198
          %v3200 = vadd.f32 %v3199, 1.0
          %v3201 = vrcp.pop %v3200
          %v3202 = vmul.f32 1.0, %v3201
          %v3203 = vxor.u32 %v3194, 2147483648
          %v3204 = vmul.f32 %v3203, 1.442695
          %v3205 = vpow.pop %v3204
          %v3206 = vadd.f32 %v3205, 1.0
          %v3207 = vrcp.pop %v3206
          %v3208 = vmul.f32 1.0, %v3207
          %v3209 = vtanh.pop %v3195
          %v3210 = vxor.u32 %v3196, 2147483648
          %v3211 = vmul.f32 %v3210, 1.442695
          %v3212 = vpow.pop %v3211
          %v3213 = vadd.f32 %v3212, 1.0
          %v3214 = vrcp.pop %v3213
          %v3215 = vmul.f32 1.0, %v3214
          %v3216 = vmul.f32 %v3208, %v3044
          %v3217 = vmul.f32 %v3202, %v3209
          %v3218 = vadd.f32 %v3216, %v3217
          %v3219 = vtanh.pop %v3218
          %v3220 = vmul.f32 %v3215, %v3219
          %v3221 = vld [vmem:[#allocation2 + $0x120] sm:$0xff]
          %v3222 = vld [vmem:[#allocation2 + $0x128] sm:$0xff]
          %v3223 = vld [vmem:[#allocation2 + $0x130] sm:$0xff]
          %v3224 = vld [vmem:[#allocation2 + $0x138] sm:$0xff]
          %3225 = vmatprep.subr.mxu0 %v1596
          %3226 = vmatpush1.msra.mxu0 %v1595
          %3227 = vmatprep.subr.mxu0 %v1600
          %3228 = vmatpush1.msra.mxu0 %v1599
          %3229 = vmatprep.subr.mxu0 %v1604
          %3230 = vmatpush1.msra.mxu0 %v1603
          %3231 = vmatprep.subr.mxu0 %v1608
          %3232 = vmatpush1.msra.mxu0 %v1607
          %3233 = vmatprep.subr.mxu0 %v1612
          %3234 = vmatpush1.msra.mxu0 %v1611
          %3235 = vmatprep.subr.mxu0 %v1616
          %3236 = vmatpush1.msra.mxu0 %v1615
          %3237 = vmatprep.subr.mxu0 %v1620
          %3238 = vmatpush1.msra.mxu0 %v1619
          %3239 = vmatprep.subr.mxu0 %v1624
          %3240 = vmatpush1.msra.mxu0 %v1623
          %3241 = vmatprep.subr.mxu0 %v1628
          %3242 = vmatpush1.msra.mxu0 %v1627
          %3243 = vmatprep.subr.mxu0 %v1632
          %3244 = vmatpush1.msra.mxu0 %v1631
          %3245 = vmatprep.subr.mxu0 %v1636
          %3246 = vmatpush1.msra.mxu0 %v1635
          %3247 = vmatprep.subr.mxu0 %v1640
          %3248 = vmatpush1.msra.mxu0 %v1639
          %3249 = vmatprep.subr.mxu0 %v1644
          %3250 = vmatpush1.msra.mxu0 %v1643
          %3251 = vmatprep.subr.mxu0 %v1648
          %3252 = vmatpush1.msra.mxu0 %v1647
          %3253 = vmatprep.subr.mxu0 %v1652
          %3254 = vmatpush1.msra.mxu0 %v1651
          %3255 = vmatprep.subr.mxu0 %v1656
          %3256 = vmatpush1.msra.mxu0 %v1655
          %3257 = vmatprep.subr.mxu0 0.0
          %3258 = vmatpush1.msra.mxu0 0.0
          %3259 = vmatprep.subr.mxu0 0.0
          %3260 = vmatpush1.msra.mxu0 0.0
          %3261 = vmatprep.subr.mxu0 0.0
          %3262 = vmatpush1.msra.mxu0 0.0
          %3263 = vmatprep.subr.mxu0 0.0
          %3264 = vmatpush1.msra.mxu0 0.0
          %3265 = vmatprep.subr.mxu0 0.0
          %3266 = vmatpush1.msra.mxu0 0.0
          %3267 = vmatprep.subr.mxu0 0.0
          %3268 = vmatpush1.msra.mxu0 0.0
          %3269 = vmatprep.subr.mxu0 0.0
          %3270 = vmatpush1.msra.mxu0 0.0
          %3271 = vmatprep.subr.mxu0 0.0
          %3272 = vmatpush1.msra.mxu0 0.0
          %3273 = vmatprep.subr.mxu0 0.0
          %3274 = vmatpush1.msra.mxu0 0.0
          %3275 = vmatprep.subr.mxu0 0.0
          %3276 = vmatpush1.msra.mxu0 0.0
          %3277 = vmatprep.subr.mxu0 0.0
          %3278 = vmatpush1.msra.mxu0 0.0
          %3279 = vmatprep.subr.mxu0 0.0
          %3280 = vmatpush1.msra.mxu0 0.0
          %3281 = vmatprep.subr.mxu0 0.0
          %3282 = vmatpush1.msra.mxu0 0.0
          %3283 = vmatprep.subr.mxu0 0.0
          %3284 = vmatpush1.msra.mxu0 0.0
          %3285 = vmatprep.subr.mxu0 0.0
          %3286 = vmatpush1.msra.mxu0 0.0
          %3287 = vmatprep.subr.mxu0 0.0
          %3288 = vmatpush1.msra.mxu0 0.0
          %3289 = vmatprep.mubr.f32.mxu0 0.0
          %3290 = vmatmul.mubr.f32.gmra.mrb[0].mxu0 %v3220
          %v3291 = vpop.f32.mrb[0].mxu0
          %v3292 = vadd.f32 0.0, %v3291
          %v3293 = vpop.f32.mrb[0].mxu0
          %v3294 = vadd.f32 0.0, %v3293
          %3295 = vdwg.mxu0
          %3296 = vmatprep.subr.mxu0 %v1598
          %3297 = vmatpush1.msra.mxu0 %v1597
          %3298 = vmatprep.subr.mxu0 %v1602
          %3299 = vmatpush1.msra.mxu0 %v1601
          %3300 = vmatprep.subr.mxu0 %v1606
          %3301 = vmatpush1.msra.mxu0 %v1605
          %3302 = vmatprep.subr.mxu0 %v1610
          %3303 = vmatpush1.msra.mxu0 %v1609
          %3304 = vmatprep.subr.mxu0 %v1614
          %3305 = vmatpush1.msra.mxu0 %v1613
          %3306 = vmatprep.subr.mxu0 %v1618
          %3307 = vmatpush1.msra.mxu0 %v1617
          %3308 = vmatprep.subr.mxu0 %v1622
          %3309 = vmatpush1.msra.mxu0 %v1621
          %3310 = vmatprep.subr.mxu0 %v1626
          %3311 = vmatpush1.msra.mxu0 %v1625
          %3312 = vmatprep.subr.mxu0 %v1630
          %3313 = vmatpush1.msra.mxu0 %v1629
          %3314 = vmatprep.subr.mxu0 %v1634
          %3315 = vmatpush1.msra.mxu0 %v1633
          %3316 = vmatprep.subr.mxu0 %v1638
          %3317 = vmatpush1.msra.mxu0 %v1637
          %3318 = vmatprep.subr.mxu0 %v1642
          %3319 = vmatpush1.msra.mxu0 %v1641
          %3320 = vmatprep.subr.mxu0 %v1646
          %3321 = vmatpush1.msra.mxu0 %v1645
          %3322 = vmatprep.subr.mxu0 %v1650
          %3323 = vmatpush1.msra.mxu0 %v1649
          %3324 = vmatprep.subr.mxu0 %v1654
          %3325 = vmatpush1.msra.mxu0 %v1653
          %3326 = vmatprep.subr.mxu0 %v1658
          %3327 = vmatpush1.msra.mxu0 %v1657
          %3328 = vmatprep.subr.mxu0 0.0
          %3329 = vmatpush1.msra.mxu0 0.0
          %3330 = vmatprep.subr.mxu0 0.0
          %3331 = vmatpush1.msra.mxu0 0.0
          %3332 = vmatprep.subr.mxu0 0.0
          %3333 = vmatpush1.msra.mxu0 0.0
          %3334 = vmatprep.subr.mxu0 0.0
          %3335 = vmatpush1.msra.mxu0 0.0
          %3336 = vmatprep.subr.mxu0 0.0
          %3337 = vmatpush1.msra.mxu0 0.0
          %3338 = vmatprep.subr.mxu0 0.0
          %3339 = vmatpush1.msra.mxu0 0.0
          %3340 = vmatprep.subr.mxu0 0.0
          %3341 = vmatpush1.msra.mxu0 0.0
          %3342 = vmatprep.subr.mxu0 0.0
          %3343 = vmatpush1.msra.mxu0 0.0
          %3344 = vmatprep.subr.mxu0 0.0
          %3345 = vmatpush1.msra.mxu0 0.0
          %3346 = vmatprep.subr.mxu0 0.0
          %3347 = vmatpush1.msra.mxu0 0.0
          %3348 = vmatprep.subr.mxu0 0.0
          %3349 = vmatpush1.msra.mxu0 0.0
          %3350 = vmatprep.subr.mxu0 0.0
          %3351 = vmatpush1.msra.mxu0 0.0
          %3352 = vmatprep.subr.mxu0 0.0
          %3353 = vmatpush1.msra.mxu0 0.0
          %3354 = vmatprep.subr.mxu0 0.0
          %3355 = vmatpush1.msra.mxu0 0.0
          %3356 = vmatprep.subr.mxu0 0.0
          %3357 = vmatpush1.msra.mxu0 0.0
          %3358 = vmatprep.subr.mxu0 0.0
          %3359 = vmatpush1.msra.mxu0 0.0
          %3360 = vmatprep.mubr.f32.mxu0 0.0
          %3361 = vmatmul.mubr.f32.gmra.mrb[0].mxu0 %v3220
          %v3362 = vpop.f32.mrb[0].mxu0
          %v3363 = vadd.f32 0.0, %v3362
          %v3364 = vpop.f32.mrb[0].mxu0
          %v3365 = vadd.f32 0.0, %v3364
          %3366 = vdwg.mxu0
          %v3367 = vadd.f32 %v3221, %v3292
          %v3368 = vadd.f32 %v3222, %v3294
          %v3369 = vadd.f32 %v3223, %v3363
          %v3370 = vadd.f32 %v3224, %v3365
          %v3371 = vxor.u32 %v3367, 2147483648
          %v3372 = vmul.f32 %v3371, 1.442695
          %v3373 = vpow.pop %v3372
          %v3374 = vadd.f32 %v3373, 1.0
          %v3375 = vrcp.pop %v3374
          %v3376 = vmul.f32 1.0, %v3375
          %v3377 = vxor.u32 %v3368, 2147483648
          %v3378 = vmul.f32 %v3377, 1.442695
          %v3379 = vpow.pop %v3378
          %v3380 = vadd.f32 %v3379, 1.0
          %v3381 = vrcp.pop %v3380
          %v3382 = vmul.f32 1.0, %v3381
          %v3383 = vtanh.pop %v3369
          %v3384 = vxor.u32 %v3370, 2147483648
          %v3385 = vmul.f32 %v3384, 1.442695
          %v3386 = vpow.pop %v3385
          %v3387 = vadd.f32 %v3386, 1.0
          %v3388 = vrcp.pop %v3387
          %v3389 = vmul.f32 1.0, %v3388
          %v3390 = vmul.f32 %v3382, %v3218
          %v3391 = vmul.f32 %v3376, %v3383
          %v3392 = vadd.f32 %v3390, %v3391
          %v3393 = vtanh.pop %v3392
          %v3394 = vmul.f32 %v3389, %v3393
          %v3395 = vld [vmem:[#allocation2 + $0x140] sm:$0xff]
          %v3396 = vld [vmem:[#allocation2 + $0x148] sm:$0xff]
          %v3397 = vld [vmem:[#allocation2 + $0x150] sm:$0xff]
          %v3398 = vld [vmem:[#allocation2 + $0x158] sm:$0xff]
          %3399 = vmatprep.subr.mxu0 %v1596
          %3400 = vmatpush1.msra.mxu0 %v1595
          %3401 = vmatprep.subr.mxu0 %v1600
          %3402 = vmatpush1.msra.mxu0 %v1599
          %3403 = vmatprep.subr.mxu0 %v1604
          %3404 = vmatpush1.msra.mxu0 %v1603
          %3405 = vmatprep.subr.mxu0 %v1608
          %3406 = vmatpush1.msra.mxu0 %v1607
          %3407 = vmatprep.subr.mxu0 %v1612
          %3408 = vmatpush1.msra.mxu0 %v1611
          %3409 = vmatprep.subr.mxu0 %v1616
          %3410 = vmatpush1.msra.mxu0 %v1615
          %3411 = vmatprep.subr.mxu0 %v1620
          %3412 = vmatpush1.msra.mxu0 %v1619
          %3413 = vmatprep.subr.mxu0 %v1624
          %3414 = vmatpush1.msra.mxu0 %v1623
          %3415 = vmatprep.subr.mxu0 %v1628
          %3416 = vmatpush1.msra.mxu0 %v1627
          %3417 = vmatprep.subr.mxu0 %v1632
          %3418 = vmatpush1.msra.mxu0 %v1631
          %3419 = vmatprep.subr.mxu0 %v1636
          %3420 = vmatpush1.msra.mxu0 %v1635
          %3421 = vmatprep.subr.mxu0 %v1640
          %3422 = vmatpush1.msra.mxu0 %v1639
          %3423 = vmatprep.subr.mxu0 %v1644
          %3424 = vmatpush1.msra.mxu0 %v1643
          %3425 = vmatprep.subr.mxu0 %v1648
          %3426 = vmatpush1.msra.mxu0 %v1647
          %3427 = vmatprep.subr.mxu0 %v1652
          %3428 = vmatpush1.msra.mxu0 %v1651
          %3429 = vmatprep.subr.mxu0 %v1656
          %3430 = vmatpush1.msra.mxu0 %v1655
          %3431 = vmatprep.subr.mxu0 0.0
          %3432 = vmatpush1.msra.mxu0 0.0
          %3433 = vmatprep.subr.mxu0 0.0
          %3434 = vmatpush1.msra.mxu0 0.0
          %3435 = vmatprep.subr.mxu0 0.0
          %3436 = vmatpush1.msra.mxu0 0.0
          %3437 = vmatprep.subr.mxu0 0.0
          %3438 = vmatpush1.msra.mxu0 0.0
          %3439 = vmatprep.subr.mxu0 0.0
          %3440 = vmatpush1.msra.mxu0 0.0
          %3441 = vmatprep.subr.mxu0 0.0
          %3442 = vmatpush1.msra.mxu0 0.0
          %3443 = vmatprep.subr.mxu0 0.0
          %3444 = vmatpush1.msra.mxu0 0.0
          %3445 = vmatprep.subr.mxu0 0.0
          %3446 = vmatpush1.msra.mxu0 0.0
          %3447 = vmatprep.subr.mxu0 0.0
          %3448 = vmatpush1.msra.mxu0 0.0
          %3449 = vmatprep.subr.mxu0 0.0
          %3450 = vmatpush1.msra.mxu0 0.0
          %3451 = vmatprep.subr.mxu0 0.0
          %3452 = vmatpush1.msra.mxu0 0.0
          %3453 = vmatprep.subr.mxu0 0.0
          %3454 = vmatpush1.msra.mxu0 0.0
          %3455 = vmatprep.subr.mxu0 0.0
          %3456 = vmatpush1.msra.mxu0 0.0
          %3457 = vmatprep.subr.mxu0 0.0
          %3458 = vmatpush1.msra.mxu0 0.0
          %3459 = vmatprep.subr.mxu0 0.0
          %3460 = vmatpush1.msra.mxu0 0.0
          %3461 = vmatprep.subr.mxu0 0.0
          %3462 = vmatpush1.msra.mxu0 0.0
          %3463 = vmatprep.mubr.f32.mxu0 0.0
          %3464 = vmatmul.mubr.f32.gmra.mrb[0].mxu0 %v3394
          %v3465 = vpop.f32.mrb[0].mxu0
          %v3466 = vadd.f32 0.0, %v3465
          %v3467 = vpop.f32.mrb[0].mxu0
          %v3468 = vadd.f32 0.0, %v3467
          %3469 = vdwg.mxu0
          %3470 = vmatprep.subr.mxu0 %v1598
          %3471 = vmatpush1.msra.mxu0 %v1597
          %3472 = vmatprep.subr.mxu0 %v1602
          %3473 = vmatpush1.msra.mxu0 %v1601
          %3474 = vmatprep.subr.mxu0 %v1606
          %3475 = vmatpush1.msra.mxu0 %v1605
          %3476 = vmatprep.subr.mxu0 %v1610
          %3477 = vmatpush1.msra.mxu0 %v1609
          %3478 = vmatprep.subr.mxu0 %v1614
          %3479 = vmatpush1.msra.mxu0 %v1613
          %3480 = vmatprep.subr.mxu0 %v1618
          %3481 = vmatpush1.msra.mxu0 %v1617
          %3482 = vmatprep.subr.mxu0 %v1622
          %3483 = vmatpush1.msra.mxu0 %v1621
          %3484 = vmatprep.subr.mxu0 %v1626
          %3485 = vmatpush1.msra.mxu0 %v1625
          %3486 = vmatprep.subr.mxu0 %v1630
          %3487 = vmatpush1.msra.mxu0 %v1629
          %3488 = vmatprep.subr.mxu0 %v1634
          %3489 = vmatpush1.msra.mxu0 %v1633
          %3490 = vmatprep.subr.mxu0 %v1638
          %3491 = vmatpush1.msra.mxu0 %v1637
          %3492 = vmatprep.subr.mxu0 %v1642
          %3493 = vmatpush1.msra.mxu0 %v1641
          %3494 = vmatprep.subr.mxu0 %v1646
          %3495 = vmatpush1.msra.mxu0 %v1645
          %3496 = vmatprep.subr.mxu0 %v1650
          %3497 = vmatpush1.msra.mxu0 %v1649
          %3498 = vmatprep.subr.mxu0 %v1654
          %3499 = vmatpush1.msra.mxu0 %v1653
          %3500 = vmatprep.subr.mxu0 %v1658
          %3501 = vmatpush1.msra.mxu0 %v1657
          %3502 = vmatprep.subr.mxu0 0.0
          %3503 = vmatpush1.msra.mxu0 0.0
          %3504 = vmatprep.subr.mxu0 0.0
          %3505 = vmatpush1.msra.mxu0 0.0
          %3506 = vmatprep.subr.mxu0 0.0
          %3507 = vmatpush1.msra.mxu0 0.0
          %3508 = vmatprep.subr.mxu0 0.0
          %3509 = vmatpush1.msra.mxu0 0.0
          %3510 = vmatprep.subr.mxu0 0.0
          %3511 = vmatpush1.msra.mxu0 0.0
          %3512 = vmatprep.subr.mxu0 0.0
          %3513 = vmatpush1.msra.mxu0 0.0
          %3514 = vmatprep.subr.mxu0 0.0
          %3515 = vmatpush1.msra.mxu0 0.0
          %3516 = vmatprep.subr.mxu0 0.0
          %3517 = vmatpush1.msra.mxu0 0.0
          %3518 = vmatprep.subr.mxu0 0.0
          %3519 = vmatpush1.msra.mxu0 0.0
          %3520 = vmatprep.subr.mxu0 0.0
          %3521 = vmatpush1.msra.mxu0 0.0
          %3522 = vmatprep.subr.mxu0 0.0
          %3523 = vmatpush1.msra.mxu0 0.0
          %3524 = vmatprep.subr.mxu0 0.0
          %3525 = vmatpush1.msra.mxu0 0.0
          %3526 = vmatprep.subr.mxu0 0.0
          %3527 = vmatpush1.msra.mxu0 0.0
          %3528 = vmatprep.subr.mxu0 0.0
          %3529 = vmatpush1.msra.mxu0 0.0
          %3530 = vmatprep.subr.mxu0 0.0
          %3531 = vmatpush1.msra.mxu0 0.0
          %3532 = vmatprep.subr.mxu0 0.0
          %3533 = vmatpush1.msra.mxu0 0.0
          %3534 = vmatprep.mubr.f32.mxu0 0.0
          %3535 = vmatmul.mubr.f32.gmra.mrb[0].mxu0 %v3394
          %v3536 = vpop.f32.mrb[0].mxu0
          %v3537 = vadd.f32 0.0, %v3536
          %v3538 = vpop.f32.mrb[0].mxu0
          %v3539 = vadd.f32 0.0, %v3538
          %3540 = vdwg.mxu0
          %v3541 = vadd.f32 %v3395, %v3466
          %v3542 = vadd.f32 %v3396, %v3468
          %v3543 = vadd.f32 %v3397, %v3537
          %v3544 = vadd.f32 %v3398, %v3539
          %v3545 = vxor.u32 %v3541, 2147483648
          %v3546 = vmul.f32 %v3545, 1.442695
          %v3547 = vpow.pop %v3546
          %v3548 = vadd.f32 %v3547, 1.0
          %v3549 = vrcp.pop %v3548
          %v3550 = vmul.f32 1.0, %v3549
          %v3551 = vxor.u32 %v3542, 2147483648
          %v3552 = vmul.f32 %v3551, 1.442695
          %v3553 = vpow.pop %v3552
          %v3554 = vadd.f32 %v3553, 1.0
          %v3555 = vrcp.pop %v3554
          %v3556 = vmul.f32 1.0, %v3555
          %v3557 = vtanh.pop %v3543
          %v3558 = vxor.u32 %v3544, 2147483648
          %v3559 = vmul.f32 %v3558, 1.442695
          %v3560 = vpow.pop %v3559
          %v3561 = vadd.f32 %v3560, 1.0
          %v3562 = vrcp.pop %v3561
          %v3563 = vmul.f32 1.0, %v3562
          %v3564 = vmul.f32 %v3556, %v3392
          %v3565 = vmul.f32 %v3550, %v3557
          %v3566 = vadd.f32 %v3564, %v3565
          %v3567 = vtanh.pop %v3566
          %v3568 = vmul.f32 %v3563, %v3567
          %v3569 = vld [vmem:[#allocation2 + $0x160] sm:$0xff]
          %v3570 = vld [vmem:[#allocation2 + $0x168] sm:$0xff]
          %v3571 = vld [vmem:[#allocation2 + $0x170] sm:$0xff]
          %v3572 = vld [vmem:[#allocation2 + $0x178] sm:$0xff]
          %3573 = vmatprep.subr.mxu0 %v1596
          %3574 = vmatpush1.msra.mxu0 %v1595
          %3575 = vmatprep.subr.mxu0 %v1600
          %3576 = vmatpush1.msra.mxu0 %v1599
          %3577 = vmatprep.subr.mxu0 %v1604
          %3578 = vmatpush1.msra.mxu0 %v1603
          %3579 = vmatprep.subr.mxu0 %v1608
          %3580 = vmatpush1.msra.mxu0 %v1607
          %3581 = vmatprep.subr.mxu0 %v1612
          %3582 = vmatpush1.msra.mxu0 %v1611
          %3583 = vmatprep.subr.mxu0 %v1616
          %3584 = vmatpush1.msra.mxu0 %v1615
          %3585 = vmatprep.subr.mxu0 %v1620
          %3586 = vmatpush1.msra.mxu0 %v1619
          %3587 = vmatprep.subr.mxu0 %v1624
          %3588 = vmatpush1.msra.mxu0 %v1623
          %3589 = vmatprep.subr.mxu0 %v1628
          %3590 = vmatpush1.msra.mxu0 %v1627
          %3591 = vmatprep.subr.mxu0 %v1632
          %3592 = vmatpush1.msra.mxu0 %v1631
          %3593 = vmatprep.subr.mxu0 %v1636
          %3594 = vmatpush1.msra.mxu0 %v1635
          %3595 = vmatprep.subr.mxu0 %v1640
          %3596 = vmatpush1.msra.mxu0 %v1639
          %3597 = vmatprep.subr.mxu0 %v1644
          %3598 = vmatpush1.msra.mxu0 %v1643
          %3599 = vmatprep.subr.mxu0 %v1648
          %3600 = vmatpush1.msra.mxu0 %v1647
          %3601 = vmatprep.subr.mxu0 %v1652
          %3602 = vmatpush1.msra.mxu0 %v1651
          %3603 = vmatprep.subr.mxu0 %v1656
          %3604 = vmatpush1.msra.mxu0 %v1655
          %3605 = vmatprep.subr.mxu0 0.0
          %3606 = vmatpush1.msra.mxu0 0.0
          %3607 = vmatprep.subr.mxu0 0.0
          %3608 = vmatpush1.msra.mxu0 0.0
          %3609 = vmatprep.subr.mxu0 0.0
          %3610 = vmatpush1.msra.mxu0 0.0
          %3611 = vmatprep.subr.mxu0 0.0
          %3612 = vmatpush1.msra.mxu0 0.0
          %3613 = vmatprep.subr.mxu0 0.0
          %3614 = vmatpush1.msra.mxu0 0.0
          %3615 = vmatprep.subr.mxu0 0.0
          %3616 = vmatpush1.msra.mxu0 0.0
          %3617 = vmatprep.subr.mxu0 0.0
          %3618 = vmatpush1.msra.mxu0 0.0
          %3619 = vmatprep.subr.mxu0 0.0
          %3620 = vmatpush1.msra.mxu0 0.0
          %3621 = vmatprep.subr.mxu0 0.0
          %3622 = vmatpush1.msra.mxu0 0.0
          %3623 = vmatprep.subr.mxu0 0.0
          %3624 = vmatpush1.msra.mxu0 0.0
          %3625 = vmatprep.subr.mxu0 0.0
          %3626 = vmatpush1.msra.mxu0 0.0
          %3627 = vmatprep.subr.mxu0 0.0
          %3628 = vmatpush1.msra.mxu0 0.0
          %3629 = vmatprep.subr.mxu0 0.0
          %3630 = vmatpush1.msra.mxu0 0.0
          %3631 = vmatprep.subr.mxu0 0.0
          %3632 = vmatpush1.msra.mxu0 0.0
          %3633 = vmatprep.subr.mxu0 0.0
          %3634 = vmatpush1.msra.mxu0 0.0
          %3635 = vmatprep.subr.mxu0 0.0
          %3636 = vmatpush1.msra.mxu0 0.0
          %3637 = vmatprep.mubr.f32.mxu0 0.0
          %3638 = vmatmul.mubr.f32.gmra.mrb[0].mxu0 %v3568
          %v3639 = vpop.f32.mrb[0].mxu0
          %v3640 = vadd.f32 0.0, %v3639
          %v3641 = vpop.f32.mrb[0].mxu0
          %v3642 = vadd.f32 0.0, %v3641
          %3643 = vdwg.mxu0
          %3644 = vmatprep.subr.mxu0 %v1598
          %3645 = vmatpush1.msra.mxu0 %v1597
          %3646 = vmatprep.subr.mxu0 %v1602
          %3647 = vmatpush1.msra.mxu0 %v1601
          %3648 = vmatprep.subr.mxu0 %v1606
          %3649 = vmatpush1.msra.mxu0 %v1605
          %3650 = vmatprep.subr.mxu0 %v1610
          %3651 = vmatpush1.msra.mxu0 %v1609
          %3652 = vmatprep.subr.mxu0 %v1614
          %3653 = vmatpush1.msra.mxu0 %v1613
          %3654 = vmatprep.subr.mxu0 %v1618
          %3655 = vmatpush1.msra.mxu0 %v1617
          %3656 = vmatprep.subr.mxu0 %v1622
          %3657 = vmatpush1.msra.mxu0 %v1621
          %3658 = vmatprep.subr.mxu0 %v1626
          %3659 = vmatpush1.msra.mxu0 %v1625
          %3660 = vmatprep.subr.mxu0 %v1630
          %3661 = vmatpush1.msra.mxu0 %v1629
          %3662 = vmatprep.subr.mxu0 %v1634
          %3663 = vmatpush1.msra.mxu0 %v1633
          %3664 = vmatprep.subr.mxu0 %v1638
          %3665 = vmatpush1.msra.mxu0 %v1637
          %3666 = vmatprep.subr.mxu0 %v1642
          %3667 = vmatpush1.msra.mxu0 %v1641
          %3668 = vmatprep.subr.mxu0 %v1646
          %3669 = vmatpush1.msra.mxu0 %v1645
          %3670 = vmatprep.subr.mxu0 %v1650
          %3671 = vmatpush1.msra.mxu0 %v1649
          %3672 = vmatprep.subr.mxu0 %v1654
          %3673 = vmatpush1.msra.mxu0 %v1653
          %3674 = vmatprep.subr.mxu0 %v1658
          %3675 = vmatpush1.msra.mxu0 %v1657
          %3676 = vmatprep.subr.mxu0 0.0
          %3677 = vmatpush1.msra.mxu0 0.0
          %3678 = vmatprep.subr.mxu0 0.0
          %3679 = vmatpush1.msra.mxu0 0.0
          %3680 = vmatprep.subr.mxu0 0.0
          %3681 = vmatpush1.msra.mxu0 0.0
          %3682 = vmatprep.subr.mxu0 0.0
          %3683 = vmatpush1.msra.mxu0 0.0
          %3684 = vmatprep.subr.mxu0 0.0
          %3685 = vmatpush1.msra.mxu0 0.0
          %3686 = vmatprep.subr.mxu0 0.0
          %3687 = vmatpush1.msra.mxu0 0.0
          %3688 = vmatprep.subr.mxu0 0.0
          %3689 = vmatpush1.msra.mxu0 0.0
          %3690 = vmatprep.subr.mxu0 0.0
          %3691 = vmatpush1.msra.mxu0 0.0
          %3692 = vmatprep.subr.mxu0 0.0
          %3693 = vmatpush1.msra.mxu0 0.0
          %3694 = vmatprep.subr.mxu0 0.0
          %3695 = vmatpush1.msra.mxu0 0.0
          %3696 = vmatprep.subr.mxu0 0.0
          %3697 = vmatpush1.msra.mxu0 0.0
          %3698 = vmatprep.subr.mxu0 0.0
          %3699 = vmatpush1.msra.mxu0 0.0
          %3700 = vmatprep.subr.mxu0 0.0
          %3701 = vmatpush1.msra.mxu0 0.0
          %3702 = vmatprep.subr.mxu0 0.0
          %3703 = vmatpush1.msra.mxu0 0.0
          %3704 = vmatprep.subr.mxu0 0.0
          %3705 = vmatpush1.msra.mxu0 0.0
          %3706 = vmatprep.subr.mxu0 0.0
          %3707 = vmatpush1.msra.mxu0 0.0
          %3708 = vmatprep.mubr.f32.mxu0 0.0
          %3709 = vmatmul.mubr.f32.gmra.mrb[0].mxu0 %v3568
          %v3710 = vpop.f32.mrb[0].mxu0
          %v3711 = vadd.f32 0.0, %v3710
          %v3712 = vpop.f32.mrb[0].mxu0
          %v3713 = vadd.f32 0.0, %v3712
          %3714 = vdwg.mxu0
          %v3715 = vadd.f32 %v3569, %v3640
          %v3716 = vadd.f32 %v3570, %v3642
          %v3717 = vadd.f32 %v3571, %v3711
          %v3718 = vadd.f32 %v3572, %v3713
          %v3719 = vxor.u32 %v3715, 2147483648
          %v3720 = vmul.f32 %v3719, 1.442695
          %v3721 = vpow.pop %v3720
          %v3722 = vadd.f32 %v3721, 1.0
          %v3723 = vrcp.pop %v3722
          %v3724 = vmul.f32 1.0, %v3723
          %v3725 = vxor.u32 %v3716, 2147483648
          %v3726 = vmul.f32 %v3725, 1.442695
          %v3727 = vpow.pop %v3726
          %v3728 = vadd.f32 %v3727, 1.0
          %v3729 = vrcp.pop %v3728
          %v3730 = vmul.f32 1.0, %v3729
          %v3731 = vtanh.pop %v3717
          %v3732 = vxor.u32 %v3718, 2147483648
          %v3733 = vmul.f32 %v3732, 1.442695
          %v3734 = vpow.pop %v3733
          %v3735 = vadd.f32 %v3734, 1.0
          %v3736 = vrcp.pop %v3735
          %v3737 = vmul.f32 1.0, %v3736
          %v3738 = vmul.f32 %v3730, %v3566
          %v3739 = vmul.f32 %v3724, %v3731
          %v3740 = vadd.f32 %v3738, %v3739
          %v3741 = vtanh.pop %v3740
          %v3742 = vmul.f32 %v3737, %v3741
          %v3743 = vld [vmem:[%s4] sm:$0xff]
          %v3744 = vld [vmem:[%s4 + $0x8] sm:$0xff]
          %v3745 = vld [vmem:[%s4 + $0x10] sm:$0xff]
          %v3746 = vld [vmem:[%s4 + $0x18] sm:$0xff]
          %v3747 = vld [vmem:[%s4 + $0x20] sm:$0xff]
          %v3748 = vld [vmem:[%s4 + $0x28] sm:$0xff]
          %v3749 = vld [vmem:[%s4 + $0x30] sm:$0xff]
          %v3750 = vld [vmem:[%s4 + $0x38] sm:$0xff]
          %v3751 = vld [vmem:[%s4 + $0x40] sm:$0xff]
          %v3752 = vld [vmem:[%s4 + $0x48] sm:$0xff]
          %v3753 = vld [vmem:[%s4 + $0x50] sm:$0xff]
          %v3754 = vld [vmem:[%s4 + $0x58] sm:$0xff]
          %v3755 = vld [vmem:[%s4 + $0x60] sm:$0xff]
          %v3756 = vld [vmem:[%s4 + $0x68] sm:$0xff]
          %v3757 = vld [vmem:[%s4 + $0x70] sm:$0xff]
          %v3758 = vld [vmem:[%s4 + $0x78] sm:$0xff]
          %v3759 = vld [vmem:[%s5] sm:$0x1]
          %v3761 = vlaneseq
          %v3762 = vshrl.u32 %v3761, 7
          %v3763 = vsub.s32 0, %v3762
          %v3764 = vrot.slane %v3759, %v3763
          %3766 = vmatprep.subr.mxu0 0.0
          %3767 = vmatpush1.msra.mxu0 %v3743
          %3768 = vmatprep.subr.mxu0 0.0
          %3769 = vmatpush1.msra.mxu0 %v3744
          %3770 = vmatprep.subr.mxu0 0.0
          %3771 = vmatpush1.msra.mxu0 %v3745
          %3772 = vmatprep.subr.mxu0 0.0
          %3773 = vmatpush1.msra.mxu0 %v3746
          %3774 = vmatprep.subr.mxu0 0.0
          %3775 = vmatpush1.msra.mxu0 %v3747
          %3776 = vmatprep.subr.mxu0 0.0
          %3777 = vmatpush1.msra.mxu0 %v3748
          %3778 = vmatprep.subr.mxu0 0.0
          %3779 = vmatpush1.msra.mxu0 %v3749
          %3780 = vmatprep.subr.mxu0 0.0
          %3781 = vmatpush1.msra.mxu0 %v3750
          %3782 = vmatprep.subr.mxu0 0.0
          %3783 = vmatpush1.msra.mxu0 %v3751
          %3784 = vmatprep.subr.mxu0 0.0
          %3785 = vmatpush1.msra.mxu0 %v3752
          %3786 = vmatprep.subr.mxu0 0.0
          %3787 = vmatpush1.msra.mxu0 %v3753
          %3788 = vmatprep.subr.mxu0 0.0
          %3789 = vmatpush1.msra.mxu0 %v3754
          %3790 = vmatprep.subr.mxu0 0.0
          %3791 = vmatpush1.msra.mxu0 %v3755
          %3792 = vmatprep.subr.mxu0 0.0
          %3793 = vmatpush1.msra.mxu0 %v3756
          %3794 = vmatprep.subr.mxu0 0.0
          %3795 = vmatpush1.msra.mxu0 %v3757
          %3796 = vmatprep.subr.mxu0 0.0
          %3797 = vmatpush1.msra.mxu0 %v3758
          %3798 = vmatprep.subr.mxu0 0.0
          %3799 = vmatpush1.msra.mxu0 0.0
          %3800 = vmatprep.subr.mxu0 0.0
          %3801 = vmatpush1.msra.mxu0 0.0
          %3802 = vmatprep.subr.mxu0 0.0
          %3803 = vmatpush1.msra.mxu0 0.0
          %3804 = vmatprep.subr.mxu0 0.0
          %3805 = vmatpush1.msra.mxu0 0.0
          %3806 = vmatprep.subr.mxu0 0.0
          %3807 = vmatpush1.msra.mxu0 0.0
          %3808 = vmatprep.subr.mxu0 0.0
          %3809 = vmatpush1.msra.mxu0 0.0
          %3810 = vmatprep.subr.mxu0 0.0
          %3811 = vmatpush1.msra.mxu0 0.0
          %3812 = vmatprep.subr.mxu0 0.0
          %3813 = vmatpush1.msra.mxu0 0.0
          %3814 = vmatprep.subr.mxu0 0.0
          %3815 = vmatpush1.msra.mxu0 0.0
          %3816 = vmatprep.subr.mxu0 0.0
          %3817 = vmatpush1.msra.mxu0 0.0
          %3818 = vmatprep.subr.mxu0 0.0
          %3819 = vmatpush1.msra.mxu0 0.0
          %3820 = vmatprep.subr.mxu0 0.0
          %3821 = vmatpush1.msra.mxu0 0.0
          %3822 = vmatprep.subr.mxu0 0.0
          %3823 = vmatpush1.msra.mxu0 0.0
          %3824 = vmatprep.subr.mxu0 0.0
          %3825 = vmatpush1.msra.mxu0 0.0
          %3826 = vmatprep.subr.mxu0 0.0
          %3827 = vmatpush1.msra.mxu0 0.0
          %3828 = vmatprep.subr.mxu0 0.0
          %3829 = vmatpush1.msra.mxu0 0.0
          %3830 = vmatprep.mubr.f32.mxu0 0.0
          %3831 = vmatmul.mubr.f32.gmra.mrb[0].mxu0 %v3742
          %v3832 = vpop.f32.mrb[0].mxu0
          %v3833 = vadd.f32 %v3764, %v3832
          %v3834 = vpop.f32.mrb[0].mxu0
          %3835 = vdwg.mxu0
          %vm3836 = vcmask 31744
          %3837 = vst.msk [vmem:[%s6] sm:$0xff] %vm3836, %v3833
        $region68: #{bert_lstm_capsule_head.1} parent=43 // pred_fallthru
          _
        // Predicated region
        $region69: #{bert_lstm_capsule_head.1} parent=43 // pred_check
          %p3838 = pneg %p172
        $region70: #{bert_lstm_capsule_head.1} parent=43 // pred_check_branch
          %3840 = sbr.rel (%p3838) target = $region72
        $region71: #{bert_lstm_capsule_head.1} parent=43 // pred_region
          _
        $region72: #{bert_lstm_capsule_head.1} parent=43 // pred_fallthru
          _
        // Predicated region
        $region73: #{bert_lstm_capsule_head.1} parent=43 // pred_check
          %p3841 = pneg %p172
        $region74: #{bert_lstm_capsule_head.1} parent=43 // pred_check_branch
          %3843 = sbr.rel (%p3841) target = $region76
        $region75: #{bert_lstm_capsule_head.1} parent=43 // pred_region
          _
        $region76: #{bert_lstm_capsule_head.1} parent=43 // pred_fallthru
          _
      $region44: #{bert_lstm_capsule_head.1} parent=5 // pred_fallthru
        _
      %p3844 = scmp.le.s32.totalorder 2, %s18
      // Predicated region
      $region77: #{bert_lstm_capsule_head.1} parent=5 // pred_check
        %p3845 = pneg %p3844
      $region78: #{bert_lstm_capsule_head.1} parent=5 // pred_check_branch
        %3847 = sbr.rel (%p3845) target = $region80
      $region79: #{bert_lstm_capsule_head.1} parent=5 // pred_region
        %s3848 = ssub.s32 %s18, 2
      $region80: #{bert_lstm_capsule_head.1} parent=5 // pred_fallthru
        _
    $region6: #{bert_lstm_capsule_head.1} parent=1 // loop_footer
      %s22 = sadd.s32 1, %s18
    $region7: #{bert_lstm_capsule_head.1} parent=1 // loop_footer_branch
      %17 = sbr.rel target = $region3
    $region8: #{bert_lstm_capsule_head.1} parent=1 // loop_exit
      _
    %3849 = vsyncpa [#allocation4], 1
    %s3850 = scalar_lea.sflag [#allocation4], 1
    %3851 = vsyncpa %s3850, 1
    %3852 = vsyncpa [#allocation6], 1
    %s3853 = scalar_lea.sflag [#allocation6], 1
    %3854 = vsyncpa %s3853, 1

</llo_original>
